<compile_context>
chip_gen: v5e
topology: v5e:2x2
jax: 0.10.0
libtpu: 0.0.40
codegen_flags: <defaults>
</compile_context>

<pallas_src>
import functools

import jax
import jax.numpy as jnp
import numpy as np
from jax import lax
from jax.experimental import pallas as pl
from jax.experimental.pallas import tpu as pltpu

KSIZE = 7
PAD = KSIZE // 2  # 3


def _round_up(x, m):
    return ((x + m - 1) // m) * m


def _pick_c_tile(C, L, itemsize, budget_bytes=4 * 1024 * 1024):
    """Channel tile so the (double-buffered) x block stays well inside VMEM."""
    if C * L * itemsize <= budget_bytes:
        return C
    best = C
    for t in range(8, C, 8):          # multiples of 8 that divide C
        if C % t == 0 and t * L * itemsize <= budget_bytes:
            best = t
    return best


def spatial_attention_kernel(w_ref, x_ref, o_ref, pad_ref, *,
                             W, L, pad_top, Lp, n_c):
    """One (batch, channel-tile) grid step.

    w_ref  : SMEM f32[2*49]  conv taps: [avg-channel (pre-scaled by 1/C),
             max-channel], each row-major over (kh, kw).
    x_ref  : VMEM (1, c_tile, L) input block, L = H*W (lane-dense).
    o_ref  : VMEM (1, 1, L) output block (written on the last channel step).
    pad_ref: VMEM (2, Lp) f32 scratch: row 0 = running channel-sum, row 1 =
             running channel-max, stored at lane offset `pad_top` with zero
             halos on both sides (zero-padded 7x7 "same" conv).
    """
    c = pl.program_id(1)

    # ---- channel reduction for this C tile (lane-dense) -------------------
    x = x_ref[0].astype(jnp.float32)              # (c_tile, L)
    psum = jnp.sum(x, axis=0, keepdims=True)      # (1, L)
    pmax = jnp.max(x, axis=0, keepdims=True)      # (1, L)

    row_sum = (pl.ds(0, 1), pl.ds(pad_top, L))    # pad_top % 128 == 0 -> aligned
    row_max = (pl.ds(1, 1), pl.ds(pad_top, L))

    @pl.when(c == 0)
    def _init():
        # Zero the data region + halos (only 2*Lp floats), drop in first tile.
        pad_ref[...] = jnp.zeros_like(pad_ref)
        pad_ref[row_sum] = psum
        pad_ref[row_max] = pmax

    @pl.when(c > 0)
    def _accumulate():
        pad_ref[row_sum] += psum
        pad_ref[row_max] = jnp.maximum(pad_ref[row_max], pmax)

    # ---- last channel tile: 7x7 conv + sigmoid + lane-dense store ---------
    @pl.when(c == n_c - 1)
    def _conv_sigmoid_store():
        pb = pad_ref[...]                                    # (2, Lp) f32
        col = lax.broadcasted_iota(jnp.int32, (1, Lp), 1) % W

        acc = jnp.zeros((1, Lp), jnp.float32)
        # Static Python tap loops: roll amounts must be compile-time constants
        # to lower to cheap static XLU lane-rotates; the live set is only
        # {pb, acc, tmp, one rolled value}, so vreg pressure stays tiny.
        for kw in range(KSIZE):
            dx = kw - PAD
            # Horizontal edge mask depends on kw only -> 7 selects total.
            valid = jnp.logical_and(col + dx >= 0, col + dx < W)
            tmp = jnp.zeros((1, Lp), jnp.float32)
            for kh in range(KSIZE):
                # Source offset of this tap in the padded flat buffer:
                # pb[:, pad_top + (y+kh-3)*W + (x+kw-3)] for output i = y*W+x.
                s = pad_top + (kh - PAD) * W + dx
                r = pltpu.roll(pb, (-s) % Lp, axis=1)        # r[:, i] = pb[:, i+s]
                tmp = tmp + w_ref[0 * KSIZE * KSIZE + kh * KSIZE + kw] * r[0:1, :]
                tmp = tmp + w_ref[1 * KSIZE * KSIZE + kh * KSIZE + kw] * r[1:2, :]
            acc = acc + jnp.where(valid, tmp, 0.0)

        out = jax.nn.sigmoid(acc[:, :L])                     # (1, L) f32, exp on EUP
        o_ref[0] = out.astype(o_ref.dtype)


def spatial_attention(x, conv_weight):
    """x: (B, C, H, W); conv_weight: (1, 2, 7, 7) as in nn.Conv2d(2,1,7,bias=False)."""
    B, C, H, W = x.shape
    L = H * W
    # Zero halos around the flattened (H*W) map, sized for the 7x7 "same"
    # conv and 128-lane aligned so the in-kernel stores are unmasked.
    pad_top = _round_up(PAD * W, 128)
    Lp = _round_up(pad_top + L + PAD * W, 128)

    c_tile = _pick_c_tile(C, L, jnp.dtype(x.dtype).itemsize)
    n_c = C // c_tile

    # Lane-dense layouts: x as (B, C, H*W); output produced as (B, 1, H*W).
    xf = x.reshape(B, C, L)

    # Flatten conv taps; fold the channel-mean's 1/C into the avg-channel taps
    # so the kernel only needs a running channel *sum* across C tiles.
    w_avg = (conv_weight[0, 0].astype(jnp.float32) / C).reshape(-1)   # (49,)
    w_max = conv_weight[0, 1].astype(jnp.float32).reshape(-1)         # (49,)
    w_flat = jnp.concatenate([w_avg, w_max])                          # (98,)

    kernel = functools.partial(
        spatial_attention_kernel, W=W, L=L, pad_top=pad_top, Lp=Lp, n_c=n_c)

    out_flat = pl.pallas_call(
        kernel,
        out_shape=jax.ShapeDtypeStruct((B, 1, L), x.dtype),
        grid=(B, n_c),
        in_specs=[
            pl.BlockSpec(memory_space=pltpu.MemorySpace.SMEM),        # conv taps
            pl.BlockSpec((1, c_tile, L), lambda b, c: (b, c, 0)),     # x C-tile
        ],
        out_specs=pl.BlockSpec((1, 1, L), lambda b, c: (b, 0, 0)),
        scratch_shapes=[pltpu.VMEM((2, Lp), jnp.float32)],
        compiler_params=pltpu.CompilerParams(
            dimension_semantics=("parallel", "arbitrary"),
            vmem_limit_bytes=32 * 1024 * 1024),
    )(w_flat, xf)

    return out_flat.reshape(B, 1, H, W)


def reference(x, w):
    """Pure-JAX reference matching the PyTorch forward exactly."""
    avg = jnp.mean(x, axis=1, keepdims=True)
    mx = jnp.max(x, axis=1, keepdims=True)
    cat = jnp.concatenate([avg, mx], axis=1)
    y = lax.conv_general_dilated(
        cat, w, window_strides=(1, 1),
        padding=((PAD, PAD), (PAD, PAD)),
        dimension_numbers=("NCHW", "OIHW", "NCHW"))
    return jax.nn.sigmoid(y)


if __name__ == "__main__":
    key = jax.random.PRNGKey(0)
    kx, kw = jax.random.split(key)
    # Small shapes consistent with the module's forward: B=2, C=4, H=W=16.
    x = jax.random.normal(kx, (2, 4, 16, 16), dtype=jnp.float32)
    # Synthetic conv weight for nn.Conv2d(2, 1, 7, bias=False).
    w = jax.random.normal(kw, (1, 2, 7, 7), dtype=jnp.float32) * 0.1

    out = jax.block_until_ready(spatial_attention(x, w))
    ref = reference(x, w)
    np.testing.assert_allclose(np.asarray(out), np.asarray(ref),
                               atol=1e-5, rtol=1e-5)
    print("KERNEL_OK")
</pallas_src>

<mosaic_0001>
module attributes {stable_mosaic.version = 11 : i64} {
  func.func @spatial_attention_kernel(%arg0: i32, %arg1: i32, %arg2: memref<98xf32, #tpu.memory_space<smem>>, %arg3: memref<1x4x256xf32, #tpu.memory_space<vmem>>, %arg4: memref<1x1x256xf32, #tpu.memory_space<vmem>>, %arg5: memref<2x512xf32, #tpu.memory_space<vmem>>) attributes {dimension_semantics = [#tpu.dimension_semantics<parallel>, #tpu.dimension_semantics<arbitrary>], iteration_bounds = array<i64: 2, 1>, scalar_prefetch = 0 : i64, scratch_operands = 1 : i64, tpu.core_type = #tpu.core_type<tc>, window_params = [{transform_indices = @transform_0, window_bounds = array<i64: 98>}, {transform_indices = @transform_1, window_bounds = array<i64: 1, 4, 256>}, {transform_indices = @transform_2, window_bounds = array<i64: 1, 1, 256>}]} {
    %c0 = arith.constant 0 : index
    %c0_0 = arith.constant 0 : index
    %c0_1 = arith.constant 0 : index
    %0 = vector.load %arg3[%c0, %c0_0, %c0_1] : memref<1x4x256xf32, #tpu.memory_space<vmem>>, vector<1x4x256xf32>
    %1 = vector.shape_cast %0 : vector<1x4x256xf32> to vector<4x256xf32>
    %cst = arith.constant dense<0.000000e+00> : vector<256xf32>
    %2 = vector.multi_reduction <add>, %1, %cst [0] : vector<4x256xf32> to vector<256xf32>
    %3 = vector.shape_cast %2 : vector<256xf32> to vector<1x256xf32>
    %cst_2 = arith.constant dense<0xFF800000> : vector<256xf32>
    %4 = vector.multi_reduction <maximumf>, %1, %cst_2 [0] : vector<4x256xf32> to vector<256xf32>
    %5 = vector.shape_cast %4 : vector<256xf32> to vector<1x256xf32>
    %c0_i32 = arith.constant 0 : i32
    %6 = arith.cmpi eq, %arg1, %c0_i32 : i32
    %7 = arith.extui %6 : i1 to i32
    %c0_i32_3 = arith.constant 0 : i32
    %8 = arith.cmpi ne, %7, %c0_i32_3 : i32
    scf.if %8 {
      %cst_8 = arith.constant 0.000000e+00 : f32
      %15 = vector.broadcast %cst_8 : f32 to vector<2x512xf32>
      %c0_9 = arith.constant 0 : index
      %c0_10 = arith.constant 0 : index
      %16 = vector.load %arg5[%c0_9, %c0_10] : memref<2x512xf32, #tpu.memory_space<vmem>>, vector<2x512xf32>
      tpu.vector_store %arg5[%c0_9, %c0_10], %15 {strides = array<i32>} : memref<2x512xf32, #tpu.memory_space<vmem>>, vector<2x512xf32>,
      %c0_11 = arith.constant 0 : index
      %c128 = arith.constant 128 : index
      %17 = vector.load %arg5[%c0_11, %c128] : memref<2x512xf32, #tpu.memory_space<vmem>>, vector<1x256xf32>
      tpu.vector_store %arg5[%c0_11, %c128], %3 {strides = array<i32>} : memref<2x512xf32, #tpu.memory_space<vmem>>, vector<1x256xf32>,
      %c1 = arith.constant 1 : index
      %c128_12 = arith.constant 128 : index
      %18 = vector.load %arg5[%c1, %c128_12] : memref<2x512xf32, #tpu.memory_space<vmem>>, vector<1x256xf32>
      tpu.vector_store %arg5[%c1, %c128_12], %5 {strides = array<i32>} : memref<2x512xf32, #tpu.memory_space<vmem>>, vector<1x256xf32>,
    } else {
    }
    %c0_i32_4 = arith.constant 0 : i32
    %9 = arith.cmpi sgt, %arg1, %c0_i32_4 : i32
    %10 = arith.extui %9 : i1 to i32
    %c0_i32_5 = arith.constant 0 : i32
    %11 = arith.cmpi ne, %10, %c0_i32_5 : i32
    scf.if %11 {
      %c0_8 = arith.constant 0 : index
      %c128 = arith.constant 128 : index
      %15 = vector.load %arg5[%c0_8, %c128] : memref<2x512xf32, #tpu.memory_space<vmem>>, vector<1x256xf32>
      %16 = arith.addf %15, %3 : vector<1x256xf32>
      %c0_9 = arith.constant 0 : index
      %c128_10 = arith.constant 128 : index
      %17 = vector.load %arg5[%c0_9, %c128_10] : memref<2x512xf32, #tpu.memory_space<vmem>>, vector<1x256xf32>
      tpu.vector_store %arg5[%c0_9, %c128_10], %16 {strides = array<i32>} : memref<2x512xf32, #tpu.memory_space<vmem>>, vector<1x256xf32>,
      %c1 = arith.constant 1 : index
      %c128_11 = arith.constant 128 : index
      %18 = vector.load %arg5[%c1, %c128_11] : memref<2x512xf32, #tpu.memory_space<vmem>>, vector<1x256xf32>
      %19 = arith.maximumf %18, %5 : vector<1x256xf32>
      %c1_12 = arith.constant 1 : index
      %c128_13 = arith.constant 128 : index
      %20 = vector.load %arg5[%c1_12, %c128_13] : memref<2x512xf32, #tpu.memory_space<vmem>>, vector<1x256xf32>
      tpu.vector_store %arg5[%c1_12, %c128_13], %19 {strides = array<i32>} : memref<2x512xf32, #tpu.memory_space<vmem>>, vector<1x256xf32>,
    } else {
    }
    %c0_i32_6 = arith.constant 0 : i32
    %12 = arith.cmpi eq, %arg1, %c0_i32_6 : i32
    %13 = arith.extui %12 : i1 to i32
    %c0_i32_7 = arith.constant 0 : i32
    %14 = arith.cmpi ne, %13, %c0_i32_7 : i32
    scf.if %14 {
      %c0_8 = arith.constant 0 : index
      %c0_9 = arith.constant 0 : index
      %15 = vector.load %arg5[%c0_8, %c0_9] : memref<2x512xf32, #tpu.memory_space<vmem>>, vector<2x512xf32>
      %16 = tpu.iota {dimensions = array<i32: 1>} : vector<1x512xi32>
      %c16_i32 = arith.constant 16 : i32
      %c0_i32_10 = arith.constant 0 : i32
      %17 = arith.cmpi eq, %c16_i32, %c0_i32_10 : i32
      %c1_i32 = arith.constant 1 : i32
      %18 = arith.select %17, %c1_i32, %c16_i32 : i32
      %19 = vector.broadcast %18 : i32 to vector<1x512xi32>
      %20 = arith.remsi %16, %19 : vector<1x512xi32>
      %c0_i32_11 = arith.constant 0 : i32
      %21 = vector.broadcast %c0_i32_11 : i32 to vector<1x512xi32>
      %22 = arith.cmpi ne, %20, %21 : vector<1x512xi32>
      %c0_i32_12 = arith.constant 0 : i32
      %23 = vector.broadcast %c0_i32_12 : i32 to vector<1x512xi32>
      %24 = arith.cmpi slt, %20, %23 : vector<1x512xi32>
      %c0_i32_13 = arith.constant 0 : i32
      %25 = arith.cmpi slt, %18, %c0_i32_13 : i32
      %26 = vector.broadcast %25 : i1 to vector<1x512xi1>
      %27 = vector.broadcast %26 : vector<1x512xi1> to vector<1x512xi1>
      %28 = arith.xori %24, %27 : vector<1x512xi1>
      %29 = arith.andi %28, %22 : vector<1x512xi1>
      %30 = vector.broadcast %18 : i32 to vector<1x512xi32>
      %31 = arith.addi %20, %30 : vector<1x512xi32>
      %32 = arith.select %29, %31, %20 : vector<1x512xi1>, vector<1x512xi32>
      %cst_14 = arith.constant 0.000000e+00 : f32
      %33 = vector.broadcast %cst_14 : f32 to vector<1x512xf32>
      %c-3_i32 = arith.constant -3 : i32
      %34 = vector.broadcast %c-3_i32 : i32 to vector<1x512xi32>
      %35 = arith.addi %32, %34 : vector<1x512xi32>
      %c0_i32_15 = arith.constant 0 : i32
      %36 = vector.broadcast %c0_i32_15 : i32 to vector<1x512xi32>
      %37 = arith.cmpi sge, %35, %36 : vector<1x512xi32>
      %c-3_i32_16 = arith.constant -3 : i32
      %38 = vector.broadcast %c-3_i32_16 : i32 to vector<1x512xi32>
      %39 = arith.addi %32, %38 : vector<1x512xi32>
      %c16_i32_17 = arith.constant 16 : i32
      %40 = vector.broadcast %c16_i32_17 : i32 to vector<1x512xi32>
      %41 = arith.cmpi slt, %39, %40 : vector<1x512xi32>
      %42 = arith.andi %37, %41 : vector<1x512xi1>
      %cst_18 = arith.constant 0.000000e+00 : f32
      %43 = vector.broadcast %cst_18 : f32 to vector<1x512xf32>
      %c435_i32 = arith.constant 435 : i32
      %44 = tpu.dynamic_rotate %15 by %c435_i32 dim 1 : vector<2x512xf32>, i32 -> vector<2x512xf32>
      %c0_19 = arith.constant 0 : index
      %45 = memref.load %arg2[%c0_19] : memref<98xf32, #tpu.memory_space<smem>>
      %46 = vector.extract_strided_slice %44 {offsets = [0, 0], sizes = [1, 512], strides = [1, 1]} : vector<2x512xf32> to vector<1x512xf32>
      %47 = vector.broadcast %45 : f32 to vector<1x512xf32>
      %48 = arith.mulf %47, %46 : vector<1x512xf32>
      %49 = arith.addf %43, %48 : vector<1x512xf32>
      %c49 = arith.constant 49 : index
      %50 = memref.load %arg2[%c49] : memref<98xf32, #tpu.memory_space<smem>>
      %51 = vector.extract_strided_slice %44 {offsets = [1, 0], sizes = [1, 512], strides = [1, 1]} : vector<2x512xf32> to vector<1x512xf32>
      %52 = vector.broadcast %50 : f32 to vector<1x512xf32>
      %53 = arith.mulf %52, %51 : vector<1x512xf32>
      %54 = arith.addf %49, %53 : vector<1x512xf32>
      %c419_i32 = arith.constant 419 : i32
      %55 = tpu.dynamic_rotate %15 by %c419_i32 dim 1 : vector<2x512xf32>, i32 -> vector<2x512xf32>
      %c7 = arith.constant 7 : index
      %56 = memref.load %arg2[%c7] : memref<98xf32, #tpu.memory_space<smem>>
      %57 = vector.extract_strided_slice %55 {offsets = [0, 0], sizes = [1, 512], strides = [1, 1]} : vector<2x512xf32> to vector<1x512xf32>
      %58 = vector.broadcast %56 : f32 to vector<1x512xf32>
      %59 = arith.mulf %58, %57 : vector<1x512xf32>
      %60 = arith.addf %54, %59 : vector<1x512xf32>
      %c56 = arith.constant 56 : index
      %61 = memref.load %arg2[%c56] : memref<98xf32, #tpu.memory_space<smem>>
      %62 = vector.extract_strided_slice %55 {offsets = [1, 0], sizes = [1, 512], strides = [1, 1]} : vector<2x512xf32> to vector<1x512xf32>
      %63 = vector.broadcast %61 : f32 to vector<1x512xf32>
      %64 = arith.mulf %63, %62 : vector<1x512xf32>
      %65 = arith.addf %60, %64 : vector<1x512xf32>
      %c403_i32 = arith.constant 403 : i32
      %66 = tpu.dynamic_rotate %15 by %c403_i32 dim 1 : vector<2x512xf32>, i32 -> vector<2x512xf32>
      %c14 = arith.constant 14 : index
      %67 = memref.load %arg2[%c14] : memref<98xf32, #tpu.memory_space<smem>>
      %68 = vector.extract_strided_slice %66 {offsets = [0, 0], sizes = [1, 512], strides = [1, 1]} : vector<2x512xf32> to vector<1x512xf32>
      %69 = vector.broadcast %67 : f32 to vector<1x512xf32>
      %70 = arith.mulf %69, %68 : vector<1x512xf32>
      %71 = arith.addf %65, %70 : vector<1x512xf32>
      %c63 = arith.constant 63 : index
      %72 = memref.load %arg2[%c63] : memref<98xf32, #tpu.memory_space<smem>>
      %73 = vector.extract_strided_slice %66 {offsets = [1, 0], sizes = [1, 512], strides = [1, 1]} : vector<2x512xf32> to vector<1x512xf32>
      %74 = vector.broadcast %72 : f32 to vector<1x512xf32>
      %75 = arith.mulf %74, %73 : vector<1x512xf32>
      %76 = arith.addf %71, %75 : vector<1x512xf32>
      %c387_i32 = arith.constant 387 : i32
      %77 = tpu.dynamic_rotate %15 by %c387_i32 dim 1 : vector<2x512xf32>, i32 -> vector<2x512xf32>
      %c21 = arith.constant 21 : index
      %78 = memref.load %arg2[%c21] : memref<98xf32, #tpu.memory_space<smem>>
      %79 = vector.extract_strided_slice %77 {offsets = [0, 0], sizes = [1, 512], strides = [1, 1]} : vector<2x512xf32> to vector<1x512xf32>
      %80 = vector.broadcast %78 : f32 to vector<1x512xf32>
      %81 = arith.mulf %80, %79 : vector<1x512xf32>
      %82 = arith.addf %76, %81 : vector<1x512xf32>
      %c70 = arith.constant 70 : index
      %83 = memref.load %arg2[%c70] : memref<98xf32, #tpu.memory_space<smem>>
      %84 = vector.extract_strided_slice %77 {offsets = [1, 0], sizes = [1, 512], strides = [1, 1]} : vector<2x512xf32> to vector<1x512xf32>
      %85 = vector.broadcast %83 : f32 to vector<1x512xf32>
      %86 = arith.mulf %85, %84 : vector<1x512xf32>
      %87 = arith.addf %82, %86 : vector<1x512xf32>
      %c371_i32 = arith.constant 371 : i32
      %88 = tpu.dynamic_rotate %15 by %c371_i32 dim 1 : vector<2x512xf32>, i32 -> vector<2x512xf32>
      %c28 = arith.constant 28 : index
      %89 = memref.load %arg2[%c28] : memref<98xf32, #tpu.memory_space<smem>>
      %90 = vector.extract_strided_slice %88 {offsets = [0, 0], sizes = [1, 512], strides = [1, 1]} : vector<2x512xf32> to vector<1x512xf32>
      %91 = vector.broadcast %89 : f32 to vector<1x512xf32>
      %92 = arith.mulf %91, %90 : vector<1x512xf32>
      %93 = arith.addf %87, %92 : vector<1x512xf32>
      %c77 = arith.constant 77 : index
      %94 = memref.load %arg2[%c77] : memref<98xf32, #tpu.memory_space<smem>>
      %95 = vector.extract_strided_slice %88 {offsets = [1, 0], sizes = [1, 512], strides = [1, 1]} : vector<2x512xf32> to vector<1x512xf32>
      %96 = vector.broadcast %94 : f32 to vector<1x512xf32>
      %97 = arith.mulf %96, %95 : vector<1x512xf32>
      %98 = arith.addf %93, %97 : vector<1x512xf32>
      %c355_i32 = arith.constant 355 : i32
      %99 = tpu.dynamic_rotate %15 by %c355_i32 dim 1 : vector<2x512xf32>, i32 -> vector<2x512xf32>
      %c35 = arith.constant 35 : index
      %100 = memref.load %arg2[%c35] : memref<98xf32, #tpu.memory_space<smem>>
      %101 = vector.extract_strided_slice %99 {offsets = [0, 0], sizes = [1, 512], strides = [1, 1]} : vector<2x512xf32> to vector<1x512xf32>
      %102 = vector.broadcast %100 : f32 to vector<1x512xf32>
      %103 = arith.mulf %102, %101 : vector<1x512xf32>
      %104 = arith.addf %98, %103 : vector<1x512xf32>
      %c84 = arith.constant 84 : index
      %105 = memref.load %arg2[%c84] : memref<98xf32, #tpu.memory_space<smem>>
      %106 = vector.extract_strided_slice %99 {offsets = [1, 0], sizes = [1, 512], strides = [1, 1]} : vector<2x512xf32> to vector<1x512xf32>
      %107 = vector.broadcast %105 : f32 to vector<1x512xf32>
      %108 = arith.mulf %107, %106 : vector<1x512xf32>
      %109 = arith.addf %104, %108 : vector<1x512xf32>
      %c339_i32 = arith.constant 339 : i32
      %110 = tpu.dynamic_rotate %15 by %c339_i32 dim 1 : vector<2x512xf32>, i32 -> vector<2x512xf32>
      %c42 = arith.constant 42 : index
      %111 = memref.load %arg2[%c42] : memref<98xf32, #tpu.memory_space<smem>>
      %112 = vector.extract_strided_slice %110 {offsets = [0, 0], sizes = [1, 512], strides = [1, 1]} : vector<2x512xf32> to vector<1x512xf32>
      %113 = vector.broadcast %111 : f32 to vector<1x512xf32>
      %114 = arith.mulf %113, %112 : vector<1x512xf32>
      %115 = arith.addf %109, %114 : vector<1x512xf32>
      %c91 = arith.constant 91 : index
      %116 = memref.load %arg2[%c91] : memref<98xf32, #tpu.memory_space<smem>>
      %117 = vector.extract_strided_slice %110 {offsets = [1, 0], sizes = [1, 512], strides = [1, 1]} : vector<2x512xf32> to vector<1x512xf32>
      %118 = vector.broadcast %116 : f32 to vector<1x512xf32>
      %119 = arith.mulf %118, %117 : vector<1x512xf32>
      %120 = arith.addf %115, %119 : vector<1x512xf32>
      %cst_20 = arith.constant 0.000000e+00 : f32
      %121 = vector.broadcast %cst_20 : f32 to vector<1x512xf32>
      %122 = arith.select %42, %120, %121 : vector<1x512xi1>, vector<1x512xf32>
      %123 = arith.addf %33, %122 : vector<1x512xf32>
      %c-2_i32 = arith.constant -2 : i32
      %124 = vector.broadcast %c-2_i32 : i32 to vector<1x512xi32>
      %125 = arith.addi %32, %124 : vector<1x512xi32>
      %c0_i32_21 = arith.constant 0 : i32
      %126 = vector.broadcast %c0_i32_21 : i32 to vector<1x512xi32>
      %127 = arith.cmpi sge, %125, %126 : vector<1x512xi32>
      %c-2_i32_22 = arith.constant -2 : i32
      %128 = vector.broadcast %c-2_i32_22 : i32 to vector<1x512xi32>
      %129 = arith.addi %32, %128 : vector<1x512xi32>
      %c16_i32_23 = arith.constant 16 : i32
      %130 = vector.broadcast %c16_i32_23 : i32 to vector<1x512xi32>
      %131 = arith.cmpi slt, %129, %130 : vector<1x512xi32>
      %132 = arith.andi %127, %131 : vector<1x512xi1>
      %cst_24 = arith.constant 0.000000e+00 : f32
      %133 = vector.broadcast %cst_24 : f32 to vector<1x512xf32>
      %c434_i32 = arith.constant 434 : i32
      %134 = tpu.dynamic_rotate %15 by %c434_i32 dim 1 : vector<2x512xf32>, i32 -> vector<2x512xf32>
      %c1 = arith.constant 1 : index
      %135 = memref.load %arg2[%c1] : memref<98xf32, #tpu.memory_space<smem>>
      %136 = vector.extract_strided_slice %134 {offsets = [0, 0], sizes = [1, 512], strides = [1, 1]} : vector<2x512xf32> to vector<1x512xf32>
      %137 = vector.broadcast %135 : f32 to vector<1x512xf32>
      %138 = arith.mulf %137, %136 : vector<1x512xf32>
      %139 = arith.addf %133, %138 : vector<1x512xf32>
      %c50 = arith.constant 50 : index
      %140 = memref.load %arg2[%c50] : memref<98xf32, #tpu.memory_space<smem>>
      %141 = vector.extract_strided_slice %134 {offsets = [1, 0], sizes = [1, 512], strides = [1, 1]} : vector<2x512xf32> to vector<1x512xf32>
      %142 = vector.broadcast %140 : f32 to vector<1x512xf32>
      %143 = arith.mulf %142, %141 : vector<1x512xf32>
      %144 = arith.addf %139, %143 : vector<1x512xf32>
      %c418_i32 = arith.constant 418 : i32
      %145 = tpu.dynamic_rotate %15 by %c418_i32 dim 1 : vector<2x512xf32>, i32 -> vector<2x512xf32>
      %c8 = arith.constant 8 : index
      %146 = memref.load %arg2[%c8] : memref<98xf32, #tpu.memory_space<smem>>
      %147 = vector.extract_strided_slice %145 {offsets = [0, 0], sizes = [1, 512], strides = [1, 1]} : vector<2x512xf32> to vector<1x512xf32>
      %148 = vector.broadcast %146 : f32 to vector<1x512xf32>
      %149 = arith.mulf %148, %147 : vector<1x512xf32>
      %150 = arith.addf %144, %149 : vector<1x512xf32>
      %c57 = arith.constant 57 : index
      %151 = memref.load %arg2[%c57] : memref<98xf32, #tpu.memory_space<smem>>
      %152 = vector.extract_strided_slice %145 {offsets = [1, 0], sizes = [1, 512], strides = [1, 1]} : vector<2x512xf32> to vector<1x512xf32>
      %153 = vector.broadcast %151 : f32 to vector<1x512xf32>
      %154 = arith.mulf %153, %152 : vector<1x512xf32>
      %155 = arith.addf %150, %154 : vector<1x512xf32>
      %c402_i32 = arith.constant 402 : i32
      %156 = tpu.dynamic_rotate %15 by %c402_i32 dim 1 : vector<2x512xf32>, i32 -> vector<2x512xf32>
      %c15 = arith.constant 15 : index
      %157 = memref.load %arg2[%c15] : memref<98xf32, #tpu.memory_space<smem>>
      %158 = vector.extract_strided_slice %156 {offsets = [0, 0], sizes = [1, 512], strides = [1, 1]} : vector<2x512xf32> to vector<1x512xf32>
      %159 = vector.broadcast %157 : f32 to vector<1x512xf32>
      %160 = arith.mulf %159, %158 : vector<1x512xf32>
      %161 = arith.addf %155, %160 : vector<1x512xf32>
      %c64 = arith.constant 64 : index
      %162 = memref.load %arg2[%c64] : memref<98xf32, #tpu.memory_space<smem>>
      %163 = vector.extract_strided_slice %156 {offsets = [1, 0], sizes = [1, 512], strides = [1, 1]} : vector<2x512xf32> to vector<1x512xf32>
      %164 = vector.broadcast %162 : f32 to vector<1x512xf32>
      %165 = arith.mulf %164, %163 : vector<1x512xf32>
      %166 = arith.addf %161, %165 : vector<1x512xf32>
      %c386_i32 = arith.constant 386 : i32
      %167 = tpu.dynamic_rotate %15 by %c386_i32 dim 1 : vector<2x512xf32>, i32 -> vector<2x512xf32>
      %c22 = arith.constant 22 : index
      %168 = memref.load %arg2[%c22] : memref<98xf32, #tpu.memory_space<smem>>
      %169 = vector.extract_strided_slice %167 {offsets = [0, 0], sizes = [1, 512], strides = [1, 1]} : vector<2x512xf32> to vector<1x512xf32>
      %170 = vector.broadcast %168 : f32 to vector<1x512xf32>
      %171 = arith.mulf %170, %169 : vector<1x512xf32>
      %172 = arith.addf %166, %171 : vector<1x512xf32>
      %c71 = arith.constant 71 : index
      %173 = memref.load %arg2[%c71] : memref<98xf32, #tpu.memory_space<smem>>
      %174 = vector.extract_strided_slice %167 {offsets = [1, 0], sizes = [1, 512], strides = [1, 1]} : vector<2x512xf32> to vector<1x512xf32>
      %175 = vector.broadcast %173 : f32 to vector<1x512xf32>
      %176 = arith.mulf %175, %174 : vector<1x512xf32>
      %177 = arith.addf %172, %176 : vector<1x512xf32>
      %c370_i32 = arith.constant 370 : i32
      %178 = tpu.dynamic_rotate %15 by %c370_i32 dim 1 : vector<2x512xf32>, i32 -> vector<2x512xf32>
      %c29 = arith.constant 29 : index
      %179 = memref.load %arg2[%c29] : memref<98xf32, #tpu.memory_space<smem>>
      %180 = vector.extract_strided_slice %178 {offsets = [0, 0], sizes = [1, 512], strides = [1, 1]} : vector<2x512xf32> to vector<1x512xf32>
      %181 = vector.broadcast %179 : f32 to vector<1x512xf32>
      %182 = arith.mulf %181, %180 : vector<1x512xf32>
      %183 = arith.addf %177, %182 : vector<1x512xf32>
      %c78 = arith.constant 78 : index
      %184 = memref.load %arg2[%c78] : memref<98xf32, #tpu.memory_space<smem>>
      %185 = vector.extract_strided_slice %178 {offsets = [1, 0], sizes = [1, 512], strides = [1, 1]} : vector<2x512xf32> to vector<1x512xf32>
      %186 = vector.broadcast %184 : f32 to vector<1x512xf32>
      %187 = arith.mulf %186, %185 : vector<1x512xf32>
      %188 = arith.addf %183, %187 : vector<1x512xf32>
      %c354_i32 = arith.constant 354 : i32
      %189 = tpu.dynamic_rotate %15 by %c354_i32 dim 1 : vector<2x512xf32>, i32 -> vector<2x512xf32>
      %c36 = arith.constant 36 : index
      %190 = memref.load %arg2[%c36] : memref<98xf32, #tpu.memory_space<smem>>
      %191 = vector.extract_strided_slice %189 {offsets = [0, 0], sizes = [1, 512], strides = [1, 1]} : vector<2x512xf32> to vector<1x512xf32>
      %192 = vector.broadcast %190 : f32 to vector<1x512xf32>
      %193 = arith.mulf %192, %191 : vector<1x512xf32>
      %194 = arith.addf %188, %193 : vector<1x512xf32>
      %c85 = arith.constant 85 : index
      %195 = memref.load %arg2[%c85] : memref<98xf32, #tpu.memory_space<smem>>
      %196 = vector.extract_strided_slice %189 {offsets = [1, 0], sizes = [1, 512], strides = [1, 1]} : vector<2x512xf32> to vector<1x512xf32>
      %197 = vector.broadcast %195 : f32 to vector<1x512xf32>
      %198 = arith.mulf %197, %196 : vector<1x512xf32>
      %199 = arith.addf %194, %198 : vector<1x512xf32>
      %c338_i32 = arith.constant 338 : i32
      %200 = tpu.dynamic_rotate %15 by %c338_i32 dim 1 : vector<2x512xf32>, i32 -> vector<2x512xf32>
      %c43 = arith.constant 43 : index
      %201 = memref.load %arg2[%c43] : memref<98xf32, #tpu.memory_space<smem>>
      %202 = vector.extract_strided_slice %200 {offsets = [0, 0], sizes = [1, 512], strides = [1, 1]} : vector<2x512xf32> to vector<1x512xf32>
      %203 = vector.broadcast %201 : f32 to vector<1x512xf32>
      %204 = arith.mulf %203, %202 : vector<1x512xf32>
      %205 = arith.addf %199, %204 : vector<1x512xf32>
      %c92 = arith.constant 92 : index
      %206 = memref.load %arg2[%c92] : memref<98xf32, #tpu.memory_space<smem>>
      %207 = vector.extract_strided_slice %200 {offsets = [1, 0], sizes = [1, 512], strides = [1, 1]} : vector<2x512xf32> to vector<1x512xf32>
      %208 = vector.broadcast %206 : f32 to vector<1x512xf32>
      %209 = arith.mulf %208, %207 : vector<1x512xf32>
      %210 = arith.addf %205, %209 : vector<1x512xf32>
      %cst_25 = arith.constant 0.000000e+00 : f32
      %211 = vector.broadcast %cst_25 : f32 to vector<1x512xf32>
      %212 = arith.select %132, %210, %211 : vector<1x512xi1>, vector<1x512xf32>
      %213 = arith.addf %123, %212 : vector<1x512xf32>
      %c-1_i32 = arith.constant -1 : i32
      %214 = vector.broadcast %c-1_i32 : i32 to vector<1x512xi32>
      %215 = arith.addi %32, %214 : vector<1x512xi32>
      %c0_i32_26 = arith.constant 0 : i32
      %216 = vector.broadcast %c0_i32_26 : i32 to vector<1x512xi32>
      %217 = arith.cmpi sge, %215, %216 : vector<1x512xi32>
      %c-1_i32_27 = arith.constant -1 : i32
      %218 = vector.broadcast %c-1_i32_27 : i32 to vector<1x512xi32>
      %219 = arith.addi %32, %218 : vector<1x512xi32>
      %c16_i32_28 = arith.constant 16 : i32
      %220 = vector.broadcast %c16_i32_28 : i32 to vector<1x512xi32>
      %221 = arith.cmpi slt, %219, %220 : vector<1x512xi32>
      %222 = arith.andi %217, %221 : vector<1x512xi1>
      %cst_29 = arith.constant 0.000000e+00 : f32
      %223 = vector.broadcast %cst_29 : f32 to vector<1x512xf32>
      %c433_i32 = arith.constant 433 : i32
      %224 = tpu.dynamic_rotate %15 by %c433_i32 dim 1 : vector<2x512xf32>, i32 -> vector<2x512xf32>
      %c2 = arith.constant 2 : index
      %225 = memref.load %arg2[%c2] : memref<98xf32, #tpu.memory_space<smem>>
      %226 = vector.extract_strided_slice %224 {offsets = [0, 0], sizes = [1, 512], strides = [1, 1]} : vector<2x512xf32> to vector<1x512xf32>
      %227 = vector.broadcast %225 : f32 to vector<1x512xf32>
      %228 = arith.mulf %227, %226 : vector<1x512xf32>
      %229 = arith.addf %223, %228 : vector<1x512xf32>
      %c51 = arith.constant 51 : index
      %230 = memref.load %arg2[%c51] : memref<98xf32, #tpu.memory_space<smem>>
      %231 = vector.extract_strided_slice %224 {offsets = [1, 0], sizes = [1, 512], strides = [1, 1]} : vector<2x512xf32> to vector<1x512xf32>
      %232 = vector.broadcast %230 : f32 to vector<1x512xf32>
      %233 = arith.mulf %232, %231 : vector<1x512xf32>
      %234 = arith.addf %229, %233 : vector<1x512xf32>
      %c417_i32 = arith.constant 417 : i32
      %235 = tpu.dynamic_rotate %15 by %c417_i32 dim 1 : vector<2x512xf32>, i32 -> vector<2x512xf32>
      %c9 = arith.constant 9 : index
      %236 = memref.load %arg2[%c9] : memref<98xf32, #tpu.memory_space<smem>>
      %237 = vector.extract_strided_slice %235 {offsets = [0, 0], sizes = [1, 512], strides = [1, 1]} : vector<2x512xf32> to vector<1x512xf32>
      %238 = vector.broadcast %236 : f32 to vector<1x512xf32>
      %239 = arith.mulf %238, %237 : vector<1x512xf32>
      %240 = arith.addf %234, %239 : vector<1x512xf32>
      %c58 = arith.constant 58 : index
      %241 = memref.load %arg2[%c58] : memref<98xf32, #tpu.memory_space<smem>>
      %242 = vector.extract_strided_slice %235 {offsets = [1, 0], sizes = [1, 512], strides = [1, 1]} : vector<2x512xf32> to vector<1x512xf32>
      %243 = vector.broadcast %241 : f32 to vector<1x512xf32>
      %244 = arith.mulf %243, %242 : vector<1x512xf32>
      %245 = arith.addf %240, %244 : vector<1x512xf32>
      %c401_i32 = arith.constant 401 : i32
      %246 = tpu.dynamic_rotate %15 by %c401_i32 dim 1 : vector<2x512xf32>, i32 -> vector<2x512xf32>
      %c16 = arith.constant 16 : index
      %247 = memref.load %arg2[%c16] : memref<98xf32, #tpu.memory_space<smem>>
      %248 = vector.extract_strided_slice %246 {offsets = [0, 0], sizes = [1, 512], strides = [1, 1]} : vector<2x512xf32> to vector<1x512xf32>
      %249 = vector.broadcast %247 : f32 to vector<1x512xf32>
      %250 = arith.mulf %249, %248 : vector<1x512xf32>
      %251 = arith.addf %245, %250 : vector<1x512xf32>
      %c65 = arith.constant 65 : index
      %252 = memref.load %arg2[%c65] : memref<98xf32, #tpu.memory_space<smem>>
      %253 = vector.extract_strided_slice %246 {offsets = [1, 0], sizes = [1, 512], strides = [1, 1]} : vector<2x512xf32> to vector<1x512xf32>
      %254 = vector.broadcast %252 : f32 to vector<1x512xf32>
      %255 = arith.mulf %254, %253 : vector<1x512xf32>
      %256 = arith.addf %251, %255 : vector<1x512xf32>
      %c385_i32 = arith.constant 385 : i32
      %257 = tpu.dynamic_rotate %15 by %c385_i32 dim 1 : vector<2x512xf32>, i32 -> vector<2x512xf32>
      %c23 = arith.constant 23 : index
      %258 = memref.load %arg2[%c23] : memref<98xf32, #tpu.memory_space<smem>>
      %259 = vector.extract_strided_slice %257 {offsets = [0, 0], sizes = [1, 512], strides = [1, 1]} : vector<2x512xf32> to vector<1x512xf32>
      %260 = vector.broadcast %258 : f32 to vector<1x512xf32>
      %261 = arith.mulf %260, %259 : vector<1x512xf32>
      %262 = arith.addf %256, %261 : vector<1x512xf32>
      %c72 = arith.constant 72 : index
      %263 = memref.load %arg2[%c72] : memref<98xf32, #tpu.memory_space<smem>>
      %264 = vector.extract_strided_slice %257 {offsets = [1, 0], sizes = [1, 512], strides = [1, 1]} : vector<2x512xf32> to vector<1x512xf32>
      %265 = vector.broadcast %263 : f32 to vector<1x512xf32>
      %266 = arith.mulf %265, %264 : vector<1x512xf32>
      %267 = arith.addf %262, %266 : vector<1x512xf32>
      %c369_i32 = arith.constant 369 : i32
      %268 = tpu.dynamic_rotate %15 by %c369_i32 dim 1 : vector<2x512xf32>, i32 -> vector<2x512xf32>
      %c30 = arith.constant 30 : index
      %269 = memref.load %arg2[%c30] : memref<98xf32, #tpu.memory_space<smem>>
      %270 = vector.extract_strided_slice %268 {offsets = [0, 0], sizes = [1, 512], strides = [1, 1]} : vector<2x512xf32> to vector<1x512xf32>
      %271 = vector.broadcast %269 : f32 to vector<1x512xf32>
      %272 = arith.mulf %271, %270 : vector<1x512xf32>
      %273 = arith.addf %267, %272 : vector<1x512xf32>
      %c79 = arith.constant 79 : index
      %274 = memref.load %arg2[%c79] : memref<98xf32, #tpu.memory_space<smem>>
      %275 = vector.extract_strided_slice %268 {offsets = [1, 0], sizes = [1, 512], strides = [1, 1]} : vector<2x512xf32> to vector<1x512xf32>
      %276 = vector.broadcast %274 : f32 to vector<1x512xf32>
      %277 = arith.mulf %276, %275 : vector<1x512xf32>
      %278 = arith.addf %273, %277 : vector<1x512xf32>
      %c353_i32 = arith.constant 353 : i32
      %279 = tpu.dynamic_rotate %15 by %c353_i32 dim 1 : vector<2x512xf32>, i32 -> vector<2x512xf32>
      %c37 = arith.constant 37 : index
      %280 = memref.load %arg2[%c37] : memref<98xf32, #tpu.memory_space<smem>>
      %281 = vector.extract_strided_slice %279 {offsets = [0, 0], sizes = [1, 512], strides = [1, 1]} : vector<2x512xf32> to vector<1x512xf32>
      %282 = vector.broadcast %280 : f32 to vector<1x512xf32>
      %283 = arith.mulf %282, %281 : vector<1x512xf32>
      %284 = arith.addf %278, %283 : vector<1x512xf32>
      %c86 = arith.constant 86 : index
      %285 = memref.load %arg2[%c86] : memref<98xf32, #tpu.memory_space<smem>>
      %286 = vector.extract_strided_slice %279 {offsets = [1, 0], sizes = [1, 512], strides = [1, 1]} : vector<2x512xf32> to vector<1x512xf32>
      %287 = vector.broadcast %285 : f32 to vector<1x512xf32>
      %288 = arith.mulf %287, %286 : vector<1x512xf32>
      %289 = arith.addf %284, %288 : vector<1x512xf32>
      %c337_i32 = arith.constant 337 : i32
      %290 = tpu.dynamic_rotate %15 by %c337_i32 dim 1 : vector<2x512xf32>, i32 -> vector<2x512xf32>
      %c44 = arith.constant 44 : index
      %291 = memref.load %arg2[%c44] : memref<98xf32, #tpu.memory_space<smem>>
      %292 = vector.extract_strided_slice %290 {offsets = [0, 0], sizes = [1, 512], strides = [1, 1]} : vector<2x512xf32> to vector<1x512xf32>
      %293 = vector.broadcast %291 : f32 to vector<1x512xf32>
      %294 = arith.mulf %293, %292 : vector<1x512xf32>
      %295 = arith.addf %289, %294 : vector<1x512xf32>
      %c93 = arith.constant 93 : index
      %296 = memref.load %arg2[%c93] : memref<98xf32, #tpu.memory_space<smem>>
      %297 = vector.extract_strided_slice %290 {offsets = [1, 0], sizes = [1, 512], strides = [1, 1]} : vector<2x512xf32> to vector<1x512xf32>
      %298 = vector.broadcast %296 : f32 to vector<1x512xf32>
      %299 = arith.mulf %298, %297 : vector<1x512xf32>
      %300 = arith.addf %295, %299 : vector<1x512xf32>
      %cst_30 = arith.constant 0.000000e+00 : f32
      %301 = vector.broadcast %cst_30 : f32 to vector<1x512xf32>
      %302 = arith.select %222, %300, %301 : vector<1x512xi1>, vector<1x512xf32>
      %303 = arith.addf %213, %302 : vector<1x512xf32>
      %c0_i32_31 = arith.constant 0 : i32
      %304 = vector.broadcast %c0_i32_31 : i32 to vector<1x512xi32>
      %305 = arith.addi %32, %304 : vector<1x512xi32>
      %c0_i32_32 = arith.constant 0 : i32
      %306 = vector.broadcast %c0_i32_32 : i32 to vector<1x512xi32>
      %307 = arith.cmpi sge, %305, %306 : vector<1x512xi32>
      %c0_i32_33 = arith.constant 0 : i32
      %308 = vector.broadcast %c0_i32_33 : i32 to vector<1x512xi32>
      %309 = arith.addi %32, %308 : vector<1x512xi32>
      %c16_i32_34 = arith.constant 16 : i32
      %310 = vector.broadcast %c16_i32_34 : i32 to vector<1x512xi32>
      %311 = arith.cmpi slt, %309, %310 : vector<1x512xi32>
      %312 = arith.andi %307, %311 : vector<1x512xi1>
      %cst_35 = arith.constant 0.000000e+00 : f32
      %313 = vector.broadcast %cst_35 : f32 to vector<1x512xf32>
      %c432_i32 = arith.constant 432 : i32
      %314 = tpu.dynamic_rotate %15 by %c432_i32 dim 1 : vector<2x512xf32>, i32 -> vector<2x512xf32>
      %c3 = arith.constant 3 : index
      %315 = memref.load %arg2[%c3] : memref<98xf32, #tpu.memory_space<smem>>
      %316 = vector.extract_strided_slice %314 {offsets = [0, 0], sizes = [1, 512], strides = [1, 1]} : vector<2x512xf32> to vector<1x512xf32>
      %317 = vector.broadcast %315 : f32 to vector<1x512xf32>
      %318 = arith.mulf %317, %316 : vector<1x512xf32>
      %319 = arith.addf %313, %318 : vector<1x512xf32>
      %c52 = arith.constant 52 : index
      %320 = memref.load %arg2[%c52] : memref<98xf32, #tpu.memory_space<smem>>
      %321 = vector.extract_strided_slice %314 {offsets = [1, 0], sizes = [1, 512], strides = [1, 1]} : vector<2x512xf32> to vector<1x512xf32>
      %322 = vector.broadcast %320 : f32 to vector<1x512xf32>
      %323 = arith.mulf %322, %321 : vector<1x512xf32>
      %324 = arith.addf %319, %323 : vector<1x512xf32>
      %c416_i32 = arith.constant 416 : i32
      %325 = tpu.dynamic_rotate %15 by %c416_i32 dim 1 : vector<2x512xf32>, i32 -> vector<2x512xf32>
      %c10 = arith.constant 10 : index
      %326 = memref.load %arg2[%c10] : memref<98xf32, #tpu.memory_space<smem>>
      %327 = vector.extract_strided_slice %325 {offsets = [0, 0], sizes = [1, 512], strides = [1, 1]} : vector<2x512xf32> to vector<1x512xf32>
      %328 = vector.broadcast %326 : f32 to vector<1x512xf32>
      %329 = arith.mulf %328, %327 : vector<1x512xf32>
      %330 = arith.addf %324, %329 : vector<1x512xf32>
      %c59 = arith.constant 59 : index
      %331 = memref.load %arg2[%c59] : memref<98xf32, #tpu.memory_space<smem>>
      %332 = vector.extract_strided_slice %325 {offsets = [1, 0], sizes = [1, 512], strides = [1, 1]} : vector<2x512xf32> to vector<1x512xf32>
      %333 = vector.broadcast %331 : f32 to vector<1x512xf32>
      %334 = arith.mulf %333, %332 : vector<1x512xf32>
      %335 = arith.addf %330, %334 : vector<1x512xf32>
      %c400_i32 = arith.constant 400 : i32
      %336 = tpu.dynamic_rotate %15 by %c400_i32 dim 1 : vector<2x512xf32>, i32 -> vector<2x512xf32>
      %c17 = arith.constant 17 : index
      %337 = memref.load %arg2[%c17] : memref<98xf32, #tpu.memory_space<smem>>
      %338 = vector.extract_strided_slice %336 {offsets = [0, 0], sizes = [1, 512], strides = [1, 1]} : vector<2x512xf32> to vector<1x512xf32>
      %339 = vector.broadcast %337 : f32 to vector<1x512xf32>
      %340 = arith.mulf %339, %338 : vector<1x512xf32>
      %341 = arith.addf %335, %340 : vector<1x512xf32>
      %c66 = arith.constant 66 : index
      %342 = memref.load %arg2[%c66] : memref<98xf32, #tpu.memory_space<smem>>
      %343 = vector.extract_strided_slice %336 {offsets = [1, 0], sizes = [1, 512], strides = [1, 1]} : vector<2x512xf32> to vector<1x512xf32>
      %344 = vector.broadcast %342 : f32 to vector<1x512xf32>
      %345 = arith.mulf %344, %343 : vector<1x512xf32>
      %346 = arith.addf %341, %345 : vector<1x512xf32>
      %c384_i32 = arith.constant 384 : i32
      %347 = tpu.dynamic_rotate %15 by %c384_i32 dim 1 : vector<2x512xf32>, i32 -> vector<2x512xf32>
      %c24 = arith.constant 24 : index
      %348 = memref.load %arg2[%c24] : memref<98xf32, #tpu.memory_space<smem>>
      %349 = vector.extract_strided_slice %347 {offsets = [0, 0], sizes = [1, 512], strides = [1, 1]} : vector<2x512xf32> to vector<1x512xf32>
      %350 = vector.broadcast %348 : f32 to vector<1x512xf32>
      %351 = arith.mulf %350, %349 : vector<1x512xf32>
      %352 = arith.addf %346, %351 : vector<1x512xf32>
      %c73 = arith.constant 73 : index
      %353 = memref.load %arg2[%c73] : memref<98xf32, #tpu.memory_space<smem>>
      %354 = vector.extract_strided_slice %347 {offsets = [1, 0], sizes = [1, 512], strides = [1, 1]} : vector<2x512xf32> to vector<1x512xf32>
      %355 = vector.broadcast %353 : f32 to vector<1x512xf32>
      %356 = arith.mulf %355, %354 : vector<1x512xf32>
      %357 = arith.addf %352, %356 : vector<1x512xf32>
      %c368_i32 = arith.constant 368 : i32
      %358 = tpu.dynamic_rotate %15 by %c368_i32 dim 1 : vector<2x512xf32>, i32 -> vector<2x512xf32>
      %c31 = arith.constant 31 : index
      %359 = memref.load %arg2[%c31] : memref<98xf32, #tpu.memory_space<smem>>
      %360 = vector.extract_strided_slice %358 {offsets = [0, 0], sizes = [1, 512], strides = [1, 1]} : vector<2x512xf32> to vector<1x512xf32>
      %361 = vector.broadcast %359 : f32 to vector<1x512xf32>
      %362 = arith.mulf %361, %360 : vector<1x512xf32>
      %363 = arith.addf %357, %362 : vector<1x512xf32>
      %c80 = arith.constant 80 : index
      %364 = memref.load %arg2[%c80] : memref<98xf32, #tpu.memory_space<smem>>
      %365 = vector.extract_strided_slice %358 {offsets = [1, 0], sizes = [1, 512], strides = [1, 1]} : vector<2x512xf32> to vector<1x512xf32>
      %366 = vector.broadcast %364 : f32 to vector<1x512xf32>
      %367 = arith.mulf %366, %365 : vector<1x512xf32>
      %368 = arith.addf %363, %367 : vector<1x512xf32>
      %c352_i32 = arith.constant 352 : i32
      %369 = tpu.dynamic_rotate %15 by %c352_i32 dim 1 : vector<2x512xf32>, i32 -> vector<2x512xf32>
      %c38 = arith.constant 38 : index
      %370 = memref.load %arg2[%c38] : memref<98xf32, #tpu.memory_space<smem>>
      %371 = vector.extract_strided_slice %369 {offsets = [0, 0], sizes = [1, 512], strides = [1, 1]} : vector<2x512xf32> to vector<1x512xf32>
      %372 = vector.broadcast %370 : f32 to vector<1x512xf32>
      %373 = arith.mulf %372, %371 : vector<1x512xf32>
      %374 = arith.addf %368, %373 : vector<1x512xf32>
      %c87 = arith.constant 87 : index
      %375 = memref.load %arg2[%c87] : memref<98xf32, #tpu.memory_space<smem>>
      %376 = vector.extract_strided_slice %369 {offsets = [1, 0], sizes = [1, 512], strides = [1, 1]} : vector<2x512xf32> to vector<1x512xf32>
      %377 = vector.broadcast %375 : f32 to vector<1x512xf32>
      %378 = arith.mulf %377, %376 : vector<1x512xf32>
      %379 = arith.addf %374, %378 : vector<1x512xf32>
      %c336_i32 = arith.constant 336 : i32
      %380 = tpu.dynamic_rotate %15 by %c336_i32 dim 1 : vector<2x512xf32>, i32 -> vector<2x512xf32>
      %c45 = arith.constant 45 : index
      %381 = memref.load %arg2[%c45] : memref<98xf32, #tpu.memory_space<smem>>
      %382 = vector.extract_strided_slice %380 {offsets = [0, 0], sizes = [1, 512], strides = [1, 1]} : vector<2x512xf32> to vector<1x512xf32>
      %383 = vector.broadcast %381 : f32 to vector<1x512xf32>
      %384 = arith.mulf %383, %382 : vector<1x512xf32>
      %385 = arith.addf %379, %384 : vector<1x512xf32>
      %c94 = arith.constant 94 : index
      %386 = memref.load %arg2[%c94] : memref<98xf32, #tpu.memory_space<smem>>
      %387 = vector.extract_strided_slice %380 {offsets = [1, 0], sizes = [1, 512], strides = [1, 1]} : vector<2x512xf32> to vector<1x512xf32>
      %388 = vector.broadcast %386 : f32 to vector<1x512xf32>
      %389 = arith.mulf %388, %387 : vector<1x512xf32>
      %390 = arith.addf %385, %389 : vector<1x512xf32>
      %cst_36 = arith.constant 0.000000e+00 : f32
      %391 = vector.broadcast %cst_36 : f32 to vector<1x512xf32>
      %392 = arith.select %312, %390, %391 : vector<1x512xi1>, vector<1x512xf32>
      %393 = arith.addf %303, %392 : vector<1x512xf32>
      %c1_i32_37 = arith.constant 1 : i32
      %394 = vector.broadcast %c1_i32_37 : i32 to vector<1x512xi32>
      %395 = arith.addi %32, %394 : vector<1x512xi32>
      %c0_i32_38 = arith.constant 0 : i32
      %396 = vector.broadcast %c0_i32_38 : i32 to vector<1x512xi32>
      %397 = arith.cmpi sge, %395, %396 : vector<1x512xi32>
      %c1_i32_39 = arith.constant 1 : i32
      %398 = vector.broadcast %c1_i32_39 : i32 to vector<1x512xi32>
      %399 = arith.addi %32, %398 : vector<1x512xi32>
      %c16_i32_40 = arith.constant 16 : i32
      %400 = vector.broadcast %c16_i32_40 : i32 to vector<1x512xi32>
      %401 = arith.cmpi slt, %399, %400 : vector<1x512xi32>
      %402 = arith.andi %397, %401 : vector<1x512xi1>
      %cst_41 = arith.constant 0.000000e+00 : f32
      %403 = vector.broadcast %cst_41 : f32 to vector<1x512xf32>
      %c431_i32 = arith.constant 431 : i32
      %404 = tpu.dynamic_rotate %15 by %c431_i32 dim 1 : vector<2x512xf32>, i32 -> vector<2x512xf32>
      %c4 = arith.constant 4 : index
      %405 = memref.load %arg2[%c4] : memref<98xf32, #tpu.memory_space<smem>>
      %406 = vector.extract_strided_slice %404 {offsets = [0, 0], sizes = [1, 512], strides = [1, 1]} : vector<2x512xf32> to vector<1x512xf32>
      %407 = vector.broadcast %405 : f32 to vector<1x512xf32>
      %408 = arith.mulf %407, %406 : vector<1x512xf32>
      %409 = arith.addf %403, %408 : vector<1x512xf32>
      %c53 = arith.constant 53 : index
      %410 = memref.load %arg2[%c53] : memref<98xf32, #tpu.memory_space<smem>>
      %411 = vector.extract_strided_slice %404 {offsets = [1, 0], sizes = [1, 512], strides = [1, 1]} : vector<2x512xf32> to vector<1x512xf32>
      %412 = vector.broadcast %410 : f32 to vector<1x512xf32>
      %413 = arith.mulf %412, %411 : vector<1x512xf32>
      %414 = arith.addf %409, %413 : vector<1x512xf32>
      %c415_i32 = arith.constant 415 : i32
      %415 = tpu.dynamic_rotate %15 by %c415_i32 dim 1 : vector<2x512xf32>, i32 -> vector<2x512xf32>
      %c11 = arith.constant 11 : index
      %416 = memref.load %arg2[%c11] : memref<98xf32, #tpu.memory_space<smem>>
      %417 = vector.extract_strided_slice %415 {offsets = [0, 0], sizes = [1, 512], strides = [1, 1]} : vector<2x512xf32> to vector<1x512xf32>
      %418 = vector.broadcast %416 : f32 to vector<1x512xf32>
      %419 = arith.mulf %418, %417 : vector<1x512xf32>
      %420 = arith.addf %414, %419 : vector<1x512xf32>
      %c60 = arith.constant 60 : index
      %421 = memref.load %arg2[%c60] : memref<98xf32, #tpu.memory_space<smem>>
      %422 = vector.extract_strided_slice %415 {offsets = [1, 0], sizes = [1, 512], strides = [1, 1]} : vector<2x512xf32> to vector<1x512xf32>
      %423 = vector.broadcast %421 : f32 to vector<1x512xf32>
      %424 = arith.mulf %423, %422 : vector<1x512xf32>
      %425 = arith.addf %420, %424 : vector<1x512xf32>
      %c399_i32 = arith.constant 399 : i32
      %426 = tpu.dynamic_rotate %15 by %c399_i32 dim 1 : vector<2x512xf32>, i32 -> vector<2x512xf32>
      %c18 = arith.constant 18 : index
      %427 = memref.load %arg2[%c18] : memref<98xf32, #tpu.memory_space<smem>>
      %428 = vector.extract_strided_slice %426 {offsets = [0, 0], sizes = [1, 512], strides = [1, 1]} : vector<2x512xf32> to vector<1x512xf32>
      %429 = vector.broadcast %427 : f32 to vector<1x512xf32>
      %430 = arith.mulf %429, %428 : vector<1x512xf32>
      %431 = arith.addf %425, %430 : vector<1x512xf32>
      %c67 = arith.constant 67 : index
      %432 = memref.load %arg2[%c67] : memref<98xf32, #tpu.memory_space<smem>>
      %433 = vector.extract_strided_slice %426 {offsets = [1, 0], sizes = [1, 512], strides = [1, 1]} : vector<2x512xf32> to vector<1x512xf32>
      %434 = vector.broadcast %432 : f32 to vector<1x512xf32>
      %435 = arith.mulf %434, %433 : vector<1x512xf32>
      %436 = arith.addf %431, %435 : vector<1x512xf32>
      %c383_i32 = arith.constant 383 : i32
      %437 = tpu.dynamic_rotate %15 by %c383_i32 dim 1 : vector<2x512xf32>, i32 -> vector<2x512xf32>
      %c25 = arith.constant 25 : index
      %438 = memref.load %arg2[%c25] : memref<98xf32, #tpu.memory_space<smem>>
      %439 = vector.extract_strided_slice %437 {offsets = [0, 0], sizes = [1, 512], strides = [1, 1]} : vector<2x512xf32> to vector<1x512xf32>
      %440 = vector.broadcast %438 : f32 to vector<1x512xf32>
      %441 = arith.mulf %440, %439 : vector<1x512xf32>
      %442 = arith.addf %436, %441 : vector<1x512xf32>
      %c74 = arith.constant 74 : index
      %443 = memref.load %arg2[%c74] : memref<98xf32, #tpu.memory_space<smem>>
      %444 = vector.extract_strided_slice %437 {offsets = [1, 0], sizes = [1, 512], strides = [1, 1]} : vector<2x512xf32> to vector<1x512xf32>
      %445 = vector.broadcast %443 : f32 to vector<1x512xf32>
      %446 = arith.mulf %445, %444 : vector<1x512xf32>
      %447 = arith.addf %442, %446 : vector<1x512xf32>
      %c367_i32 = arith.constant 367 : i32
      %448 = tpu.dynamic_rotate %15 by %c367_i32 dim 1 : vector<2x512xf32>, i32 -> vector<2x512xf32>
      %c32 = arith.constant 32 : index
      %449 = memref.load %arg2[%c32] : memref<98xf32, #tpu.memory_space<smem>>
      %450 = vector.extract_strided_slice %448 {offsets = [0, 0], sizes = [1, 512], strides = [1, 1]} : vector<2x512xf32> to vector<1x512xf32>
      %451 = vector.broadcast %449 : f32 to vector<1x512xf32>
      %452 = arith.mulf %451, %450 : vector<1x512xf32>
      %453 = arith.addf %447, %452 : vector<1x512xf32>
      %c81 = arith.constant 81 : index
      %454 = memref.load %arg2[%c81] : memref<98xf32, #tpu.memory_space<smem>>
      %455 = vector.extract_strided_slice %448 {offsets = [1, 0], sizes = [1, 512], strides = [1, 1]} : vector<2x512xf32> to vector<1x512xf32>
      %456 = vector.broadcast %454 : f32 to vector<1x512xf32>
      %457 = arith.mulf %456, %455 : vector<1x512xf32>
      %458 = arith.addf %453, %457 : vector<1x512xf32>
      %c351_i32 = arith.constant 351 : i32
      %459 = tpu.dynamic_rotate %15 by %c351_i32 dim 1 : vector<2x512xf32>, i32 -> vector<2x512xf32>
      %c39 = arith.constant 39 : index
      %460 = memref.load %arg2[%c39] : memref<98xf32, #tpu.memory_space<smem>>
      %461 = vector.extract_strided_slice %459 {offsets = [0, 0], sizes = [1, 512], strides = [1, 1]} : vector<2x512xf32> to vector<1x512xf32>
      %462 = vector.broadcast %460 : f32 to vector<1x512xf32>
      %463 = arith.mulf %462, %461 : vector<1x512xf32>
      %464 = arith.addf %458, %463 : vector<1x512xf32>
      %c88 = arith.constant 88 : index
      %465 = memref.load %arg2[%c88] : memref<98xf32, #tpu.memory_space<smem>>
      %466 = vector.extract_strided_slice %459 {offsets = [1, 0], sizes = [1, 512], strides = [1, 1]} : vector<2x512xf32> to vector<1x512xf32>
      %467 = vector.broadcast %465 : f32 to vector<1x512xf32>
      %468 = arith.mulf %467, %466 : vector<1x512xf32>
      %469 = arith.addf %464, %468 : vector<1x512xf32>
      %c335_i32 = arith.constant 335 : i32
      %470 = tpu.dynamic_rotate %15 by %c335_i32 dim 1 : vector<2x512xf32>, i32 -> vector<2x512xf32>
      %c46 = arith.constant 46 : index
      %471 = memref.load %arg2[%c46] : memref<98xf32, #tpu.memory_space<smem>>
      %472 = vector.extract_strided_slice %470 {offsets = [0, 0], sizes = [1, 512], strides = [1, 1]} : vector<2x512xf32> to vector<1x512xf32>
      %473 = vector.broadcast %471 : f32 to vector<1x512xf32>
      %474 = arith.mulf %473, %472 : vector<1x512xf32>
      %475 = arith.addf %469, %474 : vector<1x512xf32>
      %c95 = arith.constant 95 : index
      %476 = memref.load %arg2[%c95] : memref<98xf32, #tpu.memory_space<smem>>
      %477 = vector.extract_strided_slice %470 {offsets = [1, 0], sizes = [1, 512], strides = [1, 1]} : vector<2x512xf32> to vector<1x512xf32>
      %478 = vector.broadcast %476 : f32 to vector<1x512xf32>
      %479 = arith.mulf %478, %477 : vector<1x512xf32>
      %480 = arith.addf %475, %479 : vector<1x512xf32>
      %cst_42 = arith.constant 0.000000e+00 : f32
      %481 = vector.broadcast %cst_42 : f32 to vector<1x512xf32>
      %482 = arith.select %402, %480, %481 : vector<1x512xi1>, vector<1x512xf32>
      %483 = arith.addf %393, %482 : vector<1x512xf32>
      %c2_i32 = arith.constant 2 : i32
      %484 = vector.broadcast %c2_i32 : i32 to vector<1x512xi32>
      %485 = arith.addi %32, %484 : vector<1x512xi32>
      %c0_i32_43 = arith.constant 0 : i32
      %486 = vector.broadcast %c0_i32_43 : i32 to vector<1x512xi32>
      %487 = arith.cmpi sge, %485, %486 : vector<1x512xi32>
      %c2_i32_44 = arith.constant 2 : i32
      %488 = vector.broadcast %c2_i32_44 : i32 to vector<1x512xi32>
      %489 = arith.addi %32, %488 : vector<1x512xi32>
      %c16_i32_45 = arith.constant 16 : i32
      %490 = vector.broadcast %c16_i32_45 : i32 to vector<1x512xi32>
      %491 = arith.cmpi slt, %489, %490 : vector<1x512xi32>
      %492 = arith.andi %487, %491 : vector<1x512xi1>
      %cst_46 = arith.constant 0.000000e+00 : f32
      %493 = vector.broadcast %cst_46 : f32 to vector<1x512xf32>
      %c430_i32 = arith.constant 430 : i32
      %494 = tpu.dynamic_rotate %15 by %c430_i32 dim 1 : vector<2x512xf32>, i32 -> vector<2x512xf32>
      %c5 = arith.constant 5 : index
      %495 = memref.load %arg2[%c5] : memref<98xf32, #tpu.memory_space<smem>>
      %496 = vector.extract_strided_slice %494 {offsets = [0, 0], sizes = [1, 512], strides = [1, 1]} : vector<2x512xf32> to vector<1x512xf32>
      %497 = vector.broadcast %495 : f32 to vector<1x512xf32>
      %498 = arith.mulf %497, %496 : vector<1x512xf32>
      %499 = arith.addf %493, %498 : vector<1x512xf32>
      %c54 = arith.constant 54 : index
      %500 = memref.load %arg2[%c54] : memref<98xf32, #tpu.memory_space<smem>>
      %501 = vector.extract_strided_slice %494 {offsets = [1, 0], sizes = [1, 512], strides = [1, 1]} : vector<2x512xf32> to vector<1x512xf32>
      %502 = vector.broadcast %500 : f32 to vector<1x512xf32>
      %503 = arith.mulf %502, %501 : vector<1x512xf32>
      %504 = arith.addf %499, %503 : vector<1x512xf32>
      %c414_i32 = arith.constant 414 : i32
      %505 = tpu.dynamic_rotate %15 by %c414_i32 dim 1 : vector<2x512xf32>, i32 -> vector<2x512xf32>
      %c12 = arith.constant 12 : index
      %506 = memref.load %arg2[%c12] : memref<98xf32, #tpu.memory_space<smem>>
      %507 = vector.extract_strided_slice %505 {offsets = [0, 0], sizes = [1, 512], strides = [1, 1]} : vector<2x512xf32> to vector<1x512xf32>
      %508 = vector.broadcast %506 : f32 to vector<1x512xf32>
      %509 = arith.mulf %508, %507 : vector<1x512xf32>
      %510 = arith.addf %504, %509 : vector<1x512xf32>
      %c61 = arith.constant 61 : index
      %511 = memref.load %arg2[%c61] : memref<98xf32, #tpu.memory_space<smem>>
      %512 = vector.extract_strided_slice %505 {offsets = [1, 0], sizes = [1, 512], strides = [1, 1]} : vector<2x512xf32> to vector<1x512xf32>
      %513 = vector.broadcast %511 : f32 to vector<1x512xf32>
      %514 = arith.mulf %513, %512 : vector<1x512xf32>
      %515 = arith.addf %510, %514 : vector<1x512xf32>
      %c398_i32 = arith.constant 398 : i32
      %516 = tpu.dynamic_rotate %15 by %c398_i32 dim 1 : vector<2x512xf32>, i32 -> vector<2x512xf32>
      %c19 = arith.constant 19 : index
      %517 = memref.load %arg2[%c19] : memref<98xf32, #tpu.memory_space<smem>>
      %518 = vector.extract_strided_slice %516 {offsets = [0, 0], sizes = [1, 512], strides = [1, 1]} : vector<2x512xf32> to vector<1x512xf32>
      %519 = vector.broadcast %517 : f32 to vector<1x512xf32>
      %520 = arith.mulf %519, %518 : vector<1x512xf32>
      %521 = arith.addf %515, %520 : vector<1x512xf32>
      %c68 = arith.constant 68 : index
      %522 = memref.load %arg2[%c68] : memref<98xf32, #tpu.memory_space<smem>>
      %523 = vector.extract_strided_slice %516 {offsets = [1, 0], sizes = [1, 512], strides = [1, 1]} : vector<2x512xf32> to vector<1x512xf32>
      %524 = vector.broadcast %522 : f32 to vector<1x512xf32>
      %525 = arith.mulf %524, %523 : vector<1x512xf32>
      %526 = arith.addf %521, %525 : vector<1x512xf32>
      %c382_i32 = arith.constant 382 : i32
      %527 = tpu.dynamic_rotate %15 by %c382_i32 dim 1 : vector<2x512xf32>, i32 -> vector<2x512xf32>
      %c26 = arith.constant 26 : index
      %528 = memref.load %arg2[%c26] : memref<98xf32, #tpu.memory_space<smem>>
      %529 = vector.extract_strided_slice %527 {offsets = [0, 0], sizes = [1, 512], strides = [1, 1]} : vector<2x512xf32> to vector<1x512xf32>
      %530 = vector.broadcast %528 : f32 to vector<1x512xf32>
      %531 = arith.mulf %530, %529 : vector<1x512xf32>
      %532 = arith.addf %526, %531 : vector<1x512xf32>
      %c75 = arith.constant 75 : index
      %533 = memref.load %arg2[%c75] : memref<98xf32, #tpu.memory_space<smem>>
      %534 = vector.extract_strided_slice %527 {offsets = [1, 0], sizes = [1, 512], strides = [1, 1]} : vector<2x512xf32> to vector<1x512xf32>
      %535 = vector.broadcast %533 : f32 to vector<1x512xf32>
      %536 = arith.mulf %535, %534 : vector<1x512xf32>
      %537 = arith.addf %532, %536 : vector<1x512xf32>
      %c366_i32 = arith.constant 366 : i32
      %538 = tpu.dynamic_rotate %15 by %c366_i32 dim 1 : vector<2x512xf32>, i32 -> vector<2x512xf32>
      %c33 = arith.constant 33 : index
      %539 = memref.load %arg2[%c33] : memref<98xf32, #tpu.memory_space<smem>>
      %540 = vector.extract_strided_slice %538 {offsets = [0, 0], sizes = [1, 512], strides = [1, 1]} : vector<2x512xf32> to vector<1x512xf32>
      %541 = vector.broadcast %539 : f32 to vector<1x512xf32>
      %542 = arith.mulf %541, %540 : vector<1x512xf32>
      %543 = arith.addf %537, %542 : vector<1x512xf32>
      %c82 = arith.constant 82 : index
      %544 = memref.load %arg2[%c82] : memref<98xf32, #tpu.memory_space<smem>>
      %545 = vector.extract_strided_slice %538 {offsets = [1, 0], sizes = [1, 512], strides = [1, 1]} : vector<2x512xf32> to vector<1x512xf32>
      %546 = vector.broadcast %544 : f32 to vector<1x512xf32>
      %547 = arith.mulf %546, %545 : vector<1x512xf32>
      %548 = arith.addf %543, %547 : vector<1x512xf32>
      %c350_i32 = arith.constant 350 : i32
      %549 = tpu.dynamic_rotate %15 by %c350_i32 dim 1 : vector<2x512xf32>, i32 -> vector<2x512xf32>
      %c40 = arith.constant 40 : index
      %550 = memref.load %arg2[%c40] : memref<98xf32, #tpu.memory_space<smem>>
      %551 = vector.extract_strided_slice %549 {offsets = [0, 0], sizes = [1, 512], strides = [1, 1]} : vector<2x512xf32> to vector<1x512xf32>
      %552 = vector.broadcast %550 : f32 to vector<1x512xf32>
      %553 = arith.mulf %552, %551 : vector<1x512xf32>
      %554 = arith.addf %548, %553 : vector<1x512xf32>
      %c89 = arith.constant 89 : index
      %555 = memref.load %arg2[%c89] : memref<98xf32, #tpu.memory_space<smem>>
      %556 = vector.extract_strided_slice %549 {offsets = [1, 0], sizes = [1, 512], strides = [1, 1]} : vector<2x512xf32> to vector<1x512xf32>
      %557 = vector.broadcast %555 : f32 to vector<1x512xf32>
      %558 = arith.mulf %557, %556 : vector<1x512xf32>
      %559 = arith.addf %554, %558 : vector<1x512xf32>
      %c334_i32 = arith.constant 334 : i32
      %560 = tpu.dynamic_rotate %15 by %c334_i32 dim 1 : vector<2x512xf32>, i32 -> vector<2x512xf32>
      %c47 = arith.constant 47 : index
      %561 = memref.load %arg2[%c47] : memref<98xf32, #tpu.memory_space<smem>>
      %562 = vector.extract_strided_slice %560 {offsets = [0, 0], sizes = [1, 512], strides = [1, 1]} : vector<2x512xf32> to vector<1x512xf32>
      %563 = vector.broadcast %561 : f32 to vector<1x512xf32>
      %564 = arith.mulf %563, %562 : vector<1x512xf32>
      %565 = arith.addf %559, %564 : vector<1x512xf32>
      %c96 = arith.constant 96 : index
      %566 = memref.load %arg2[%c96] : memref<98xf32, #tpu.memory_space<smem>>
      %567 = vector.extract_strided_slice %560 {offsets = [1, 0], sizes = [1, 512], strides = [1, 1]} : vector<2x512xf32> to vector<1x512xf32>
      %568 = vector.broadcast %566 : f32 to vector<1x512xf32>
      %569 = arith.mulf %568, %567 : vector<1x512xf32>
      %570 = arith.addf %565, %569 : vector<1x512xf32>
      %cst_47 = arith.constant 0.000000e+00 : f32
      %571 = vector.broadcast %cst_47 : f32 to vector<1x512xf32>
      %572 = arith.select %492, %570, %571 : vector<1x512xi1>, vector<1x512xf32>
      %573 = arith.addf %483, %572 : vector<1x512xf32>
      %c3_i32 = arith.constant 3 : i32
      %574 = vector.broadcast %c3_i32 : i32 to vector<1x512xi32>
      %575 = arith.addi %32, %574 : vector<1x512xi32>
      %c0_i32_48 = arith.constant 0 : i32
      %576 = vector.broadcast %c0_i32_48 : i32 to vector<1x512xi32>
      %577 = arith.cmpi sge, %575, %576 : vector<1x512xi32>
      %c3_i32_49 = arith.constant 3 : i32
      %578 = vector.broadcast %c3_i32_49 : i32 to vector<1x512xi32>
      %579 = arith.addi %32, %578 : vector<1x512xi32>
      %c16_i32_50 = arith.constant 16 : i32
      %580 = vector.broadcast %c16_i32_50 : i32 to vector<1x512xi32>
      %581 = arith.cmpi slt, %579, %580 : vector<1x512xi32>
      %582 = arith.andi %577, %581 : vector<1x512xi1>
      %cst_51 = arith.constant 0.000000e+00 : f32
      %583 = vector.broadcast %cst_51 : f32 to vector<1x512xf32>
      %c429_i32 = arith.constant 429 : i32
      %584 = tpu.dynamic_rotate %15 by %c429_i32 dim 1 : vector<2x512xf32>, i32 -> vector<2x512xf32>
      %c6 = arith.constant 6 : index
      %585 = memref.load %arg2[%c6] : memref<98xf32, #tpu.memory_space<smem>>
      %586 = vector.extract_strided_slice %584 {offsets = [0, 0], sizes = [1, 512], strides = [1, 1]} : vector<2x512xf32> to vector<1x512xf32>
      %587 = vector.broadcast %585 : f32 to vector<1x512xf32>
      %588 = arith.mulf %587, %586 : vector<1x512xf32>
      %589 = arith.addf %583, %588 : vector<1x512xf32>
      %c55 = arith.constant 55 : index
      %590 = memref.load %arg2[%c55] : memref<98xf32, #tpu.memory_space<smem>>
      %591 = vector.extract_strided_slice %584 {offsets = [1, 0], sizes = [1, 512], strides = [1, 1]} : vector<2x512xf32> to vector<1x512xf32>
      %592 = vector.broadcast %590 : f32 to vector<1x512xf32>
      %593 = arith.mulf %592, %591 : vector<1x512xf32>
      %594 = arith.addf %589, %593 : vector<1x512xf32>
      %c413_i32 = arith.constant 413 : i32
      %595 = tpu.dynamic_rotate %15 by %c413_i32 dim 1 : vector<2x512xf32>, i32 -> vector<2x512xf32>
      %c13 = arith.constant 13 : index
      %596 = memref.load %arg2[%c13] : memref<98xf32, #tpu.memory_space<smem>>
      %597 = vector.extract_strided_slice %595 {offsets = [0, 0], sizes = [1, 512], strides = [1, 1]} : vector<2x512xf32> to vector<1x512xf32>
      %598 = vector.broadcast %596 : f32 to vector<1x512xf32>
      %599 = arith.mulf %598, %597 : vector<1x512xf32>
      %600 = arith.addf %594, %599 : vector<1x512xf32>
      %c62 = arith.constant 62 : index
      %601 = memref.load %arg2[%c62] : memref<98xf32, #tpu.memory_space<smem>>
      %602 = vector.extract_strided_slice %595 {offsets = [1, 0], sizes = [1, 512], strides = [1, 1]} : vector<2x512xf32> to vector<1x512xf32>
      %603 = vector.broadcast %601 : f32 to vector<1x512xf32>
      %604 = arith.mulf %603, %602 : vector<1x512xf32>
      %605 = arith.addf %600, %604 : vector<1x512xf32>
      %c397_i32 = arith.constant 397 : i32
      %606 = tpu.dynamic_rotate %15 by %c397_i32 dim 1 : vector<2x512xf32>, i32 -> vector<2x512xf32>
      %c20 = arith.constant 20 : index
      %607 = memref.load %arg2[%c20] : memref<98xf32, #tpu.memory_space<smem>>
      %608 = vector.extract_strided_slice %606 {offsets = [0, 0], sizes = [1, 512], strides = [1, 1]} : vector<2x512xf32> to vector<1x512xf32>
      %609 = vector.broadcast %607 : f32 to vector<1x512xf32>
      %610 = arith.mulf %609, %608 : vector<1x512xf32>
      %611 = arith.addf %605, %610 : vector<1x512xf32>
      %c69 = arith.constant 69 : index
      %612 = memref.load %arg2[%c69] : memref<98xf32, #tpu.memory_space<smem>>
      %613 = vector.extract_strided_slice %606 {offsets = [1, 0], sizes = [1, 512], strides = [1, 1]} : vector<2x512xf32> to vector<1x512xf32>
      %614 = vector.broadcast %612 : f32 to vector<1x512xf32>
      %615 = arith.mulf %614, %613 : vector<1x512xf32>
      %616 = arith.addf %611, %615 : vector<1x512xf32>
      %c381_i32 = arith.constant 381 : i32
      %617 = tpu.dynamic_rotate %15 by %c381_i32 dim 1 : vector<2x512xf32>, i32 -> vector<2x512xf32>
      %c27 = arith.constant 27 : index
      %618 = memref.load %arg2[%c27] : memref<98xf32, #tpu.memory_space<smem>>
      %619 = vector.extract_strided_slice %617 {offsets = [0, 0], sizes = [1, 512], strides = [1, 1]} : vector<2x512xf32> to vector<1x512xf32>
      %620 = vector.broadcast %618 : f32 to vector<1x512xf32>
      %621 = arith.mulf %620, %619 : vector<1x512xf32>
      %622 = arith.addf %616, %621 : vector<1x512xf32>
      %c76 = arith.constant 76 : index
      %623 = memref.load %arg2[%c76] : memref<98xf32, #tpu.memory_space<smem>>
      %624 = vector.extract_strided_slice %617 {offsets = [1, 0], sizes = [1, 512], strides = [1, 1]} : vector<2x512xf32> to vector<1x512xf32>
      %625 = vector.broadcast %623 : f32 to vector<1x512xf32>
      %626 = arith.mulf %625, %624 : vector<1x512xf32>
      %627 = arith.addf %622, %626 : vector<1x512xf32>
      %c365_i32 = arith.constant 365 : i32
      %628 = tpu.dynamic_rotate %15 by %c365_i32 dim 1 : vector<2x512xf32>, i32 -> vector<2x512xf32>
      %c34 = arith.constant 34 : index
      %629 = memref.load %arg2[%c34] : memref<98xf32, #tpu.memory_space<smem>>
      %630 = vector.extract_strided_slice %628 {offsets = [0, 0], sizes = [1, 512], strides = [1, 1]} : vector<2x512xf32> to vector<1x512xf32>
      %631 = vector.broadcast %629 : f32 to vector<1x512xf32>
      %632 = arith.mulf %631, %630 : vector<1x512xf32>
      %633 = arith.addf %627, %632 : vector<1x512xf32>
      %c83 = arith.constant 83 : index
      %634 = memref.load %arg2[%c83] : memref<98xf32, #tpu.memory_space<smem>>
      %635 = vector.extract_strided_slice %628 {offsets = [1, 0], sizes = [1, 512], strides = [1, 1]} : vector<2x512xf32> to vector<1x512xf32>
      %636 = vector.broadcast %634 : f32 to vector<1x512xf32>
      %637 = arith.mulf %636, %635 : vector<1x512xf32>
      %638 = arith.addf %633, %637 : vector<1x512xf32>
      %c349_i32 = arith.constant 349 : i32
      %639 = tpu.dynamic_rotate %15 by %c349_i32 dim 1 : vector<2x512xf32>, i32 -> vector<2x512xf32>
      %c41 = arith.constant 41 : index
      %640 = memref.load %arg2[%c41] : memref<98xf32, #tpu.memory_space<smem>>
      %641 = vector.extract_strided_slice %639 {offsets = [0, 0], sizes = [1, 512], strides = [1, 1]} : vector<2x512xf32> to vector<1x512xf32>
      %642 = vector.broadcast %640 : f32 to vector<1x512xf32>
      %643 = arith.mulf %642, %641 : vector<1x512xf32>
      %644 = arith.addf %638, %643 : vector<1x512xf32>
      %c90 = arith.constant 90 : index
      %645 = memref.load %arg2[%c90] : memref<98xf32, #tpu.memory_space<smem>>
      %646 = vector.extract_strided_slice %639 {offsets = [1, 0], sizes = [1, 512], strides = [1, 1]} : vector<2x512xf32> to vector<1x512xf32>
      %647 = vector.broadcast %645 : f32 to vector<1x512xf32>
      %648 = arith.mulf %647, %646 : vector<1x512xf32>
      %649 = arith.addf %644, %648 : vector<1x512xf32>
      %c333_i32 = arith.constant 333 : i32
      %650 = tpu.dynamic_rotate %15 by %c333_i32 dim 1 : vector<2x512xf32>, i32 -> vector<2x512xf32>
      %c48 = arith.constant 48 : index
      %651 = memref.load %arg2[%c48] : memref<98xf32, #tpu.memory_space<smem>>
      %652 = vector.extract_strided_slice %650 {offsets = [0, 0], sizes = [1, 512], strides = [1, 1]} : vector<2x512xf32> to vector<1x512xf32>
      %653 = vector.broadcast %651 : f32 to vector<1x512xf32>
      %654 = arith.mulf %653, %652 : vector<1x512xf32>
      %655 = arith.addf %649, %654 : vector<1x512xf32>
      %c97 = arith.constant 97 : index
      %656 = memref.load %arg2[%c97] : memref<98xf32, #tpu.memory_space<smem>>
      %657 = vector.extract_strided_slice %650 {offsets = [1, 0], sizes = [1, 512], strides = [1, 1]} : vector<2x512xf32> to vector<1x512xf32>
      %658 = vector.broadcast %656 : f32 to vector<1x512xf32>
      %659 = arith.mulf %658, %657 : vector<1x512xf32>
      %660 = arith.addf %655, %659 : vector<1x512xf32>
      %cst_52 = arith.constant 0.000000e+00 : f32
      %661 = vector.broadcast %cst_52 : f32 to vector<1x512xf32>
      %662 = arith.select %582, %660, %661 : vector<1x512xi1>, vector<1x512xf32>
      %663 = arith.addf %573, %662 : vector<1x512xf32>
      %664 = vector.extract_strided_slice %663 {offsets = [0, 0], sizes = [1, 256], strides = [1, 1]} : vector<1x512xf32> to vector<1x256xf32>
      %665 = arith.negf %664 : vector<1x256xf32>
      %666 = math.exp %665 : vector<1x256xf32>
      %cst_53 = arith.constant 1.000000e+00 : f32
      %667 = vector.broadcast %cst_53 : f32 to vector<1x256xf32>
      %668 = arith.addf %667, %666 : vector<1x256xf32>
      %669 = arith.divf %667, %668 : vector<1x256xf32>
      %c0_54 = arith.constant 0 : index
      %c0_55 = arith.constant 0 : index
      %c0_56 = arith.constant 0 : index
      %670 = vector.load %arg4[%c0_54, %c0_55, %c0_56] : memref<1x1x256xf32, #tpu.memory_space<vmem>>, vector<1x1x256xf32>
      %671 = vector.shape_cast %670 : vector<1x1x256xf32> to vector<1x256xf32>
      %672 = vector.shape_cast %669 : vector<1x256xf32> to vector<1x1x256xf32>
      tpu.vector_store %arg4[%c0_54, %c0_55, %c0_56], %672 {strides = array<i32>} : memref<1x1x256xf32, #tpu.memory_space<vmem>>, vector<1x1x256xf32>,
    } else {
    }
    return
  }
  func.func @transform_0(%arg0: i32, %arg1: i32) -> i32 {
    %c0_i32 = arith.constant 0 : i32
    %c0_i32_0 = arith.constant 0 : i32
    return %c0_i32 : i32
  }
  func.func @transform_1(%arg0: i32, %arg1: i32) -> (i32, i32, i32) {
    %c0_i32 = arith.constant 0 : i32
    %c0_i32_0 = arith.constant 0 : i32
    return %arg0, %arg1, %c0_i32 : i32, i32, i32
  }
  func.func @transform_2(%arg0: i32, %arg1: i32) -> (i32, i32, i32) {
    %c0_i32 = arith.constant 0 : i32
    %c0_i32_0 = arith.constant 0 : i32
    %c0_i32_1 = arith.constant 0 : i32
    return %arg0, %c0_i32, %c0_i32_0 : i32, i32, i32
  }
}

</mosaic_0001>

<llo_original>
// kernel: tpu_custom_call.1
$region0: #{tpu_custom_call.1}
  #allocation0 [shape = 'u32[]', space=smem, size = 0x4, offset = 0x4, fixed_abs, tag = 'smem constant byte address 0x4 - core index']
  #allocation1 [shape = 'u32[72,128]{1,0:T(1,128)}', space=vmem, size = 0x9000, scoped, tag = 'internal scratch']
  #allocation2 [shape = 'f32[2,512]{1,0:T(2,128)}', space=vmem, size = 0x1000, scoped, tag = 'scratch operand']
  %s0 = inlined_call_operand.hbm [shape: f32[98], index: 0, kind: input, shape index: {}]
  %s1 = inlined_call_operand.hbm [shape: f32[2,4,256], index: 1, kind: input, shape index: {}]
  %s2 = inlined_call_operand.hbm [shape: f32[2,1,256], index: 2, kind: output, shape index: {}]
  %s3 = sld [smem:[#allocation0]]
  $region61: #{tpu_custom_call.1} parent=0
    _
  %s5 = ssub.s32 1, %s3
  %s6 = scalar_select 0, %s5, %s3
  $region1: #{tpu_custom_call.1} parent=0
    #allocation3 [shape = 'u8[512]{0}', space=smem, size = 0x200, scoped, tag = 'input window, operand 0, single buffered']
    #allocation4 [shape = 's32[2]{0}', space=sflag, size = 0x8, scoped, tag = 'scoped memory for tpu_custom_call.1']
    #allocation5 [shape = 's32[2]{0}', space=sflag, size = 0x8, scoped, tag = 'scoped memory for tpu_custom_call.1']
    #allocation6 [shape = 's32[2]{0}', space=sflag, size = 0x8, scoped, tag = 'scoped memory for tpu_custom_call.1']
    #allocation7 [shape = 'u8[8192]{0}', space=vmem, size = 0x2000, scoped, tag = 'input window, operand 1']
    #allocation8 [shape = 'u8[2048]{0}', space=vmem, size = 0x800, scoped, tag = 'output window, operand 0']
    %7 = vsyncpa [#allocation6], 0
    %8 = vsyncpa [#allocation4], 0
    %s9 = scalar_lea.sflag [#allocation4], 1
    %10 = vsyncpa %s9, 0
    %11 = vsyncpa [#allocation5], 0
    %s12 = scalar_lea.sflag [#allocation5], 1
    %13 = vsyncpa %s12, 0
    loop: start=0, step=1, limit=4
    $region2: #{tpu_custom_call.1} parent=1 // loop_pre_header
      _
    $region3: #{tpu_custom_call.1} parent=1 // loop_header
      %s15 = sphi 0, %s19
      %p16 = scmp.ge.s32.totalorder %s15, 4
      %s22 = sphi 0, %s34
      %s23 = sphi 0, %s30
      %s24 = sphi 0, %s22
      %s25 = sphi 0, %s23
      %s26 = sphi 0, %s24
      %s27 = sphi 0, %s25
      %s35 = sphi 0, %s35
      %s37 = sphi 0, %s35
      %s38 = sphi 0, %s37
      %s52 = sphi 0, %s38
      %s60 = sphi 0, %s62
      %s63 = sphi 0, %s60
      %s64 = sphi 0, %s63
      %s80 = sphi 0, %s64
      %s86 = sphi 0, %s88
      %s89 = sphi 0, %s86
      %s90 = sphi 0, %s89
      %s106 = sphi 0, %s90
    $region4: #{tpu_custom_call.1} parent=1 // loop_header_branch
      %18 = sbr.rel (%p16) target = $region8
    $region5: #{tpu_custom_call.1} parent=1 // loop_body
      %s20 = ssub.s32 %s15, 1
      %s21 = ssub.s32 %s15, 2
      %s28 = sadd.s32 1, %s23
      %p29 = scmp.ge.s32.totalorder %s28, 1
      %s30 = scalar_select %p29, 0, %s28
      %s31 = sadd.s32 1, %s22
      %s32 = scalar_select %p29, %s31, %s22
      %p33 = scmp.ge.s32.totalorder %s32, 2
      %s34 = scalar_select %p33, 0, %s32
      %s36 = sadd.s32 %s35, 1
      %p39 = scmp.eq.s32.totalorder %s15, 1
      %p40 = scmp.ne.s32.totalorder %s35, %s37
      %p41 = scmp.eq.s32.totalorder %s15, 0
      %p42 = por %p40, %p41
      %p43 = scmp.ne.s32.totalorder %s35, %s37
      %p44 = scmp.eq.s32.totalorder %s20, 1
      %p45 = por %p43, %p44
      %p46 = scmp.ne.s32.totalorder %s37, %s38
      %p47 = scmp.eq.s32.totalorder %s20, 0
      %p48 = por %p46, %p47
      %p49 = scmp.ne.s32.totalorder %s37, %s38
      %p50 = scmp.eq.s32.totalorder %s21, 1
      %p51 = por %p49, %p50
      %p53 = scmp.ne.s32.totalorder %s38, %s52
      %p54 = scmp.eq.s32.totalorder %s21, 0
      %p55 = por %p53, %p54
      %s56 = ssub.s32 %s22, %s34
      %s57 = ssub.s32 %s23, %s30
      %s58 = sor.u32 %s56, %s57
      %p59 = scmp.eq.s32.totalorder %s58, 0
      %s61 = sadd.s32 %s60, 1
      %s62 = scalar_select %p59, %s60, %s61
      %p65 = pneg %p59
      %p66 = scmp.eq.s32.totalorder %s15, 1
      %p67 = por %p65, %p66
      %p68 = scmp.ne.s32.totalorder %s60, %s63
      %p69 = scmp.eq.s32.totalorder %s15, 0
      %p70 = por %p68, %p69
      %p71 = scmp.ne.s32.totalorder %s60, %s63
      %p72 = scmp.eq.s32.totalorder %s20, 1
      %p73 = por %p71, %p72
      %p74 = scmp.ne.s32.totalorder %s63, %s64
      %p75 = scmp.eq.s32.totalorder %s20, 0
      %p76 = por %p74, %p75
      %p77 = scmp.ne.s32.totalorder %s63, %s64
      %p78 = scmp.eq.s32.totalorder %s21, 1
      %p79 = por %p77, %p78
      %p81 = scmp.ne.s32.totalorder %s64, %s80
      %p82 = scmp.eq.s32.totalorder %s21, 0
      %p83 = por %p81, %p82
      %s84 = ssub.s32 %s22, %s34
      %p85 = scmp.eq.s32.totalorder %s84, 0
      %s87 = sadd.s32 %s86, 1
      %s88 = scalar_select %p85, %s86, %s87
      %p91 = pneg %p85
      %p92 = scmp.eq.s32.totalorder %s15, 1
      %p93 = por %p91, %p92
      %p94 = scmp.ne.s32.totalorder %s86, %s89
      %p95 = scmp.eq.s32.totalorder %s15, 0
      %p96 = por %p94, %p95
      %p97 = scmp.ne.s32.totalorder %s86, %s89
      %p98 = scmp.eq.s32.totalorder %s20, 1
      %p99 = por %p97, %p98
      %p100 = scmp.ne.s32.totalorder %s89, %s90
      %p101 = scmp.eq.s32.totalorder %s20, 0
      %p102 = por %p100, %p101
      %p103 = scmp.ne.s32.totalorder %s89, %s90
      %p104 = scmp.eq.s32.totalorder %s21, 1
      %p105 = por %p103, %p104
      %p107 = scmp.ne.s32.totalorder %s90, %s106
      %p108 = scmp.eq.s32.totalorder %s21, 0
      %p109 = por %p107, %p108
      %p110 = scmp.le.s32.totalorder 1, %s15
      %p111 = scmp.lt.s32.totalorder %s15, 3
      %p112 = pnand %p110, %p111
      %p113 = pneg %p112
      // Predicated region
      $region9: #{tpu_custom_call.1} parent=5 // pred_check
        _
      $region10: #{tpu_custom_call.1} parent=5 // pred_check_branch
        %115 = sbr.rel (%p112) target = $region12
      $region11: #{tpu_custom_call.1} parent=5 // pred_region
        %s116 = ssub.s32 %s15, 1
        // Predicated region
        $region13: #{tpu_custom_call.1} parent=11 // pred_check
          %p117 = pneg %p48
        $region14: #{tpu_custom_call.1} parent=11 // pred_check_branch
          %119 = sbr.rel (%p117) target = $region16
        $region15: #{tpu_custom_call.1} parent=11 // pred_region
          %121 = vsyncadd [#allocation6], 0
          %s123 = sshll.u32 %s0, 4
          %s124 = int_to_ptr.hbm [resolvable:$true] %s123
          %126 = dma.hbm_to_smem %s124, 16, [#allocation3], [#allocation6]
        $region16: #{tpu_custom_call.1} parent=11 // pred_fallthru
          _
      $region12: #{tpu_custom_call.1} parent=5 // pred_fallthru
        _
      %p127 = scmp.lt.s32.totalorder %s15, 2
      // Predicated region
      $region17: #{tpu_custom_call.1} parent=5 // pred_check
        %p128 = pneg %p127
      $region18: #{tpu_custom_call.1} parent=5 // pred_check_branch
        %130 = sbr.rel (%p128) target = $region20
      $region19: #{tpu_custom_call.1} parent=5 // pred_region
        // Predicated region
        $region21: #{tpu_custom_call.1} parent=19 // pred_check
          %p131 = pneg %p70
        $region22: #{tpu_custom_call.1} parent=19 // pred_check_branch
          %133 = sbr.rel (%p131) target = $region24
        $region23: #{tpu_custom_call.1} parent=19 // pred_region
          %s134 = sand.u32 %s60, 1
          %s135 = scalar_lea.sflag [#allocation4], %s134
          %s136 = sand.u32 %s60, 1
          %s137 = smul.addr %s136, 8
          %s138 = scalar_lea.vmem [#allocation7], %s137
          %140 = vsyncadd %s135, 0
          %s141 = smul.addr %s23, 2
          %s142 = smul.addr %s22, 2
          %s143 = sadd.s32 %s141, %s142
          %s144 = smul.addr %s143, 4
          %s145 = scalar_lea.hbm %s1, %s144
          %s147 = sshll.u32 %s145, 4
          %s148 = int_to_ptr.hbm [resolvable:$true] %s147
          %s149 = sshll.u32 %s138, 4
          %s150 = int_to_ptr.vmem [resolvable:$true] %s149
          %152 = dma.hbm_to_vmem [thread:$0]  %s148, 128, %s150, %s135
        $region24: #{tpu_custom_call.1} parent=19 // pred_fallthru
          _
      $region20: #{tpu_custom_call.1} parent=5 // pred_fallthru
        _
      %p153 = scmp.le.s32.totalorder 1, %s15
      %p154 = scmp.lt.s32.totalorder %s15, 3
      %p155 = pnand %p153, %p154
      %p156 = pneg %p155
      // Predicated region
      $region25: #{tpu_custom_call.1} parent=5 // pred_check
        _
      $region26: #{tpu_custom_call.1} parent=5 // pred_check_branch
        %158 = sbr.rel (%p155) target = $region28
      $region27: #{tpu_custom_call.1} parent=5 // pred_region
        %s159 = ssub.s32 %s15, 1
        // Predicated region
        $region29: #{tpu_custom_call.1} parent=27 // pred_check
          %p160 = pneg %p48
        $region30: #{tpu_custom_call.1} parent=27 // pred_check_branch
          %162 = sbr.rel (%p160) target = $region32
        $region31: #{tpu_custom_call.1} parent=27 // pred_region
          %164 = dma.done [#allocation6], 16
        $region32: #{tpu_custom_call.1} parent=27 // pred_fallthru
          _
        %s165 = sand.u32 %s63, 1
        %s166 = scalar_lea.sflag [#allocation4], %s165
        %s167 = sand.u32 %s63, 1
        %s168 = smul.addr %s167, 8
        %s169 = scalar_lea.vmem [#allocation7], %s168
        // Predicated region
        $region33: #{tpu_custom_call.1} parent=27 // pred_check
          %p170 = pneg %p76
        $region34: #{tpu_custom_call.1} parent=27 // pred_check_branch
          %172 = sbr.rel (%p170) target = $region36
        $region35: #{tpu_custom_call.1} parent=27 // pred_region
          %174 = dma.done %s166, 128
        $region36: #{tpu_custom_call.1} parent=27 // pred_fallthru
          _
        %175 = sfence
        %p176 = pneg %p48
        %p177 = pneg %p45
        %s178 = sand.u32 %s63, 1
        %s179 = scalar_lea.sflag [#allocation4], %s178
        %s180 = sand.u32 %s63, 1
        %s181 = smul.addr %s180, 8
        %s182 = scalar_lea.vmem [#allocation7], %s181
        %p183 = pneg %p76
        %p184 = pneg %p73
        %p185 = pneg %p102
        %p186 = pneg %p99
        %s187 = sand.u32 %s89, 1
        %s188 = scalar_lea.sflag [#allocation5], %s187
        %s189 = sand.u32 %s89, 1
        %s190 = smul.addr %s189, 2
        %s191 = scalar_lea.vmem [#allocation8], %s190
        %v192 = vld [vmem:[%s169] sm:$0xff]
        %194 = vst [vmem:[#allocation1] ss:$2 sm:$0xff] %v192
        %v195 = vld.sshfl [vmem:[#allocation1] sm:$0xff pattern:$0x75316420]
        %v196 = vld.sshfl [vmem:[#allocation1 + $0x8] sm:$0xff pattern:$0x75316420]
        %vm199 = vcmask 1043456
        %v200 = vsel %vm199, %v195, 0.0
        %v201 = vrot.slane %v200, 4
        %v202 = vadd.f32 %v200, %v201
        %v203 = vrot.slane %v202, 2
        %v204 = vadd.f32 %v202, %v203
        %v205 = vrot.slane %v204, 1
        %v206 = vadd.f32 %v204, %v205
        %v207 = vsel %vm199, %v196, 0.0
        %v208 = vrot.slane %v207, 4
        %v209 = vadd.f32 %v207, %v208
        %v210 = vrot.slane %v209, 2
        %v211 = vadd.f32 %v209, %v210
        %v212 = vrot.slane %v211, 1
        %v213 = vadd.f32 %v211, %v212
        %214 = vst [vmem:[#allocation1] ss:$2 sm:$0xff] %v192
        %v215 = vld.sshfl [vmem:[#allocation1] sm:$0xff pattern:$0x75316420]
        %v216 = vld.sshfl [vmem:[#allocation1 + $0x8] sm:$0xff pattern:$0x75316420]
        %v219 = vsel %vm199, %v215, -inf
        %v220 = vrot.slane %v219, 4
        %v221 = vmax.f32 %v219, %v220
        %v222 = vrot.slane %v221, 2
        %v223 = vmax.f32 %v221, %v222
        %v224 = vrot.slane %v223, 1
        %v225 = vmax.f32 %v223, %v224
        %v226 = vsel %vm199, %v216, -inf
        %v227 = vrot.slane %v226, 4
        %v228 = vmax.f32 %v226, %v227
        %v229 = vrot.slane %v228, 2
        %v230 = vmax.f32 %v228, %v229
        %v231 = vrot.slane %v230, 1
        %v232 = vmax.f32 %v230, %v231
        %p233 = scmp.eq.s32.totalorder %s25, 0
        // Predicated region
        $region37: #{tpu_custom_call.1} parent=27 // pred_check
          %p234 = pneg %p233
        $region38: #{tpu_custom_call.1} parent=27 // pred_check_branch
          %236 = sbr.rel (%p234) target = $region40
        $region39: #{tpu_custom_call.1} parent=27 // pred_region
          %237 = vst [vmem:[#allocation2] sm:$0xff] 0.0
          %v240 = vrot.slane %v213, 7
          %vm241 = vcmask 1040384
          %v242 = vsel %vm241, %v206, %v240
          %v244 = vlaneseq
          %vm245 = vcmp.ge.s32.totalorder %v244, 0
          %vm246 = vcmp.lt.s32.totalorder %v244, 256
          %vm247 = vmand %vm245, %vm246
          %s248 = scalar_lea.vmem [#allocation2], 2
          %249 = vst.msk [vmem:[%s248] ss:$2 sm:$0x3] %vm247, %v242
          %v252 = vrot.slane %v232, 7
          %v253 = vsel %vm241, %v225, %v252
          %s255 = scalar_lea.vmem [#allocation2], 3
          %256 = vst.msk [vmem:[%s255] ss:$2 sm:$0x3] %vm247, %v253
        $region40: #{tpu_custom_call.1} parent=27 // pred_fallthru
          _
        %p257 = scmp.gt.s32.totalorder %s25, 0
        // Predicated region
        $region41: #{tpu_custom_call.1} parent=27 // pred_check
          %p258 = pneg %p257
        $region42: #{tpu_custom_call.1} parent=27 // pred_check_branch
          %260 = sbr.rel (%p258) target = $region44
        $region43: #{tpu_custom_call.1} parent=27 // pred_region
          %s261 = scalar_lea.vmem [#allocation2], 2
          %v262 = vld [vmem:[%s261] ss:$2 sm:$0x3]
          %v265 = vrot.slane %v213, 7
          %vm266 = vcmask 1040384
          %v267 = vsel %vm266, %v206, %v265
          %v269 = vadd.f32 %v262, %v267
          %v270 = vlaneseq
          %vm271 = vcmp.ge.s32.totalorder %v270, 0
          %vm272 = vcmp.lt.s32.totalorder %v270, 256
          %vm273 = vmand %vm271, %vm272
          %274 = vst.msk [vmem:[%s261] ss:$2 sm:$0x3] %vm273, %v269
          %s275 = scalar_lea.vmem [#allocation2], 3
          %v276 = vld [vmem:[%s275] ss:$2 sm:$0x3]
          %v279 = vrot.slane %v232, 7
          %v280 = vsel %vm266, %v225, %v279
          %v282 = vmax.f32 %v276, %v280
          %283 = vst.msk [vmem:[%s275] ss:$2 sm:$0x3] %vm273, %v282
        $region44: #{tpu_custom_call.1} parent=27 // pred_fallthru
          _
        // Predicated region
        $region45: #{tpu_custom_call.1} parent=27 // pred_check
          %p284 = pneg %p233
        $region46: #{tpu_custom_call.1} parent=27 // pred_check_branch
          %286 = sbr.rel (%p284) target = $region48
        $region47: #{tpu_custom_call.1} parent=27 // pred_region
          %v287 = vld [vmem:[#allocation2] sm:$0xff]
          %v288 = vlaneseq
          %v289 = vand.u32 %v288, 127
          %v290 = vadd.s32 %v289, 128
          %vm291 = vcmp.lt.s32.totalorder %v289, 0
          %v292 = vsub.s32 0, %v289
          %v293 = vsel %vm291, %v292, %v289
          %v294 = vshrl.u32 %v293, 4
          %v295 = vand.u32 %v293, 15
          %v296 = vsub.s32 0, %v295
          %v297 = vsel %vm291, %v296, %v295
          %vm298 = vcmp.lt.s32.totalorder %v290, 0
          %v299 = vsub.s32 0, %v290
          %v300 = vsel %vm298, %v299, %v290
          %v301 = vshrl.u32 %v300, 4
          %v302 = vand.u32 %v300, 15
          %v303 = vsub.s32 0, %v302
          %v304 = vsel %vm298, %v303, %v302
          %vm305 = vcmp.ne.s32.totalorder %v297, 0
          %vm306 = vcmp.ne.s32.totalorder %v304, 0
          %vm307 = vcmp.lt.s32.totalorder %v297, 0
          %vm308 = vcmp.lt.s32.totalorder %v304, 0
          %vm309 = vmand %vm307, %vm305
          %vm310 = vmand %vm308, %vm306
          %v311 = vadd.s32 %v297, 16
          %v312 = vadd.s32 %v304, 16
          %v313 = vsel %vm309, %v311, %v297
          %v314 = vsel %vm310, %v312, %v304
          %v315 = vadd.s32 %v313, 4294967293
          %v316 = vadd.s32 %v314, 4294967293
          %vm317 = vcmp.ge.s32.totalorder %v315, 0
          %vm318 = vcmp.ge.s32.totalorder %v316, 0
          %vm319 = vcmp.lt.s32.totalorder %v315, 16
          %vm320 = vcmp.lt.s32.totalorder %v316, 16
          %vm321 = vmand %vm317, %vm319
          %vm322 = vmand %vm318, %vm320
          %324 = vst [vmem:[#allocation1] ss:$4 sm:$0xff] %v287
          %v325 = vld.sshfl [vmem:[#allocation1] sm:$0xff pattern:$0x73625140]
          %v326 = vld.sshfl [vmem:[#allocation1 + $0x8] sm:$0xff pattern:$0x73625140]
          %v327 = vld.sshfl [vmem:[#allocation1 + $0x10] sm:$0xff pattern:$0x73625140]
          %331 = vrot.lane.b32.xlu0 %v325, 51
          %v332 = vpop.permute.xlu0 %331
          %333 = vrot.lane.b32.xlu0 %v326, 51
          %v334 = vpop.permute.xlu0 %333
          %335 = vrot.lane.b32.xlu0 %v327, 51
          %v336 = vpop.permute.xlu0 %335
          %vm337 = vcmp.lt.s32.totalorder %v289, 51
          %v338 = vsel %vm337, %v334, %v336
          %v339 = vsel %vm337, %v332, %v334
          %s340 = sld [smem:[#allocation3]]
          %v341 = vstv %s340
          %v342 = vmul.f32 %v341, %v339
          %v343 = vmul.f32 %v341, %v338
          %v344 = vadd.f32 %v342, 0.0
          %v345 = vadd.f32 %v343, 0.0
          %s346 = sld [smem:[#allocation3 + $0x31]]
          %v347 = vstv %s346
          %v348 = vmul.f32 %v347, %v339
          %v349 = vmul.f32 %v347, %v338
          %v352 = vrot.slane %v348, 1
          %v353 = vrot.slane %v349, 1
          %v356 = vadd.f32 %v344, %v352
          %v357 = vadd.f32 %v345, %v353
          %358 = vst [vmem:[#allocation1] ss:$4 sm:$0xff] %v287
          %v359 = vld.sshfl [vmem:[#allocation1] sm:$0xff pattern:$0x73625140]
          %v360 = vld.sshfl [vmem:[#allocation1 + $0x8] sm:$0xff pattern:$0x73625140]
          %v361 = vld.sshfl [vmem:[#allocation1 + $0x10] sm:$0xff pattern:$0x73625140]
          %365 = vrot.lane.b32.xlu0 %v359, 35
          %v366 = vpop.permute.xlu0 %365
          %367 = vrot.lane.b32.xlu0 %v360, 35
          %v368 = vpop.permute.xlu0 %367
          %369 = vrot.lane.b32.xlu0 %v361, 35
          %v370 = vpop.permute.xlu0 %369
          %vm371 = vcmp.lt.s32.totalorder %v289, 35
          %v372 = vsel %vm371, %v368, %v370
          %v373 = vsel %vm371, %v366, %v368
          %s374 = sld [smem:[#allocation3 + $0x7]]
          %v375 = vstv %s374
          %v376 = vmul.f32 %v375, %v373
          %v377 = vmul.f32 %v375, %v372
          %v378 = vadd.f32 %v356, %v376
          %v379 = vadd.f32 %v357, %v377
          %s380 = sld [smem:[#allocation3 + $0x38]]
          %v381 = vstv %s380
          %v382 = vmul.f32 %v381, %v373
          %v383 = vmul.f32 %v381, %v372
          %v386 = vrot.slane %v382, 1
          %v387 = vrot.slane %v383, 1
          %v390 = vadd.f32 %v378, %v386
          %v391 = vadd.f32 %v379, %v387
          %392 = vst [vmem:[#allocation1] ss:$4 sm:$0xff] %v287
          %v393 = vld.sshfl [vmem:[#allocation1] sm:$0xff pattern:$0x73625140]
          %v394 = vld.sshfl [vmem:[#allocation1 + $0x8] sm:$0xff pattern:$0x73625140]
          %v395 = vld.sshfl [vmem:[#allocation1 + $0x10] sm:$0xff pattern:$0x73625140]
          %399 = vrot.lane.b32.xlu0 %v393, 19
          %v400 = vpop.permute.xlu0 %399
          %401 = vrot.lane.b32.xlu0 %v394, 19
          %v402 = vpop.permute.xlu0 %401
          %403 = vrot.lane.b32.xlu0 %v395, 19
          %v404 = vpop.permute.xlu0 %403
          %vm405 = vcmp.lt.s32.totalorder %v289, 19
          %v406 = vsel %vm405, %v402, %v404
          %v407 = vsel %vm405, %v400, %v402
          %s408 = sld [smem:[#allocation3 + $0xe]]
          %v409 = vstv %s408
          %v410 = vmul.f32 %v409, %v407
          %v411 = vmul.f32 %v409, %v406
          %v412 = vadd.f32 %v390, %v410
          %v413 = vadd.f32 %v391, %v411
          %s414 = sld [smem:[#allocation3 + $0x3f]]
          %v415 = vstv %s414
          %v416 = vmul.f32 %v415, %v407
          %v417 = vmul.f32 %v415, %v406
          %v420 = vrot.slane %v416, 1
          %v421 = vrot.slane %v417, 1
          %v424 = vadd.f32 %v412, %v420
          %v425 = vadd.f32 %v413, %v421
          %426 = vst [vmem:[#allocation1] ss:$4 sm:$0xff] %v287
          %v427 = vld.sshfl [vmem:[#allocation1] sm:$0xff pattern:$0x73625140]
          %v428 = vld.sshfl [vmem:[#allocation1 + $0x8] sm:$0xff pattern:$0x73625140]
          %v429 = vld.sshfl [vmem:[#allocation1 + $0x10] sm:$0xff pattern:$0x73625140]
          %433 = vrot.lane.b32.xlu0 %v427, 3
          %v434 = vpop.permute.xlu0 %433
          %435 = vrot.lane.b32.xlu0 %v428, 3
          %v436 = vpop.permute.xlu0 %435
          %437 = vrot.lane.b32.xlu0 %v429, 3
          %v438 = vpop.permute.xlu0 %437
          %vm439 = vcmp.lt.s32.totalorder %v289, 3
          %v440 = vsel %vm439, %v436, %v438
          %v441 = vsel %vm439, %v434, %v436
          %s442 = sld [smem:[#allocation3 + $0x15]]
          %v443 = vstv %s442
          %v444 = vmul.f32 %v443, %v441
          %v445 = vmul.f32 %v443, %v440
          %v446 = vadd.f32 %v424, %v444
          %v447 = vadd.f32 %v425, %v445
          %s448 = sld [smem:[#allocation3 + $0x46]]
          %v449 = vstv %s448
          %v450 = vmul.f32 %v449, %v441
          %v451 = vmul.f32 %v449, %v440
          %v454 = vrot.slane %v450, 1
          %v455 = vrot.slane %v451, 1
          %v458 = vadd.f32 %v446, %v454
          %v459 = vadd.f32 %v447, %v455
          %460 = vst [vmem:[#allocation1] ss:$4 sm:$0xff] %v287
          %v461 = vld.sshfl [vmem:[#allocation1 + $0x8] sm:$0xff pattern:$0x73625140]
          %v462 = vld.sshfl [vmem:[#allocation1 + $0x10] sm:$0xff pattern:$0x73625140]
          %v463 = vld.sshfl [vmem:[#allocation1 + $0x18] sm:$0xff pattern:$0x73625140]
          %467 = vrot.lane.b32.xlu0 %v461, 115
          %v468 = vpop.permute.xlu0 %467
          %469 = vrot.lane.b32.xlu0 %v462, 115
          %v470 = vpop.permute.xlu0 %469
          %471 = vrot.lane.b32.xlu0 %v463, 115
          %v472 = vpop.permute.xlu0 %471
          %vm473 = vcmp.lt.s32.totalorder %v289, 115
          %v474 = vsel %vm473, %v470, %v472
          %v475 = vsel %vm473, %v468, %v470
          %s476 = sld [smem:[#allocation3 + $0x1c]]
          %v477 = vstv %s476
          %v478 = vmul.f32 %v477, %v475
          %v479 = vmul.f32 %v477, %v474
          %v480 = vadd.f32 %v458, %v478
          %v481 = vadd.f32 %v459, %v479
          %s482 = sld [smem:[#allocation3 + $0x4d]]
          %v483 = vstv %s482
          %v484 = vmul.f32 %v483, %v475
          %v485 = vmul.f32 %v483, %v474
          %v488 = vrot.slane %v484, 1
          %v489 = vrot.slane %v485, 1
          %v492 = vadd.f32 %v480, %v488
          %v493 = vadd.f32 %v481, %v489
          %494 = vst [vmem:[#allocation1] ss:$4 sm:$0xff] %v287
          %v495 = vld.sshfl [vmem:[#allocation1 + $0x8] sm:$0xff pattern:$0x73625140]
          %v496 = vld.sshfl [vmem:[#allocation1 + $0x10] sm:$0xff pattern:$0x73625140]
          %v497 = vld.sshfl [vmem:[#allocation1 + $0x18] sm:$0xff pattern:$0x73625140]
          %501 = vrot.lane.b32.xlu0 %v495, 99
          %v502 = vpop.permute.xlu0 %501
          %503 = vrot.lane.b32.xlu0 %v496, 99
          %v504 = vpop.permute.xlu0 %503
          %505 = vrot.lane.b32.xlu0 %v497, 99
          %v506 = vpop.permute.xlu0 %505
          %vm507 = vcmp.lt.s32.totalorder %v289, 99
          %v508 = vsel %vm507, %v504, %v506
          %v509 = vsel %vm507, %v502, %v504
          %s510 = sld [smem:[#allocation3 + $0x23]]
          %v511 = vstv %s510
          %v512 = vmul.f32 %v511, %v509
          %v513 = vmul.f32 %v511, %v508
          %v514 = vadd.f32 %v492, %v512
          %v515 = vadd.f32 %v493, %v513
          %s516 = sld [smem:[#allocation3 + $0x54]]
          %v517 = vstv %s516
          %v518 = vmul.f32 %v517, %v509
          %v519 = vmul.f32 %v517, %v508
          %v522 = vrot.slane %v518, 1
          %v523 = vrot.slane %v519, 1
          %v526 = vadd.f32 %v514, %v522
          %v527 = vadd.f32 %v515, %v523
          %528 = vst [vmem:[#allocation1] ss:$4 sm:$0xff] %v287
          %v529 = vld.sshfl [vmem:[#allocation1 + $0x8] sm:$0xff pattern:$0x73625140]
          %v530 = vld.sshfl [vmem:[#allocation1 + $0x10] sm:$0xff pattern:$0x73625140]
          %v531 = vld.sshfl [vmem:[#allocation1 + $0x18] sm:$0xff pattern:$0x73625140]
          %535 = vrot.lane.b32.xlu0 %v529, 83
          %v536 = vpop.permute.xlu0 %535
          %537 = vrot.lane.b32.xlu0 %v530, 83
          %v538 = vpop.permute.xlu0 %537
          %539 = vrot.lane.b32.xlu0 %v531, 83
          %v540 = vpop.permute.xlu0 %539
          %vm541 = vcmp.lt.s32.totalorder %v289, 83
          %v542 = vsel %vm541, %v538, %v540
          %v543 = vsel %vm541, %v536, %v538
          %s544 = sld [smem:[#allocation3 + $0x2a]]
          %v545 = vstv %s544
          %v546 = vmul.f32 %v545, %v543
          %v547 = vmul.f32 %v545, %v542
          %v548 = vadd.f32 %v526, %v546
          %v549 = vadd.f32 %v527, %v547
          %s550 = sld [smem:[#allocation3 + $0x5b]]
          %v551 = vstv %s550
          %v552 = vmul.f32 %v551, %v543
          %v553 = vmul.f32 %v551, %v542
          %v556 = vrot.slane %v552, 1
          %v557 = vrot.slane %v553, 1
          %v560 = vadd.f32 %v548, %v556
          %v561 = vadd.f32 %v549, %v557
          %v562 = vsel %vm321, %v560, 0.0
          %v563 = vsel %vm322, %v561, 0.0
          %v564 = vadd.f32 %v562, 0.0
          %v565 = vadd.f32 %v563, 0.0
          %v566 = vadd.s32 %v313, 4294967294
          %v567 = vadd.s32 %v314, 4294967294
          %vm568 = vcmp.ge.s32.totalorder %v566, 0
          %vm569 = vcmp.ge.s32.totalorder %v567, 0
          %vm570 = vcmp.lt.s32.totalorder %v566, 16
          %vm571 = vcmp.lt.s32.totalorder %v567, 16
          %vm572 = vmand %vm568, %vm570
          %vm573 = vmand %vm569, %vm571
          %574 = vst [vmem:[#allocation1] ss:$4 sm:$0xff] %v287
          %v575 = vld.sshfl [vmem:[#allocation1] sm:$0xff pattern:$0x73625140]
          %v576 = vld.sshfl [vmem:[#allocation1 + $0x8] sm:$0xff pattern:$0x73625140]
          %v577 = vld.sshfl [vmem:[#allocation1 + $0x10] sm:$0xff pattern:$0x73625140]
          %581 = vrot.lane.b32.xlu0 %v575, 50
          %v582 = vpop.permute.xlu0 %581
          %583 = vrot.lane.b32.xlu0 %v576, 50
          %v584 = vpop.permute.xlu0 %583
          %585 = vrot.lane.b32.xlu0 %v577, 50
          %v586 = vpop.permute.xlu0 %585
          %vm587 = vcmp.lt.s32.totalorder %v289, 50
          %v588 = vsel %vm587, %v584, %v586
          %v589 = vsel %vm587, %v582, %v584
          %s590 = sld [smem:[#allocation3 + $0x1]]
          %v591 = vstv %s590
          %v592 = vmul.f32 %v591, %v589
          %v593 = vmul.f32 %v591, %v588
          %v594 = vadd.f32 %v592, 0.0
          %v595 = vadd.f32 %v593, 0.0
          %s596 = sld [smem:[#allocation3 + $0x32]]
          %v597 = vstv %s596
          %v598 = vmul.f32 %v597, %v589
          %v599 = vmul.f32 %v597, %v588
          %v602 = vrot.slane %v598, 1
          %v603 = vrot.slane %v599, 1
          %v606 = vadd.f32 %v594, %v602
          %v607 = vadd.f32 %v595, %v603
          %608 = vst [vmem:[#allocation1] ss:$4 sm:$0xff] %v287
          %v609 = vld.sshfl [vmem:[#allocation1] sm:$0xff pattern:$0x73625140]
          %v610 = vld.sshfl [vmem:[#allocation1 + $0x8] sm:$0xff pattern:$0x73625140]
          %v611 = vld.sshfl [vmem:[#allocation1 + $0x10] sm:$0xff pattern:$0x73625140]
          %615 = vrot.lane.b32.xlu0 %v609, 34
          %v616 = vpop.permute.xlu0 %615
          %617 = vrot.lane.b32.xlu0 %v610, 34
          %v618 = vpop.permute.xlu0 %617
          %619 = vrot.lane.b32.xlu0 %v611, 34
          %v620 = vpop.permute.xlu0 %619
          %vm621 = vcmp.lt.s32.totalorder %v289, 34
          %v622 = vsel %vm621, %v618, %v620
          %v623 = vsel %vm621, %v616, %v618
          %s624 = sld [smem:[#allocation3 + $0x8]]
          %v625 = vstv %s624
          %v626 = vmul.f32 %v625, %v623
          %v627 = vmul.f32 %v625, %v622
          %v628 = vadd.f32 %v606, %v626
          %v629 = vadd.f32 %v607, %v627
          %s630 = sld [smem:[#allocation3 + $0x39]]
          %v631 = vstv %s630
          %v632 = vmul.f32 %v631, %v623
          %v633 = vmul.f32 %v631, %v622
          %v636 = vrot.slane %v632, 1
          %v637 = vrot.slane %v633, 1
          %v640 = vadd.f32 %v628, %v636
          %v641 = vadd.f32 %v629, %v637
          %642 = vst [vmem:[#allocation1] ss:$4 sm:$0xff] %v287
          %v643 = vld.sshfl [vmem:[#allocation1] sm:$0xff pattern:$0x73625140]
          %v644 = vld.sshfl [vmem:[#allocation1 + $0x8] sm:$0xff pattern:$0x73625140]
          %v645 = vld.sshfl [vmem:[#allocation1 + $0x10] sm:$0xff pattern:$0x73625140]
          %649 = vrot.lane.b32.xlu0 %v643, 18
          %v650 = vpop.permute.xlu0 %649
          %651 = vrot.lane.b32.xlu0 %v644, 18
          %v652 = vpop.permute.xlu0 %651
          %653 = vrot.lane.b32.xlu0 %v645, 18
          %v654 = vpop.permute.xlu0 %653
          %vm655 = vcmp.lt.s32.totalorder %v289, 18
          %v656 = vsel %vm655, %v652, %v654
          %v657 = vsel %vm655, %v650, %v652
          %s658 = sld [smem:[#allocation3 + $0xf]]
          %v659 = vstv %s658
          %v660 = vmul.f32 %v659, %v657
          %v661 = vmul.f32 %v659, %v656
          %v662 = vadd.f32 %v640, %v660
          %v663 = vadd.f32 %v641, %v661
          %s664 = sld [smem:[#allocation3 + $0x40]]
          %v665 = vstv %s664
          %v666 = vmul.f32 %v665, %v657
          %v667 = vmul.f32 %v665, %v656
          %v670 = vrot.slane %v666, 1
          %v671 = vrot.slane %v667, 1
          %v674 = vadd.f32 %v662, %v670
          %v675 = vadd.f32 %v663, %v671
          %676 = vst [vmem:[#allocation1] ss:$4 sm:$0xff] %v287
          %v677 = vld.sshfl [vmem:[#allocation1] sm:$0xff pattern:$0x73625140]
          %v678 = vld.sshfl [vmem:[#allocation1 + $0x8] sm:$0xff pattern:$0x73625140]
          %v679 = vld.sshfl [vmem:[#allocation1 + $0x10] sm:$0xff pattern:$0x73625140]
          %683 = vrot.lane.b32.xlu0 %v677, 2
          %v684 = vpop.permute.xlu0 %683
          %685 = vrot.lane.b32.xlu0 %v678, 2
          %v686 = vpop.permute.xlu0 %685
          %687 = vrot.lane.b32.xlu0 %v679, 2
          %v688 = vpop.permute.xlu0 %687
          %vm689 = vcmp.lt.s32.totalorder %v289, 2
          %v690 = vsel %vm689, %v686, %v688
          %v691 = vsel %vm689, %v684, %v686
          %s692 = sld [smem:[#allocation3 + $0x16]]
          %v693 = vstv %s692
          %v694 = vmul.f32 %v693, %v691
          %v695 = vmul.f32 %v693, %v690
          %v696 = vadd.f32 %v674, %v694
          %v697 = vadd.f32 %v675, %v695
          %s698 = sld [smem:[#allocation3 + $0x47]]
          %v699 = vstv %s698
          %v700 = vmul.f32 %v699, %v691
          %v701 = vmul.f32 %v699, %v690
          %v704 = vrot.slane %v700, 1
          %v705 = vrot.slane %v701, 1
          %v708 = vadd.f32 %v696, %v704
          %v709 = vadd.f32 %v697, %v705
          %710 = vst [vmem:[#allocation1] ss:$4 sm:$0xff] %v287
          %v711 = vld.sshfl [vmem:[#allocation1 + $0x8] sm:$0xff pattern:$0x73625140]
          %v712 = vld.sshfl [vmem:[#allocation1 + $0x10] sm:$0xff pattern:$0x73625140]
          %v713 = vld.sshfl [vmem:[#allocation1 + $0x18] sm:$0xff pattern:$0x73625140]
          %717 = vrot.lane.b32.xlu0 %v711, 114
          %v718 = vpop.permute.xlu0 %717
          %719 = vrot.lane.b32.xlu0 %v712, 114
          %v720 = vpop.permute.xlu0 %719
          %721 = vrot.lane.b32.xlu0 %v713, 114
          %v722 = vpop.permute.xlu0 %721
          %vm723 = vcmp.lt.s32.totalorder %v289, 114
          %v724 = vsel %vm723, %v720, %v722
          %v725 = vsel %vm723, %v718, %v720
          %s726 = sld [smem:[#allocation3 + $0x1d]]
          %v727 = vstv %s726
          %v728 = vmul.f32 %v727, %v725
          %v729 = vmul.f32 %v727, %v724
          %v730 = vadd.f32 %v708, %v728
          %v731 = vadd.f32 %v709, %v729
          %s732 = sld [smem:[#allocation3 + $0x4e]]
          %v733 = vstv %s732
          %v734 = vmul.f32 %v733, %v725
          %v735 = vmul.f32 %v733, %v724
          %v738 = vrot.slane %v734, 1
          %v739 = vrot.slane %v735, 1
          %v742 = vadd.f32 %v730, %v738
          %v743 = vadd.f32 %v731, %v739
          %744 = vst [vmem:[#allocation1] ss:$4 sm:$0xff] %v287
          %v745 = vld.sshfl [vmem:[#allocation1 + $0x8] sm:$0xff pattern:$0x73625140]
          %v746 = vld.sshfl [vmem:[#allocation1 + $0x10] sm:$0xff pattern:$0x73625140]
          %v747 = vld.sshfl [vmem:[#allocation1 + $0x18] sm:$0xff pattern:$0x73625140]
          %751 = vrot.lane.b32.xlu0 %v745, 98
          %v752 = vpop.permute.xlu0 %751
          %753 = vrot.lane.b32.xlu0 %v746, 98
          %v754 = vpop.permute.xlu0 %753
          %755 = vrot.lane.b32.xlu0 %v747, 98
          %v756 = vpop.permute.xlu0 %755
          %vm757 = vcmp.lt.s32.totalorder %v289, 98
          %v758 = vsel %vm757, %v754, %v756
          %v759 = vsel %vm757, %v752, %v754
          %s760 = sld [smem:[#allocation3 + $0x24]]
          %v761 = vstv %s760
          %v762 = vmul.f32 %v761, %v759
          %v763 = vmul.f32 %v761, %v758
          %v764 = vadd.f32 %v742, %v762
          %v765 = vadd.f32 %v743, %v763
          %s766 = sld [smem:[#allocation3 + $0x55]]
          %v767 = vstv %s766
          %v768 = vmul.f32 %v767, %v759
          %v769 = vmul.f32 %v767, %v758
          %v772 = vrot.slane %v768, 1
          %v773 = vrot.slane %v769, 1
          %v776 = vadd.f32 %v764, %v772
          %v777 = vadd.f32 %v765, %v773
          %778 = vst [vmem:[#allocation1] ss:$4 sm:$0xff] %v287
          %v779 = vld.sshfl [vmem:[#allocation1 + $0x8] sm:$0xff pattern:$0x73625140]
          %v780 = vld.sshfl [vmem:[#allocation1 + $0x10] sm:$0xff pattern:$0x73625140]
          %v781 = vld.sshfl [vmem:[#allocation1 + $0x18] sm:$0xff pattern:$0x73625140]
          %785 = vrot.lane.b32.xlu0 %v779, 82
          %v786 = vpop.permute.xlu0 %785
          %787 = vrot.lane.b32.xlu0 %v780, 82
          %v788 = vpop.permute.xlu0 %787
          %789 = vrot.lane.b32.xlu0 %v781, 82
          %v790 = vpop.permute.xlu0 %789
          %vm791 = vcmp.lt.s32.totalorder %v289, 82
          %v792 = vsel %vm791, %v788, %v790
          %v793 = vsel %vm791, %v786, %v788
          %s794 = sld [smem:[#allocation3 + $0x2b]]
          %v795 = vstv %s794
          %v796 = vmul.f32 %v795, %v793
          %v797 = vmul.f32 %v795, %v792
          %v798 = vadd.f32 %v776, %v796
          %v799 = vadd.f32 %v777, %v797
          %s800 = sld [smem:[#allocation3 + $0x5c]]
          %v801 = vstv %s800
          %v802 = vmul.f32 %v801, %v793
          %v803 = vmul.f32 %v801, %v792
          %v806 = vrot.slane %v802, 1
          %v807 = vrot.slane %v803, 1
          %v810 = vadd.f32 %v798, %v806
          %v811 = vadd.f32 %v799, %v807
          %v812 = vsel %vm572, %v810, 0.0
          %v813 = vsel %vm573, %v811, 0.0
          %v814 = vadd.f32 %v564, %v812
          %v815 = vadd.f32 %v565, %v813
          %v816 = vadd.s32 %v313, 4294967295
          %v817 = vadd.s32 %v314, 4294967295
          %vm818 = vcmp.ge.s32.totalorder %v816, 0
          %vm819 = vcmp.ge.s32.totalorder %v817, 0
          %vm820 = vcmp.lt.s32.totalorder %v816, 16
          %vm821 = vcmp.lt.s32.totalorder %v817, 16
          %vm822 = vmand %vm818, %vm820
          %vm823 = vmand %vm819, %vm821
          %824 = vst [vmem:[#allocation1] ss:$4 sm:$0xff] %v287
          %v825 = vld.sshfl [vmem:[#allocation1] sm:$0xff pattern:$0x73625140]
          %v826 = vld.sshfl [vmem:[#allocation1 + $0x8] sm:$0xff pattern:$0x73625140]
          %v827 = vld.sshfl [vmem:[#allocation1 + $0x10] sm:$0xff pattern:$0x73625140]
          %831 = vrot.lane.b32.xlu0 %v825, 49
          %v832 = vpop.permute.xlu0 %831
          %833 = vrot.lane.b32.xlu0 %v826, 49
          %v834 = vpop.permute.xlu0 %833
          %835 = vrot.lane.b32.xlu0 %v827, 49
          %v836 = vpop.permute.xlu0 %835
          %vm837 = vcmp.lt.s32.totalorder %v289, 49
          %v838 = vsel %vm837, %v834, %v836
          %v839 = vsel %vm837, %v832, %v834
          %s840 = sld [smem:[#allocation3 + $0x2]]
          %v841 = vstv %s840
          %v842 = vmul.f32 %v841, %v839
          %v843 = vmul.f32 %v841, %v838
          %v844 = vadd.f32 %v842, 0.0
          %v845 = vadd.f32 %v843, 0.0
          %s846 = sld [smem:[#allocation3 + $0x33]]
          %v847 = vstv %s846
          %v848 = vmul.f32 %v847, %v839
          %v849 = vmul.f32 %v847, %v838
          %v852 = vrot.slane %v848, 1
          %v853 = vrot.slane %v849, 1
          %v856 = vadd.f32 %v844, %v852
          %v857 = vadd.f32 %v845, %v853
          %858 = vst [vmem:[#allocation1] ss:$4 sm:$0xff] %v287
          %v859 = vld.sshfl [vmem:[#allocation1] sm:$0xff pattern:$0x73625140]
          %v860 = vld.sshfl [vmem:[#allocation1 + $0x8] sm:$0xff pattern:$0x73625140]
          %v861 = vld.sshfl [vmem:[#allocation1 + $0x10] sm:$0xff pattern:$0x73625140]
          %865 = vrot.lane.b32.xlu0 %v859, 33
          %v866 = vpop.permute.xlu0 %865
          %867 = vrot.lane.b32.xlu0 %v860, 33
          %v868 = vpop.permute.xlu0 %867
          %869 = vrot.lane.b32.xlu0 %v861, 33
          %v870 = vpop.permute.xlu0 %869
          %vm871 = vcmp.lt.s32.totalorder %v289, 33
          %v872 = vsel %vm871, %v868, %v870
          %v873 = vsel %vm871, %v866, %v868
          %s874 = sld [smem:[#allocation3 + $0x9]]
          %v875 = vstv %s874
          %v876 = vmul.f32 %v875, %v873
          %v877 = vmul.f32 %v875, %v872
          %v878 = vadd.f32 %v856, %v876
          %v879 = vadd.f32 %v857, %v877
          %s880 = sld [smem:[#allocation3 + $0x3a]]
          %v881 = vstv %s880
          %v882 = vmul.f32 %v881, %v873
          %v883 = vmul.f32 %v881, %v872
          %v886 = vrot.slane %v882, 1
          %v887 = vrot.slane %v883, 1
          %v890 = vadd.f32 %v878, %v886
          %v891 = vadd.f32 %v879, %v887
          %892 = vst [vmem:[#allocation1] ss:$4 sm:$0xff] %v287
          %v893 = vld.sshfl [vmem:[#allocation1] sm:$0xff pattern:$0x73625140]
          %v894 = vld.sshfl [vmem:[#allocation1 + $0x8] sm:$0xff pattern:$0x73625140]
          %v895 = vld.sshfl [vmem:[#allocation1 + $0x10] sm:$0xff pattern:$0x73625140]
          %899 = vrot.lane.b32.xlu0 %v893, 17
          %v900 = vpop.permute.xlu0 %899
          %901 = vrot.lane.b32.xlu0 %v894, 17
          %v902 = vpop.permute.xlu0 %901
          %903 = vrot.lane.b32.xlu0 %v895, 17
          %v904 = vpop.permute.xlu0 %903
          %vm905 = vcmp.lt.s32.totalorder %v289, 17
          %v906 = vsel %vm905, %v902, %v904
          %v907 = vsel %vm905, %v900, %v902
          %s908 = sld [smem:[#allocation3 + $0x10]]
          %v909 = vstv %s908
          %v910 = vmul.f32 %v909, %v907
          %v911 = vmul.f32 %v909, %v906
          %v912 = vadd.f32 %v890, %v910
          %v913 = vadd.f32 %v891, %v911
          %s914 = sld [smem:[#allocation3 + $0x41]]
          %v915 = vstv %s914
          %v916 = vmul.f32 %v915, %v907
          %v917 = vmul.f32 %v915, %v906
          %v920 = vrot.slane %v916, 1
          %v921 = vrot.slane %v917, 1
          %v924 = vadd.f32 %v912, %v920
          %v925 = vadd.f32 %v913, %v921
          %926 = vst [vmem:[#allocation1] ss:$4 sm:$0xff] %v287
          %v927 = vld.sshfl [vmem:[#allocation1] sm:$0xff pattern:$0x73625140]
          %v928 = vld.sshfl [vmem:[#allocation1 + $0x8] sm:$0xff pattern:$0x73625140]
          %v929 = vld.sshfl [vmem:[#allocation1 + $0x10] sm:$0xff pattern:$0x73625140]
          %933 = vrot.lane.b32.xlu0 %v927, 1
          %v934 = vpop.permute.xlu0 %933
          %935 = vrot.lane.b32.xlu0 %v928, 1
          %v936 = vpop.permute.xlu0 %935
          %937 = vrot.lane.b32.xlu0 %v929, 1
          %v938 = vpop.permute.xlu0 %937
          %vm939 = vcmp.lt.s32.totalorder %v289, 1
          %v940 = vsel %vm939, %v936, %v938
          %v941 = vsel %vm939, %v934, %v936
          %s942 = sld [smem:[#allocation3 + $0x17]]
          %v943 = vstv %s942
          %v944 = vmul.f32 %v943, %v941
          %v945 = vmul.f32 %v943, %v940
          %v946 = vadd.f32 %v924, %v944
          %v947 = vadd.f32 %v925, %v945
          %s948 = sld [smem:[#allocation3 + $0x48]]
          %v949 = vstv %s948
          %v950 = vmul.f32 %v949, %v941
          %v951 = vmul.f32 %v949, %v940
          %v954 = vrot.slane %v950, 1
          %v955 = vrot.slane %v951, 1
          %v958 = vadd.f32 %v946, %v954
          %v959 = vadd.f32 %v947, %v955
          %960 = vst [vmem:[#allocation1] ss:$4 sm:$0xff] %v287
          %v961 = vld.sshfl [vmem:[#allocation1 + $0x8] sm:$0xff pattern:$0x73625140]
          %v962 = vld.sshfl [vmem:[#allocation1 + $0x10] sm:$0xff pattern:$0x73625140]
          %v963 = vld.sshfl [vmem:[#allocation1 + $0x18] sm:$0xff pattern:$0x73625140]
          %967 = vrot.lane.b32.xlu0 %v961, 113
          %v968 = vpop.permute.xlu0 %967
          %969 = vrot.lane.b32.xlu0 %v962, 113
          %v970 = vpop.permute.xlu0 %969
          %971 = vrot.lane.b32.xlu0 %v963, 113
          %v972 = vpop.permute.xlu0 %971
          %vm973 = vcmp.lt.s32.totalorder %v289, 113
          %v974 = vsel %vm973, %v970, %v972
          %v975 = vsel %vm973, %v968, %v970
          %s976 = sld [smem:[#allocation3 + $0x1e]]
          %v977 = vstv %s976
          %v978 = vmul.f32 %v977, %v975
          %v979 = vmul.f32 %v977, %v974
          %v980 = vadd.f32 %v958, %v978
          %v981 = vadd.f32 %v959, %v979
          %s982 = sld [smem:[#allocation3 + $0x4f]]
          %v983 = vstv %s982
          %v984 = vmul.f32 %v983, %v975
          %v985 = vmul.f32 %v983, %v974
          %v988 = vrot.slane %v984, 1
          %v989 = vrot.slane %v985, 1
          %v992 = vadd.f32 %v980, %v988
          %v993 = vadd.f32 %v981, %v989
          %994 = vst [vmem:[#allocation1] ss:$4 sm:$0xff] %v287
          %v995 = vld.sshfl [vmem:[#allocation1 + $0x8] sm:$0xff pattern:$0x73625140]
          %v996 = vld.sshfl [vmem:[#allocation1 + $0x10] sm:$0xff pattern:$0x73625140]
          %v997 = vld.sshfl [vmem:[#allocation1 + $0x18] sm:$0xff pattern:$0x73625140]
          %1001 = vrot.lane.b32.xlu0 %v995, 97
          %v1002 = vpop.permute.xlu0 %1001
          %1003 = vrot.lane.b32.xlu0 %v996, 97
          %v1004 = vpop.permute.xlu0 %1003
          %1005 = vrot.lane.b32.xlu0 %v997, 97
          %v1006 = vpop.permute.xlu0 %1005
          %vm1007 = vcmp.lt.s32.totalorder %v289, 97
          %v1008 = vsel %vm1007, %v1004, %v1006
          %v1009 = vsel %vm1007, %v1002, %v1004
          %s1010 = sld [smem:[#allocation3 + $0x25]]
          %v1011 = vstv %s1010
          %v1012 = vmul.f32 %v1011, %v1009
          %v1013 = vmul.f32 %v1011, %v1008
          %v1014 = vadd.f32 %v992, %v1012
          %v1015 = vadd.f32 %v993, %v1013
          %s1016 = sld [smem:[#allocation3 + $0x56]]
          %v1017 = vstv %s1016
          %v1018 = vmul.f32 %v1017, %v1009
          %v1019 = vmul.f32 %v1017, %v1008
          %v1022 = vrot.slane %v1018, 1
          %v1023 = vrot.slane %v1019, 1
          %v1026 = vadd.f32 %v1014, %v1022
          %v1027 = vadd.f32 %v1015, %v1023
          %1028 = vst [vmem:[#allocation1] ss:$4 sm:$0xff] %v287
          %v1029 = vld.sshfl [vmem:[#allocation1 + $0x8] sm:$0xff pattern:$0x73625140]
          %v1030 = vld.sshfl [vmem:[#allocation1 + $0x10] sm:$0xff pattern:$0x73625140]
          %v1031 = vld.sshfl [vmem:[#allocation1 + $0x18] sm:$0xff pattern:$0x73625140]
          %1035 = vrot.lane.b32.xlu0 %v1029, 81
          %v1036 = vpop.permute.xlu0 %1035
          %1037 = vrot.lane.b32.xlu0 %v1030, 81
          %v1038 = vpop.permute.xlu0 %1037
          %1039 = vrot.lane.b32.xlu0 %v1031, 81
          %v1040 = vpop.permute.xlu0 %1039
          %vm1041 = vcmp.lt.s32.totalorder %v289, 81
          %v1042 = vsel %vm1041, %v1038, %v1040
          %v1043 = vsel %vm1041, %v1036, %v1038
          %s1044 = sld [smem:[#allocation3 + $0x2c]]
          %v1045 = vstv %s1044
          %v1046 = vmul.f32 %v1045, %v1043
          %v1047 = vmul.f32 %v1045, %v1042
          %v1048 = vadd.f32 %v1026, %v1046
          %v1049 = vadd.f32 %v1027, %v1047
          %s1050 = sld [smem:[#allocation3 + $0x5d]]
          %v1051 = vstv %s1050
          %v1052 = vmul.f32 %v1051, %v1043
          %v1053 = vmul.f32 %v1051, %v1042
          %v1056 = vrot.slane %v1052, 1
          %v1057 = vrot.slane %v1053, 1
          %v1060 = vadd.f32 %v1048, %v1056
          %v1061 = vadd.f32 %v1049, %v1057
          %v1062 = vsel %vm822, %v1060, 0.0
          %v1063 = vsel %vm823, %v1061, 0.0
          %v1064 = vadd.f32 %v814, %v1062
          %v1065 = vadd.f32 %v815, %v1063
          %vm1066 = vcmp.ge.s32.totalorder %v313, 0
          %vm1067 = vcmp.ge.s32.totalorder %v314, 0
          %vm1068 = vcmp.lt.s32.totalorder %v313, 16
          %vm1069 = vcmp.lt.s32.totalorder %v314, 16
          %vm1070 = vmand %vm1066, %vm1068
          %vm1071 = vmand %vm1067, %vm1069
          %1072 = vst [vmem:[#allocation1] ss:$4 sm:$0xff] %v287
          %v1073 = vld.sshfl [vmem:[#allocation1] sm:$0xff pattern:$0x73625140]
          %v1074 = vld.sshfl [vmem:[#allocation1 + $0x8] sm:$0xff pattern:$0x73625140]
          %v1075 = vld.sshfl [vmem:[#allocation1 + $0x10] sm:$0xff pattern:$0x73625140]
          %1079 = vrot.lane.b32.xlu0 %v1073, 48
          %v1080 = vpop.permute.xlu0 %1079
          %1081 = vrot.lane.b32.xlu0 %v1074, 48
          %v1082 = vpop.permute.xlu0 %1081
          %1083 = vrot.lane.b32.xlu0 %v1075, 48
          %v1084 = vpop.permute.xlu0 %1083
          %vm1085 = vcmp.lt.s32.totalorder %v289, 48
          %v1086 = vsel %vm1085, %v1082, %v1084
          %v1087 = vsel %vm1085, %v1080, %v1082
          %s1088 = sld [smem:[#allocation3 + $0x3]]
          %v1089 = vstv %s1088
          %v1090 = vmul.f32 %v1089, %v1087
          %v1091 = vmul.f32 %v1089, %v1086
          %v1092 = vadd.f32 %v1090, 0.0
          %v1093 = vadd.f32 %v1091, 0.0
          %s1094 = sld [smem:[#allocation3 + $0x34]]
          %v1095 = vstv %s1094
          %v1096 = vmul.f32 %v1095, %v1087
          %v1097 = vmul.f32 %v1095, %v1086
          %v1100 = vrot.slane %v1096, 1
          %v1101 = vrot.slane %v1097, 1
          %v1104 = vadd.f32 %v1092, %v1100
          %v1105 = vadd.f32 %v1093, %v1101
          %1106 = vst [vmem:[#allocation1] ss:$4 sm:$0xff] %v287
          %v1107 = vld.sshfl [vmem:[#allocation1] sm:$0xff pattern:$0x73625140]
          %v1108 = vld.sshfl [vmem:[#allocation1 + $0x8] sm:$0xff pattern:$0x73625140]
          %v1109 = vld.sshfl [vmem:[#allocation1 + $0x10] sm:$0xff pattern:$0x73625140]
          %1113 = vrot.lane.b32.xlu0 %v1107, 32
          %v1114 = vpop.permute.xlu0 %1113
          %1115 = vrot.lane.b32.xlu0 %v1108, 32
          %v1116 = vpop.permute.xlu0 %1115
          %1117 = vrot.lane.b32.xlu0 %v1109, 32
          %v1118 = vpop.permute.xlu0 %1117
          %vm1119 = vcmp.lt.s32.totalorder %v289, 32
          %v1120 = vsel %vm1119, %v1116, %v1118
          %v1121 = vsel %vm1119, %v1114, %v1116
          %s1122 = sld [smem:[#allocation3 + $0xa]]
          %v1123 = vstv %s1122
          %v1124 = vmul.f32 %v1123, %v1121
          %v1125 = vmul.f32 %v1123, %v1120
          %v1126 = vadd.f32 %v1104, %v1124
          %v1127 = vadd.f32 %v1105, %v1125
          %s1128 = sld [smem:[#allocation3 + $0x3b]]
          %v1129 = vstv %s1128
          %v1130 = vmul.f32 %v1129, %v1121
          %v1131 = vmul.f32 %v1129, %v1120
          %v1134 = vrot.slane %v1130, 1
          %v1135 = vrot.slane %v1131, 1
          %v1138 = vadd.f32 %v1126, %v1134
          %v1139 = vadd.f32 %v1127, %v1135
          %1140 = vst [vmem:[#allocation1] ss:$4 sm:$0xff] %v287
          %v1141 = vld.sshfl [vmem:[#allocation1] sm:$0xff pattern:$0x73625140]
          %v1142 = vld.sshfl [vmem:[#allocation1 + $0x8] sm:$0xff pattern:$0x73625140]
          %v1143 = vld.sshfl [vmem:[#allocation1 + $0x10] sm:$0xff pattern:$0x73625140]
          %1147 = vrot.lane.b32.xlu0 %v1141, 16
          %v1148 = vpop.permute.xlu0 %1147
          %1149 = vrot.lane.b32.xlu0 %v1142, 16
          %v1150 = vpop.permute.xlu0 %1149
          %1151 = vrot.lane.b32.xlu0 %v1143, 16
          %v1152 = vpop.permute.xlu0 %1151
          %vm1153 = vcmp.lt.s32.totalorder %v289, 16
          %v1154 = vsel %vm1153, %v1150, %v1152
          %v1155 = vsel %vm1153, %v1148, %v1150
          %s1156 = sld [smem:[#allocation3 + $0x11]]
          %v1157 = vstv %s1156
          %v1158 = vmul.f32 %v1157, %v1155
          %v1159 = vmul.f32 %v1157, %v1154
          %v1160 = vadd.f32 %v1138, %v1158
          %v1161 = vadd.f32 %v1139, %v1159
          %s1162 = sld [smem:[#allocation3 + $0x42]]
          %v1163 = vstv %s1162
          %v1164 = vmul.f32 %v1163, %v1155
          %v1165 = vmul.f32 %v1163, %v1154
          %v1168 = vrot.slane %v1164, 1
          %v1169 = vrot.slane %v1165, 1
          %v1172 = vadd.f32 %v1160, %v1168
          %v1173 = vadd.f32 %v1161, %v1169
          %1174 = vst [vmem:[#allocation1] ss:$4 sm:$0xff] %v287
          %v1175 = vld.sshfl [vmem:[#allocation1 + $0x8] sm:$0xff pattern:$0x73625140]
          %v1176 = vld.sshfl [vmem:[#allocation1 + $0x10] sm:$0xff pattern:$0x73625140]
          %s1179 = sld [smem:[#allocation3 + $0x18]]
          %v1180 = vstv %s1179
          %v1181 = vmul.f32 %v1180, %v1175
          %v1182 = vmul.f32 %v1180, %v1176
          %v1183 = vadd.f32 %v1172, %v1181
          %v1184 = vadd.f32 %v1173, %v1182
          %s1185 = sld [smem:[#allocation3 + $0x49]]
          %v1186 = vstv %s1185
          %v1187 = vmul.f32 %v1186, %v1175
          %v1188 = vmul.f32 %v1186, %v1176
          %v1191 = vrot.slane %v1187, 1
          %v1192 = vrot.slane %v1188, 1
          %v1195 = vadd.f32 %v1183, %v1191
          %v1196 = vadd.f32 %v1184, %v1192
          %1197 = vst [vmem:[#allocation1] ss:$4 sm:$0xff] %v287
          %v1198 = vld.sshfl [vmem:[#allocation1 + $0x8] sm:$0xff pattern:$0x73625140]
          %v1199 = vld.sshfl [vmem:[#allocation1 + $0x10] sm:$0xff pattern:$0x73625140]
          %v1200 = vld.sshfl [vmem:[#allocation1 + $0x18] sm:$0xff pattern:$0x73625140]
          %1204 = vrot.lane.b32.xlu0 %v1198, 112
          %v1205 = vpop.permute.xlu0 %1204
          %1206 = vrot.lane.b32.xlu0 %v1199, 112
          %v1207 = vpop.permute.xlu0 %1206
          %1208 = vrot.lane.b32.xlu0 %v1200, 112
          %v1209 = vpop.permute.xlu0 %1208
          %vm1210 = vcmp.lt.s32.totalorder %v289, 112
          %v1211 = vsel %vm1210, %v1207, %v1209
          %v1212 = vsel %vm1210, %v1205, %v1207
          %s1213 = sld [smem:[#allocation3 + $0x1f]]
          %v1214 = vstv %s1213
          %v1215 = vmul.f32 %v1214, %v1212
          %v1216 = vmul.f32 %v1214, %v1211
          %v1217 = vadd.f32 %v1195, %v1215
          %v1218 = vadd.f32 %v1196, %v1216
          %s1219 = sld [smem:[#allocation3 + $0x50]]
          %v1220 = vstv %s1219
          %v1221 = vmul.f32 %v1220, %v1212
          %v1222 = vmul.f32 %v1220, %v1211
          %v1225 = vrot.slane %v1221, 1
          %v1226 = vrot.slane %v1222, 1
          %v1229 = vadd.f32 %v1217, %v1225
          %v1230 = vadd.f32 %v1218, %v1226
          %1231 = vst [vmem:[#allocation1] ss:$4 sm:$0xff] %v287
          %v1232 = vld.sshfl [vmem:[#allocation1 + $0x8] sm:$0xff pattern:$0x73625140]
          %v1233 = vld.sshfl [vmem:[#allocation1 + $0x10] sm:$0xff pattern:$0x73625140]
          %v1234 = vld.sshfl [vmem:[#allocation1 + $0x18] sm:$0xff pattern:$0x73625140]
          %1238 = vrot.lane.b32.xlu0 %v1232, 96
          %v1239 = vpop.permute.xlu0 %1238
          %1240 = vrot.lane.b32.xlu0 %v1233, 96
          %v1241 = vpop.permute.xlu0 %1240
          %1242 = vrot.lane.b32.xlu0 %v1234, 96
          %v1243 = vpop.permute.xlu0 %1242
          %vm1244 = vcmp.lt.s32.totalorder %v289, 96
          %v1245 = vsel %vm1244, %v1241, %v1243
          %v1246 = vsel %vm1244, %v1239, %v1241
          %s1247 = sld [smem:[#allocation3 + $0x26]]
          %v1248 = vstv %s1247
          %v1249 = vmul.f32 %v1248, %v1246
          %v1250 = vmul.f32 %v1248, %v1245
          %v1251 = vadd.f32 %v1229, %v1249
          %v1252 = vadd.f32 %v1230, %v1250
          %s1253 = sld [smem:[#allocation3 + $0x57]]
          %v1254 = vstv %s1253
          %v1255 = vmul.f32 %v1254, %v1246
          %v1256 = vmul.f32 %v1254, %v1245
          %v1259 = vrot.slane %v1255, 1
          %v1260 = vrot.slane %v1256, 1
          %v1263 = vadd.f32 %v1251, %v1259
          %v1264 = vadd.f32 %v1252, %v1260
          %1265 = vst [vmem:[#allocation1] ss:$4 sm:$0xff] %v287
          %v1266 = vld.sshfl [vmem:[#allocation1 + $0x8] sm:$0xff pattern:$0x73625140]
          %v1267 = vld.sshfl [vmem:[#allocation1 + $0x10] sm:$0xff pattern:$0x73625140]
          %v1268 = vld.sshfl [vmem:[#allocation1 + $0x18] sm:$0xff pattern:$0x73625140]
          %1272 = vrot.lane.b32.xlu0 %v1266, 80
          %v1273 = vpop.permute.xlu0 %1272
          %1274 = vrot.lane.b32.xlu0 %v1267, 80
          %v1275 = vpop.permute.xlu0 %1274
          %1276 = vrot.lane.b32.xlu0 %v1268, 80
          %v1277 = vpop.permute.xlu0 %1276
          %vm1278 = vcmp.lt.s32.totalorder %v289, 80
          %v1279 = vsel %vm1278, %v1275, %v1277
          %v1280 = vsel %vm1278, %v1273, %v1275
          %s1281 = sld [smem:[#allocation3 + $0x2d]]
          %v1282 = vstv %s1281
          %v1283 = vmul.f32 %v1282, %v1280
          %v1284 = vmul.f32 %v1282, %v1279
          %v1285 = vadd.f32 %v1263, %v1283
          %v1286 = vadd.f32 %v1264, %v1284
          %s1287 = sld [smem:[#allocation3 + $0x5e]]
          %v1288 = vstv %s1287
          %v1289 = vmul.f32 %v1288, %v1280
          %v1290 = vmul.f32 %v1288, %v1279
          %v1293 = vrot.slane %v1289, 1
          %v1294 = vrot.slane %v1290, 1
          %v1297 = vadd.f32 %v1285, %v1293
          %v1298 = vadd.f32 %v1286, %v1294
          %v1299 = vsel %vm1070, %v1297, 0.0
          %v1300 = vsel %vm1071, %v1298, 0.0
          %v1301 = vadd.f32 %v1064, %v1299
          %v1302 = vadd.f32 %v1065, %v1300
          %v1303 = vadd.s32 %v313, 1
          %v1304 = vadd.s32 %v314, 1
          %vm1305 = vcmp.ge.s32.totalorder %v1303, 0
          %vm1306 = vcmp.ge.s32.totalorder %v1304, 0
          %vm1307 = vcmp.lt.s32.totalorder %v1303, 16
          %vm1308 = vcmp.lt.s32.totalorder %v1304, 16
          %vm1309 = vmand %vm1305, %vm1307
          %vm1310 = vmand %vm1306, %vm1308
          %1311 = vst [vmem:[#allocation1] ss:$4 sm:$0xff] %v287
          %v1312 = vld.sshfl [vmem:[#allocation1] sm:$0xff pattern:$0x73625140]
          %v1313 = vld.sshfl [vmem:[#allocation1 + $0x8] sm:$0xff pattern:$0x73625140]
          %v1314 = vld.sshfl [vmem:[#allocation1 + $0x10] sm:$0xff pattern:$0x73625140]
          %1318 = vrot.lane.b32.xlu0 %v1312, 47
          %v1319 = vpop.permute.xlu0 %1318
          %1320 = vrot.lane.b32.xlu0 %v1313, 47
          %v1321 = vpop.permute.xlu0 %1320
          %1322 = vrot.lane.b32.xlu0 %v1314, 47
          %v1323 = vpop.permute.xlu0 %1322
          %vm1324 = vcmp.lt.s32.totalorder %v289, 47
          %v1325 = vsel %vm1324, %v1321, %v1323
          %v1326 = vsel %vm1324, %v1319, %v1321
          %s1327 = sld [smem:[#allocation3 + $0x4]]
          %v1328 = vstv %s1327
          %v1329 = vmul.f32 %v1328, %v1326
          %v1330 = vmul.f32 %v1328, %v1325
          %v1331 = vadd.f32 %v1329, 0.0
          %v1332 = vadd.f32 %v1330, 0.0
          %s1333 = sld [smem:[#allocation3 + $0x35]]
          %v1334 = vstv %s1333
          %v1335 = vmul.f32 %v1334, %v1326
          %v1336 = vmul.f32 %v1334, %v1325
          %v1339 = vrot.slane %v1335, 1
          %v1340 = vrot.slane %v1336, 1
          %v1343 = vadd.f32 %v1331, %v1339
          %v1344 = vadd.f32 %v1332, %v1340
          %1345 = vst [vmem:[#allocation1] ss:$4 sm:$0xff] %v287
          %v1346 = vld.sshfl [vmem:[#allocation1] sm:$0xff pattern:$0x73625140]
          %v1347 = vld.sshfl [vmem:[#allocation1 + $0x8] sm:$0xff pattern:$0x73625140]
          %v1348 = vld.sshfl [vmem:[#allocation1 + $0x10] sm:$0xff pattern:$0x73625140]
          %1352 = vrot.lane.b32.xlu0 %v1346, 31
          %v1353 = vpop.permute.xlu0 %1352
          %1354 = vrot.lane.b32.xlu0 %v1347, 31
          %v1355 = vpop.permute.xlu0 %1354
          %1356 = vrot.lane.b32.xlu0 %v1348, 31
          %v1357 = vpop.permute.xlu0 %1356
          %vm1358 = vcmp.lt.s32.totalorder %v289, 31
          %v1359 = vsel %vm1358, %v1355, %v1357
          %v1360 = vsel %vm1358, %v1353, %v1355
          %s1361 = sld [smem:[#allocation3 + $0xb]]
          %v1362 = vstv %s1361
          %v1363 = vmul.f32 %v1362, %v1360
          %v1364 = vmul.f32 %v1362, %v1359
          %v1365 = vadd.f32 %v1343, %v1363
          %v1366 = vadd.f32 %v1344, %v1364
          %s1367 = sld [smem:[#allocation3 + $0x3c]]
          %v1368 = vstv %s1367
          %v1369 = vmul.f32 %v1368, %v1360
          %v1370 = vmul.f32 %v1368, %v1359
          %v1373 = vrot.slane %v1369, 1
          %v1374 = vrot.slane %v1370, 1
          %v1377 = vadd.f32 %v1365, %v1373
          %v1378 = vadd.f32 %v1366, %v1374
          %1379 = vst [vmem:[#allocation1] ss:$4 sm:$0xff] %v287
          %v1380 = vld.sshfl [vmem:[#allocation1] sm:$0xff pattern:$0x73625140]
          %v1381 = vld.sshfl [vmem:[#allocation1 + $0x8] sm:$0xff pattern:$0x73625140]
          %v1382 = vld.sshfl [vmem:[#allocation1 + $0x10] sm:$0xff pattern:$0x73625140]
          %1386 = vrot.lane.b32.xlu0 %v1380, 15
          %v1387 = vpop.permute.xlu0 %1386
          %1388 = vrot.lane.b32.xlu0 %v1381, 15
          %v1389 = vpop.permute.xlu0 %1388
          %1390 = vrot.lane.b32.xlu0 %v1382, 15
          %v1391 = vpop.permute.xlu0 %1390
          %vm1392 = vcmp.lt.s32.totalorder %v289, 15
          %v1393 = vsel %vm1392, %v1389, %v1391
          %v1394 = vsel %vm1392, %v1387, %v1389
          %s1395 = sld [smem:[#allocation3 + $0x12]]
          %v1396 = vstv %s1395
          %v1397 = vmul.f32 %v1396, %v1394
          %v1398 = vmul.f32 %v1396, %v1393
          %v1399 = vadd.f32 %v1377, %v1397
          %v1400 = vadd.f32 %v1378, %v1398
          %s1401 = sld [smem:[#allocation3 + $0x43]]
          %v1402 = vstv %s1401
          %v1403 = vmul.f32 %v1402, %v1394
          %v1404 = vmul.f32 %v1402, %v1393
          %v1407 = vrot.slane %v1403, 1
          %v1408 = vrot.slane %v1404, 1
          %v1411 = vadd.f32 %v1399, %v1407
          %v1412 = vadd.f32 %v1400, %v1408
          %1413 = vst [vmem:[#allocation1] ss:$4 sm:$0xff] %v287
          %v1414 = vld.sshfl [vmem:[#allocation1 + $0x8] sm:$0xff pattern:$0x73625140]
          %v1415 = vld.sshfl [vmem:[#allocation1 + $0x10] sm:$0xff pattern:$0x73625140]
          %v1416 = vld.sshfl [vmem:[#allocation1 + $0x18] sm:$0xff pattern:$0x73625140]
          %1420 = vrot.lane.b32.xlu0 %v1414, 127
          %v1421 = vpop.permute.xlu0 %1420
          %1422 = vrot.lane.b32.xlu0 %v1415, 127
          %v1423 = vpop.permute.xlu0 %1422
          %1424 = vrot.lane.b32.xlu0 %v1416, 127
          %v1425 = vpop.permute.xlu0 %1424
          %vm1426 = vcmp.lt.s32.totalorder %v289, 127
          %v1427 = vsel %vm1426, %v1423, %v1425
          %v1428 = vsel %vm1426, %v1421, %v1423
          %s1429 = sld [smem:[#allocation3 + $0x19]]
          %v1430 = vstv %s1429
          %v1431 = vmul.f32 %v1430, %v1428
          %v1432 = vmul.f32 %v1430, %v1427
          %v1433 = vadd.f32 %v1411, %v1431
          %v1434 = vadd.f32 %v1412, %v1432
          %s1435 = sld [smem:[#allocation3 + $0x4a]]
          %v1436 = vstv %s1435
          %v1437 = vmul.f32 %v1436, %v1428
          %v1438 = vmul.f32 %v1436, %v1427
          %v1441 = vrot.slane %v1437, 1
          %v1442 = vrot.slane %v1438, 1
          %v1445 = vadd.f32 %v1433, %v1441
          %v1446 = vadd.f32 %v1434, %v1442
          %1447 = vst [vmem:[#allocation1] ss:$4 sm:$0xff] %v287
          %v1448 = vld.sshfl [vmem:[#allocation1 + $0x8] sm:$0xff pattern:$0x73625140]
          %v1449 = vld.sshfl [vmem:[#allocation1 + $0x10] sm:$0xff pattern:$0x73625140]
          %v1450 = vld.sshfl [vmem:[#allocation1 + $0x18] sm:$0xff pattern:$0x73625140]
          %1454 = vrot.lane.b32.xlu0 %v1448, 111
          %v1455 = vpop.permute.xlu0 %1454
          %1456 = vrot.lane.b32.xlu0 %v1449, 111
          %v1457 = vpop.permute.xlu0 %1456
          %1458 = vrot.lane.b32.xlu0 %v1450, 111
          %v1459 = vpop.permute.xlu0 %1458
          %vm1460 = vcmp.lt.s32.totalorder %v289, 111
          %v1461 = vsel %vm1460, %v1457, %v1459
          %v1462 = vsel %vm1460, %v1455, %v1457
          %s1463 = sld [smem:[#allocation3 + $0x20]]
          %v1464 = vstv %s1463
          %v1465 = vmul.f32 %v1464, %v1462
          %v1466 = vmul.f32 %v1464, %v1461
          %v1467 = vadd.f32 %v1445, %v1465
          %v1468 = vadd.f32 %v1446, %v1466
          %s1469 = sld [smem:[#allocation3 + $0x51]]
          %v1470 = vstv %s1469
          %v1471 = vmul.f32 %v1470, %v1462
          %v1472 = vmul.f32 %v1470, %v1461
          %v1475 = vrot.slane %v1471, 1
          %v1476 = vrot.slane %v1472, 1
          %v1479 = vadd.f32 %v1467, %v1475
          %v1480 = vadd.f32 %v1468, %v1476
          %1481 = vst [vmem:[#allocation1] ss:$4 sm:$0xff] %v287
          %v1482 = vld.sshfl [vmem:[#allocation1 + $0x8] sm:$0xff pattern:$0x73625140]
          %v1483 = vld.sshfl [vmem:[#allocation1 + $0x10] sm:$0xff pattern:$0x73625140]
          %v1484 = vld.sshfl [vmem:[#allocation1 + $0x18] sm:$0xff pattern:$0x73625140]
          %1488 = vrot.lane.b32.xlu0 %v1482, 95
          %v1489 = vpop.permute.xlu0 %1488
          %1490 = vrot.lane.b32.xlu0 %v1483, 95
          %v1491 = vpop.permute.xlu0 %1490
          %1492 = vrot.lane.b32.xlu0 %v1484, 95
          %v1493 = vpop.permute.xlu0 %1492
          %vm1494 = vcmp.lt.s32.totalorder %v289, 95
          %v1495 = vsel %vm1494, %v1491, %v1493
          %v1496 = vsel %vm1494, %v1489, %v1491
          %s1497 = sld [smem:[#allocation3 + $0x27]]
          %v1498 = vstv %s1497
          %v1499 = vmul.f32 %v1498, %v1496
          %v1500 = vmul.f32 %v1498, %v1495
          %v1501 = vadd.f32 %v1479, %v1499
          %v1502 = vadd.f32 %v1480, %v1500
          %s1503 = sld [smem:[#allocation3 + $0x58]]
          %v1504 = vstv %s1503
          %v1505 = vmul.f32 %v1504, %v1496
          %v1506 = vmul.f32 %v1504, %v1495
          %v1509 = vrot.slane %v1505, 1
          %v1510 = vrot.slane %v1506, 1
          %v1513 = vadd.f32 %v1501, %v1509
          %v1514 = vadd.f32 %v1502, %v1510
          %1515 = vst [vmem:[#allocation1] ss:$4 sm:$0xff] %v287
          %v1516 = vld.sshfl [vmem:[#allocation1 + $0x8] sm:$0xff pattern:$0x73625140]
          %v1517 = vld.sshfl [vmem:[#allocation1 + $0x10] sm:$0xff pattern:$0x73625140]
          %v1518 = vld.sshfl [vmem:[#allocation1 + $0x18] sm:$0xff pattern:$0x73625140]
          %1522 = vrot.lane.b32.xlu0 %v1516, 79
          %v1523 = vpop.permute.xlu0 %1522
          %1524 = vrot.lane.b32.xlu0 %v1517, 79
          %v1525 = vpop.permute.xlu0 %1524
          %1526 = vrot.lane.b32.xlu0 %v1518, 79
          %v1527 = vpop.permute.xlu0 %1526
          %vm1528 = vcmp.lt.s32.totalorder %v289, 79
          %v1529 = vsel %vm1528, %v1525, %v1527
          %v1530 = vsel %vm1528, %v1523, %v1525
          %s1531 = sld [smem:[#allocation3 + $0x2e]]
          %v1532 = vstv %s1531
          %v1533 = vmul.f32 %v1532, %v1530
          %v1534 = vmul.f32 %v1532, %v1529
          %v1535 = vadd.f32 %v1513, %v1533
          %v1536 = vadd.f32 %v1514, %v1534
          %s1537 = sld [smem:[#allocation3 + $0x5f]]
          %v1538 = vstv %s1537
          %v1539 = vmul.f32 %v1538, %v1530
          %v1540 = vmul.f32 %v1538, %v1529
          %v1543 = vrot.slane %v1539, 1
          %v1544 = vrot.slane %v1540, 1
          %v1547 = vadd.f32 %v1535, %v1543
          %v1548 = vadd.f32 %v1536, %v1544
          %v1549 = vsel %vm1309, %v1547, 0.0
          %v1550 = vsel %vm1310, %v1548, 0.0
          %v1551 = vadd.f32 %v1301, %v1549
          %v1552 = vadd.f32 %v1302, %v1550
          %v1553 = vadd.s32 %v313, 2
          %v1554 = vadd.s32 %v314, 2
          %vm1555 = vcmp.ge.s32.totalorder %v1553, 0
          %vm1556 = vcmp.ge.s32.totalorder %v1554, 0
          %vm1557 = vcmp.lt.s32.totalorder %v1553, 16
          %vm1558 = vcmp.lt.s32.totalorder %v1554, 16
          %vm1559 = vmand %vm1555, %vm1557
          %vm1560 = vmand %vm1556, %vm1558
          %1561 = vst [vmem:[#allocation1] ss:$4 sm:$0xff] %v287
          %v1562 = vld.sshfl [vmem:[#allocation1] sm:$0xff pattern:$0x73625140]
          %v1563 = vld.sshfl [vmem:[#allocation1 + $0x8] sm:$0xff pattern:$0x73625140]
          %v1564 = vld.sshfl [vmem:[#allocation1 + $0x10] sm:$0xff pattern:$0x73625140]
          %1568 = vrot.lane.b32.xlu0 %v1562, 46
          %v1569 = vpop.permute.xlu0 %1568
          %1570 = vrot.lane.b32.xlu0 %v1563, 46
          %v1571 = vpop.permute.xlu0 %1570
          %1572 = vrot.lane.b32.xlu0 %v1564, 46
          %v1573 = vpop.permute.xlu0 %1572
          %vm1574 = vcmp.lt.s32.totalorder %v289, 46
          %v1575 = vsel %vm1574, %v1571, %v1573
          %v1576 = vsel %vm1574, %v1569, %v1571
          %s1577 = sld [smem:[#allocation3 + $0x5]]
          %v1578 = vstv %s1577
          %v1579 = vmul.f32 %v1578, %v1576
          %v1580 = vmul.f32 %v1578, %v1575
          %v1581 = vadd.f32 %v1579, 0.0
          %v1582 = vadd.f32 %v1580, 0.0
          %s1583 = sld [smem:[#allocation3 + $0x36]]
          %v1584 = vstv %s1583
          %v1585 = vmul.f32 %v1584, %v1576
          %v1586 = vmul.f32 %v1584, %v1575
          %v1589 = vrot.slane %v1585, 1
          %v1590 = vrot.slane %v1586, 1
          %v1593 = vadd.f32 %v1581, %v1589
          %v1594 = vadd.f32 %v1582, %v1590
          %1595 = vst [vmem:[#allocation1] ss:$4 sm:$0xff] %v287
          %v1596 = vld.sshfl [vmem:[#allocation1] sm:$0xff pattern:$0x73625140]
          %v1597 = vld.sshfl [vmem:[#allocation1 + $0x8] sm:$0xff pattern:$0x73625140]
          %v1598 = vld.sshfl [vmem:[#allocation1 + $0x10] sm:$0xff pattern:$0x73625140]
          %1602 = vrot.lane.b32.xlu0 %v1596, 30
          %v1603 = vpop.permute.xlu0 %1602
          %1604 = vrot.lane.b32.xlu0 %v1597, 30
          %v1605 = vpop.permute.xlu0 %1604
          %1606 = vrot.lane.b32.xlu0 %v1598, 30
          %v1607 = vpop.permute.xlu0 %1606
          %vm1608 = vcmp.lt.s32.totalorder %v289, 30
          %v1609 = vsel %vm1608, %v1605, %v1607
          %v1610 = vsel %vm1608, %v1603, %v1605
          %s1611 = sld [smem:[#allocation3 + $0xc]]
          %v1612 = vstv %s1611
          %v1613 = vmul.f32 %v1612, %v1610
          %v1614 = vmul.f32 %v1612, %v1609
          %v1615 = vadd.f32 %v1593, %v1613
          %v1616 = vadd.f32 %v1594, %v1614
          %s1617 = sld [smem:[#allocation3 + $0x3d]]
          %v1618 = vstv %s1617
          %v1619 = vmul.f32 %v1618, %v1610
          %v1620 = vmul.f32 %v1618, %v1609
          %v1623 = vrot.slane %v1619, 1
          %v1624 = vrot.slane %v1620, 1
          %v1627 = vadd.f32 %v1615, %v1623
          %v1628 = vadd.f32 %v1616, %v1624
          %1629 = vst [vmem:[#allocation1] ss:$4 sm:$0xff] %v287
          %v1630 = vld.sshfl [vmem:[#allocation1] sm:$0xff pattern:$0x73625140]
          %v1631 = vld.sshfl [vmem:[#allocation1 + $0x8] sm:$0xff pattern:$0x73625140]
          %v1632 = vld.sshfl [vmem:[#allocation1 + $0x10] sm:$0xff pattern:$0x73625140]
          %1636 = vrot.lane.b32.xlu0 %v1630, 14
          %v1637 = vpop.permute.xlu0 %1636
          %1638 = vrot.lane.b32.xlu0 %v1631, 14
          %v1639 = vpop.permute.xlu0 %1638
          %1640 = vrot.lane.b32.xlu0 %v1632, 14
          %v1641 = vpop.permute.xlu0 %1640
          %vm1642 = vcmp.lt.s32.totalorder %v289, 14
          %v1643 = vsel %vm1642, %v1639, %v1641
          %v1644 = vsel %vm1642, %v1637, %v1639
          %s1645 = sld [smem:[#allocation3 + $0x13]]
          %v1646 = vstv %s1645
          %v1647 = vmul.f32 %v1646, %v1644
          %v1648 = vmul.f32 %v1646, %v1643
          %v1649 = vadd.f32 %v1627, %v1647
          %v1650 = vadd.f32 %v1628, %v1648
          %s1651 = sld [smem:[#allocation3 + $0x44]]
          %v1652 = vstv %s1651
          %v1653 = vmul.f32 %v1652, %v1644
          %v1654 = vmul.f32 %v1652, %v1643
          %v1657 = vrot.slane %v1653, 1
          %v1658 = vrot.slane %v1654, 1
          %v1661 = vadd.f32 %v1649, %v1657
          %v1662 = vadd.f32 %v1650, %v1658
          %1663 = vst [vmem:[#allocation1] ss:$4 sm:$0xff] %v287
          %v1664 = vld.sshfl [vmem:[#allocation1 + $0x8] sm:$0xff pattern:$0x73625140]
          %v1665 = vld.sshfl [vmem:[#allocation1 + $0x10] sm:$0xff pattern:$0x73625140]
          %v1666 = vld.sshfl [vmem:[#allocation1 + $0x18] sm:$0xff pattern:$0x73625140]
          %1670 = vrot.lane.b32.xlu0 %v1664, 126
          %v1671 = vpop.permute.xlu0 %1670
          %1672 = vrot.lane.b32.xlu0 %v1665, 126
          %v1673 = vpop.permute.xlu0 %1672
          %1674 = vrot.lane.b32.xlu0 %v1666, 126
          %v1675 = vpop.permute.xlu0 %1674
          %vm1676 = vcmp.lt.s32.totalorder %v289, 126
          %v1677 = vsel %vm1676, %v1673, %v1675
          %v1678 = vsel %vm1676, %v1671, %v1673
          %s1679 = sld [smem:[#allocation3 + $0x1a]]
          %v1680 = vstv %s1679
          %v1681 = vmul.f32 %v1680, %v1678
          %v1682 = vmul.f32 %v1680, %v1677
          %v1683 = vadd.f32 %v1661, %v1681
          %v1684 = vadd.f32 %v1662, %v1682
          %s1685 = sld [smem:[#allocation3 + $0x4b]]
          %v1686 = vstv %s1685
          %v1687 = vmul.f32 %v1686, %v1678
          %v1688 = vmul.f32 %v1686, %v1677
          %v1691 = vrot.slane %v1687, 1
          %v1692 = vrot.slane %v1688, 1
          %v1695 = vadd.f32 %v1683, %v1691
          %v1696 = vadd.f32 %v1684, %v1692
          %1697 = vst [vmem:[#allocation1] ss:$4 sm:$0xff] %v287
          %v1698 = vld.sshfl [vmem:[#allocation1 + $0x8] sm:$0xff pattern:$0x73625140]
          %v1699 = vld.sshfl [vmem:[#allocation1 + $0x10] sm:$0xff pattern:$0x73625140]
          %v1700 = vld.sshfl [vmem:[#allocation1 + $0x18] sm:$0xff pattern:$0x73625140]
          %1704 = vrot.lane.b32.xlu0 %v1698, 110
          %v1705 = vpop.permute.xlu0 %1704
          %1706 = vrot.lane.b32.xlu0 %v1699, 110
          %v1707 = vpop.permute.xlu0 %1706
          %1708 = vrot.lane.b32.xlu0 %v1700, 110
          %v1709 = vpop.permute.xlu0 %1708
          %vm1710 = vcmp.lt.s32.totalorder %v289, 110
          %v1711 = vsel %vm1710, %v1707, %v1709
          %v1712 = vsel %vm1710, %v1705, %v1707
          %s1713 = sld [smem:[#allocation3 + $0x21]]
          %v1714 = vstv %s1713
          %v1715 = vmul.f32 %v1714, %v1712
          %v1716 = vmul.f32 %v1714, %v1711
          %v1717 = vadd.f32 %v1695, %v1715
          %v1718 = vadd.f32 %v1696, %v1716
          %s1719 = sld [smem:[#allocation3 + $0x52]]
          %v1720 = vstv %s1719
          %v1721 = vmul.f32 %v1720, %v1712
          %v1722 = vmul.f32 %v1720, %v1711
          %v1725 = vrot.slane %v1721, 1
          %v1726 = vrot.slane %v1722, 1
          %v1729 = vadd.f32 %v1717, %v1725
          %v1730 = vadd.f32 %v1718, %v1726
          %1731 = vst [vmem:[#allocation1] ss:$4 sm:$0xff] %v287
          %v1732 = vld.sshfl [vmem:[#allocation1 + $0x8] sm:$0xff pattern:$0x73625140]
          %v1733 = vld.sshfl [vmem:[#allocation1 + $0x10] sm:$0xff pattern:$0x73625140]
          %v1734 = vld.sshfl [vmem:[#allocation1 + $0x18] sm:$0xff pattern:$0x73625140]
          %1738 = vrot.lane.b32.xlu0 %v1732, 94
          %v1739 = vpop.permute.xlu0 %1738
          %1740 = vrot.lane.b32.xlu0 %v1733, 94
          %v1741 = vpop.permute.xlu0 %1740
          %1742 = vrot.lane.b32.xlu0 %v1734, 94
          %v1743 = vpop.permute.xlu0 %1742
          %vm1744 = vcmp.lt.s32.totalorder %v289, 94
          %v1745 = vsel %vm1744, %v1741, %v1743
          %v1746 = vsel %vm1744, %v1739, %v1741
          %s1747 = sld [smem:[#allocation3 + $0x28]]
          %v1748 = vstv %s1747
          %v1749 = vmul.f32 %v1748, %v1746
          %v1750 = vmul.f32 %v1748, %v1745
          %v1751 = vadd.f32 %v1729, %v1749
          %v1752 = vadd.f32 %v1730, %v1750
          %s1753 = sld [smem:[#allocation3 + $0x59]]
          %v1754 = vstv %s1753
          %v1755 = vmul.f32 %v1754, %v1746
          %v1756 = vmul.f32 %v1754, %v1745
          %v1759 = vrot.slane %v1755, 1
          %v1760 = vrot.slane %v1756, 1
          %v1763 = vadd.f32 %v1751, %v1759
          %v1764 = vadd.f32 %v1752, %v1760
          %1765 = vst [vmem:[#allocation1] ss:$4 sm:$0xff] %v287
          %v1766 = vld.sshfl [vmem:[#allocation1 + $0x8] sm:$0xff pattern:$0x73625140]
          %v1767 = vld.sshfl [vmem:[#allocation1 + $0x10] sm:$0xff pattern:$0x73625140]
          %v1768 = vld.sshfl [vmem:[#allocation1 + $0x18] sm:$0xff pattern:$0x73625140]
          %1772 = vrot.lane.b32.xlu0 %v1766, 78
          %v1773 = vpop.permute.xlu0 %1772
          %1774 = vrot.lane.b32.xlu0 %v1767, 78
          %v1775 = vpop.permute.xlu0 %1774
          %1776 = vrot.lane.b32.xlu0 %v1768, 78
          %v1777 = vpop.permute.xlu0 %1776
          %vm1778 = vcmp.lt.s32.totalorder %v289, 78
          %v1779 = vsel %vm1778, %v1775, %v1777
          %v1780 = vsel %vm1778, %v1773, %v1775
          %s1781 = sld [smem:[#allocation3 + $0x2f]]
          %v1782 = vstv %s1781
          %v1783 = vmul.f32 %v1782, %v1780
          %v1784 = vmul.f32 %v1782, %v1779
          %v1785 = vadd.f32 %v1763, %v1783
          %v1786 = vadd.f32 %v1764, %v1784
          %s1787 = sld [smem:[#allocation3 + $0x60]]
          %v1788 = vstv %s1787
          %v1789 = vmul.f32 %v1788, %v1780
          %v1790 = vmul.f32 %v1788, %v1779
          %v1793 = vrot.slane %v1789, 1
          %v1794 = vrot.slane %v1790, 1
          %v1797 = vadd.f32 %v1785, %v1793
          %v1798 = vadd.f32 %v1786, %v1794
          %v1799 = vsel %vm1559, %v1797, 0.0
          %v1800 = vsel %vm1560, %v1798, 0.0
          %v1801 = vadd.f32 %v1551, %v1799
          %v1802 = vadd.f32 %v1552, %v1800
          %v1803 = vadd.s32 %v313, 3
          %v1804 = vadd.s32 %v314, 3
          %vm1805 = vcmp.ge.s32.totalorder %v1803, 0
          %vm1806 = vcmp.ge.s32.totalorder %v1804, 0
          %vm1807 = vcmp.lt.s32.totalorder %v1803, 16
          %vm1808 = vcmp.lt.s32.totalorder %v1804, 16
          %vm1809 = vmand %vm1805, %vm1807
          %vm1810 = vmand %vm1806, %vm1808
          %1811 = vst [vmem:[#allocation1] ss:$4 sm:$0xff] %v287
          %v1812 = vld.sshfl [vmem:[#allocation1] sm:$0xff pattern:$0x73625140]
          %v1813 = vld.sshfl [vmem:[#allocation1 + $0x8] sm:$0xff pattern:$0x73625140]
          %v1814 = vld.sshfl [vmem:[#allocation1 + $0x10] sm:$0xff pattern:$0x73625140]
          %1818 = vrot.lane.b32.xlu0 %v1812, 45
          %v1819 = vpop.permute.xlu0 %1818
          %1820 = vrot.lane.b32.xlu0 %v1813, 45
          %v1821 = vpop.permute.xlu0 %1820
          %1822 = vrot.lane.b32.xlu0 %v1814, 45
          %v1823 = vpop.permute.xlu0 %1822
          %vm1824 = vcmp.lt.s32.totalorder %v289, 45
          %v1825 = vsel %vm1824, %v1821, %v1823
          %v1826 = vsel %vm1824, %v1819, %v1821
          %s1827 = sld [smem:[#allocation3 + $0x6]]
          %v1828 = vstv %s1827
          %v1829 = vmul.f32 %v1828, %v1826
          %v1830 = vmul.f32 %v1828, %v1825
          %v1831 = vadd.f32 %v1829, 0.0
          %v1832 = vadd.f32 %v1830, 0.0
          %s1833 = sld [smem:[#allocation3 + $0x37]]
          %v1834 = vstv %s1833
          %v1835 = vmul.f32 %v1834, %v1826
          %v1836 = vmul.f32 %v1834, %v1825
          %v1839 = vrot.slane %v1835, 1
          %v1840 = vrot.slane %v1836, 1
          %v1843 = vadd.f32 %v1831, %v1839
          %v1844 = vadd.f32 %v1832, %v1840
          %1845 = vst [vmem:[#allocation1] ss:$4 sm:$0xff] %v287
          %v1846 = vld.sshfl [vmem:[#allocation1] sm:$0xff pattern:$0x73625140]
          %v1847 = vld.sshfl [vmem:[#allocation1 + $0x8] sm:$0xff pattern:$0x73625140]
          %v1848 = vld.sshfl [vmem:[#allocation1 + $0x10] sm:$0xff pattern:$0x73625140]
          %1852 = vrot.lane.b32.xlu0 %v1846, 29
          %v1853 = vpop.permute.xlu0 %1852
          %1854 = vrot.lane.b32.xlu0 %v1847, 29
          %v1855 = vpop.permute.xlu0 %1854
          %1856 = vrot.lane.b32.xlu0 %v1848, 29
          %v1857 = vpop.permute.xlu0 %1856
          %vm1858 = vcmp.lt.s32.totalorder %v289, 29
          %v1859 = vsel %vm1858, %v1855, %v1857
          %v1860 = vsel %vm1858, %v1853, %v1855
          %s1861 = sld [smem:[#allocation3 + $0xd]]
          %v1862 = vstv %s1861
          %v1863 = vmul.f32 %v1862, %v1860
          %v1864 = vmul.f32 %v1862, %v1859
          %v1865 = vadd.f32 %v1843, %v1863
          %v1866 = vadd.f32 %v1844, %v1864
          %s1867 = sld [smem:[#allocation3 + $0x3e]]
          %v1868 = vstv %s1867
          %v1869 = vmul.f32 %v1868, %v1860
          %v1870 = vmul.f32 %v1868, %v1859
          %v1873 = vrot.slane %v1869, 1
          %v1874 = vrot.slane %v1870, 1
          %v1877 = vadd.f32 %v1865, %v1873
          %v1878 = vadd.f32 %v1866, %v1874
          %1879 = vst [vmem:[#allocation1] ss:$4 sm:$0xff] %v287
          %v1880 = vld.sshfl [vmem:[#allocation1] sm:$0xff pattern:$0x73625140]
          %v1881 = vld.sshfl [vmem:[#allocation1 + $0x8] sm:$0xff pattern:$0x73625140]
          %v1882 = vld.sshfl [vmem:[#allocation1 + $0x10] sm:$0xff pattern:$0x73625140]
          %1886 = vrot.lane.b32.xlu0 %v1880, 13
          %v1887 = vpop.permute.xlu0 %1886
          %1888 = vrot.lane.b32.xlu0 %v1881, 13
          %v1889 = vpop.permute.xlu0 %1888
          %1890 = vrot.lane.b32.xlu0 %v1882, 13
          %v1891 = vpop.permute.xlu0 %1890
          %vm1892 = vcmp.lt.s32.totalorder %v289, 13
          %v1893 = vsel %vm1892, %v1889, %v1891
          %v1894 = vsel %vm1892, %v1887, %v1889
          %s1895 = sld [smem:[#allocation3 + $0x14]]
          %v1896 = vstv %s1895
          %v1897 = vmul.f32 %v1896, %v1894
          %v1898 = vmul.f32 %v1896, %v1893
          %v1899 = vadd.f32 %v1877, %v1897
          %v1900 = vadd.f32 %v1878, %v1898
          %s1901 = sld [smem:[#allocation3 + $0x45]]
          %v1902 = vstv %s1901
          %v1903 = vmul.f32 %v1902, %v1894
          %v1904 = vmul.f32 %v1902, %v1893
          %v1907 = vrot.slane %v1903, 1
          %v1908 = vrot.slane %v1904, 1
          %v1911 = vadd.f32 %v1899, %v1907
          %v1912 = vadd.f32 %v1900, %v1908
          %1913 = vst [vmem:[#allocation1] ss:$4 sm:$0xff] %v287
          %v1914 = vld.sshfl [vmem:[#allocation1 + $0x8] sm:$0xff pattern:$0x73625140]
          %v1915 = vld.sshfl [vmem:[#allocation1 + $0x10] sm:$0xff pattern:$0x73625140]
          %v1916 = vld.sshfl [vmem:[#allocation1 + $0x18] sm:$0xff pattern:$0x73625140]
          %1920 = vrot.lane.b32.xlu0 %v1914, 125
          %v1921 = vpop.permute.xlu0 %1920
          %1922 = vrot.lane.b32.xlu0 %v1915, 125
          %v1923 = vpop.permute.xlu0 %1922
          %1924 = vrot.lane.b32.xlu0 %v1916, 125
          %v1925 = vpop.permute.xlu0 %1924
          %vm1926 = vcmp.lt.s32.totalorder %v289, 125
          %v1927 = vsel %vm1926, %v1923, %v1925
          %v1928 = vsel %vm1926, %v1921, %v1923
          %s1929 = sld [smem:[#allocation3 + $0x1b]]
          %v1930 = vstv %s1929
          %v1931 = vmul.f32 %v1930, %v1928
          %v1932 = vmul.f32 %v1930, %v1927
          %v1933 = vadd.f32 %v1911, %v1931
          %v1934 = vadd.f32 %v1912, %v1932
          %s1935 = sld [smem:[#allocation3 + $0x4c]]
          %v1936 = vstv %s1935
          %v1937 = vmul.f32 %v1936, %v1928
          %v1938 = vmul.f32 %v1936, %v1927
          %v1941 = vrot.slane %v1937, 1
          %v1942 = vrot.slane %v1938, 1
          %v1945 = vadd.f32 %v1933, %v1941
          %v1946 = vadd.f32 %v1934, %v1942
          %1947 = vst [vmem:[#allocation1] ss:$4 sm:$0xff] %v287
          %v1948 = vld.sshfl [vmem:[#allocation1 + $0x8] sm:$0xff pattern:$0x73625140]
          %v1949 = vld.sshfl [vmem:[#allocation1 + $0x10] sm:$0xff pattern:$0x73625140]
          %v1950 = vld.sshfl [vmem:[#allocation1 + $0x18] sm:$0xff pattern:$0x73625140]
          %1954 = vrot.lane.b32.xlu0 %v1948, 109
          %v1955 = vpop.permute.xlu0 %1954
          %1956 = vrot.lane.b32.xlu0 %v1949, 109
          %v1957 = vpop.permute.xlu0 %1956
          %1958 = vrot.lane.b32.xlu0 %v1950, 109
          %v1959 = vpop.permute.xlu0 %1958
          %vm1960 = vcmp.lt.s32.totalorder %v289, 109
          %v1961 = vsel %vm1960, %v1957, %v1959
          %v1962 = vsel %vm1960, %v1955, %v1957
          %s1963 = sld [smem:[#allocation3 + $0x22]]
          %v1964 = vstv %s1963
          %v1965 = vmul.f32 %v1964, %v1962
          %v1966 = vmul.f32 %v1964, %v1961
          %v1967 = vadd.f32 %v1945, %v1965
          %v1968 = vadd.f32 %v1946, %v1966
          %s1969 = sld [smem:[#allocation3 + $0x53]]
          %v1970 = vstv %s1969
          %v1971 = vmul.f32 %v1970, %v1962
          %v1972 = vmul.f32 %v1970, %v1961
          %v1975 = vrot.slane %v1971, 1
          %v1976 = vrot.slane %v1972, 1
          %v1979 = vadd.f32 %v1967, %v1975
          %v1980 = vadd.f32 %v1968, %v1976
          %1981 = vst [vmem:[#allocation1] ss:$4 sm:$0xff] %v287
          %v1982 = vld.sshfl [vmem:[#allocation1 + $0x8] sm:$0xff pattern:$0x73625140]
          %v1983 = vld.sshfl [vmem:[#allocation1 + $0x10] sm:$0xff pattern:$0x73625140]
          %v1984 = vld.sshfl [vmem:[#allocation1 + $0x18] sm:$0xff pattern:$0x73625140]
          %1988 = vrot.lane.b32.xlu0 %v1982, 93
          %v1989 = vpop.permute.xlu0 %1988
          %1990 = vrot.lane.b32.xlu0 %v1983, 93
          %v1991 = vpop.permute.xlu0 %1990
          %1992 = vrot.lane.b32.xlu0 %v1984, 93
          %v1993 = vpop.permute.xlu0 %1992
          %vm1994 = vcmp.lt.s32.totalorder %v289, 93
          %v1995 = vsel %vm1994, %v1991, %v1993
          %v1996 = vsel %vm1994, %v1989, %v1991
          %s1997 = sld [smem:[#allocation3 + $0x29]]
          %v1998 = vstv %s1997
          %v1999 = vmul.f32 %v1998, %v1996
          %v2000 = vmul.f32 %v1998, %v1995
          %v2001 = vadd.f32 %v1979, %v1999
          %v2002 = vadd.f32 %v1980, %v2000
          %s2003 = sld [smem:[#allocation3 + $0x5a]]
          %v2004 = vstv %s2003
          %v2005 = vmul.f32 %v2004, %v1996
          %v2006 = vmul.f32 %v2004, %v1995
          %v2009 = vrot.slane %v2005, 1
          %v2010 = vrot.slane %v2006, 1
          %v2013 = vadd.f32 %v2001, %v2009
          %v2014 = vadd.f32 %v2002, %v2010
          %2015 = vst [vmem:[#allocation1] ss:$4 sm:$0xff] %v287
          %v2016 = vld.sshfl [vmem:[#allocation1 + $0x8] sm:$0xff pattern:$0x73625140]
          %v2017 = vld.sshfl [vmem:[#allocation1 + $0x10] sm:$0xff pattern:$0x73625140]
          %v2018 = vld.sshfl [vmem:[#allocation1 + $0x18] sm:$0xff pattern:$0x73625140]
          %2022 = vrot.lane.b32.xlu0 %v2016, 77
          %v2023 = vpop.permute.xlu0 %2022
          %2024 = vrot.lane.b32.xlu0 %v2017, 77
          %v2025 = vpop.permute.xlu0 %2024
          %2026 = vrot.lane.b32.xlu0 %v2018, 77
          %v2027 = vpop.permute.xlu0 %2026
          %vm2028 = vcmp.lt.s32.totalorder %v289, 77
          %v2029 = vsel %vm2028, %v2025, %v2027
          %v2030 = vsel %vm2028, %v2023, %v2025
          %s2031 = sld [smem:[#allocation3 + $0x30]]
          %v2032 = vstv %s2031
          %v2033 = vmul.f32 %v2032, %v2030
          %v2034 = vmul.f32 %v2032, %v2029
          %v2035 = vadd.f32 %v2013, %v2033
          %v2036 = vadd.f32 %v2014, %v2034
          %s2037 = sld [smem:[#allocation3 + $0x61]]
          %v2038 = vstv %s2037
          %v2039 = vmul.f32 %v2038, %v2030
          %v2040 = vmul.f32 %v2038, %v2029
          %v2043 = vrot.slane %v2039, 1
          %v2044 = vrot.slane %v2040, 1
          %v2047 = vadd.f32 %v2035, %v2043
          %v2048 = vadd.f32 %v2036, %v2044
          %v2049 = vsel %vm1809, %v2047, 0.0
          %v2050 = vsel %vm1810, %v2048, 0.0
          %v2051 = vadd.f32 %v1801, %v2049
          %v2052 = vadd.f32 %v1802, %v2050
          %v2053 = vxor.u32 %v2051, 2147483648
          %v2054 = vxor.u32 %v2052, 2147483648
          %v2055 = vmul.f32 %v2053, 1.442695
          %v2056 = vpow.pop %v2055
          %v2057 = vmul.f32 %v2054, 1.442695
          %v2058 = vpow.pop %v2057
          %v2059 = vadd.f32 %v2056, 1.0
          %v2060 = vadd.f32 %v2058, 1.0
          %v2061 = vrcp.pop %v2059
          %v2062 = vmul.f32 %v2059, %v2061
          %v2063 = vsub.f32 1.0, %v2062
          %v2064 = vmul.f32 %v2061, %v2063
          %v2065 = vadd.f32 %v2061, %v2064
          %vm2066 = vweird.f32 %v2059
          %vm2067 = vweird.f32 %v2061
          %vm2068 = vmor %vm2066, %vm2067
          %v2069 = vsel %vm2068, %v2061, %v2065
          %v2070 = vand.u32 2147483647, %v2059
          %vm2071 = vcmp.eq.f32.partialorder %v2070, 8.507059e+37
          %v2072 = vand.u32 %v2059, 2147483648
          %v2073 = vor.u32 1.1754944e-38, %v2072
          %v2074 = vsel %vm2071, %v2073, %v2069
          %v2075 = vmul.f32 1.0, %v2074
          %v2076 = vrcp.pop %v2060
          %v2077 = vmul.f32 %v2060, %v2076
          %v2078 = vsub.f32 1.0, %v2077
          %v2079 = vmul.f32 %v2076, %v2078
          %v2080 = vadd.f32 %v2076, %v2079
          %vm2081 = vweird.f32 %v2060
          %vm2082 = vweird.f32 %v2076
          %vm2083 = vmor %vm2081, %vm2082
          %v2084 = vsel %vm2083, %v2076, %v2080
          %v2085 = vand.u32 2147483647, %v2060
          %vm2086 = vcmp.eq.f32.partialorder %v2085, 8.507059e+37
          %v2087 = vand.u32 %v2060, 2147483648
          %v2088 = vor.u32 1.1754944e-38, %v2087
          %v2089 = vsel %vm2086, %v2088, %v2084
          %v2090 = vmul.f32 1.0, %v2089
          %v2093 = vrot.slane %v2090, 7
          %vm2094 = vcmask 1040384
          %v2095 = vsel %vm2094, %v2075, %v2093
          %v2097 = vlaneseq
          %vm2098 = vcmp.ge.s32.totalorder %v2097, 0
          %vm2099 = vcmp.lt.s32.totalorder %v2097, 256
          %vm2100 = vmand %vm2098, %vm2099
          %2101 = vst.msk [vmem:[%s191] sm:$0x3] %vm2100, %v2095
        $region48: #{tpu_custom_call.1} parent=27 // pred_fallthru
          _
        %s2102 = sand.u32 %s89, 1
        %s2103 = scalar_lea.sflag [#allocation5], %s2102
        %s2104 = sand.u32 %s89, 1
        %s2105 = smul.addr %s2104, 2
        %s2106 = scalar_lea.vmem [#allocation8], %s2105
        // Predicated region
        $region49: #{tpu_custom_call.1} parent=27 // pred_check
          %p2107 = pneg %p99
        $region50: #{tpu_custom_call.1} parent=27 // pred_check_branch
          %2109 = sbr.rel (%p2107) target = $region52
        $region51: #{tpu_custom_call.1} parent=27 // pred_region
          %2111 = vsyncadd %s2103, 0
          %s2112 = smul.addr %s24, 2
          %s2113 = scalar_lea.hbm %s2, %s2112
          %s2115 = sshll.u32 %s2106, 4
          %s2116 = int_to_ptr.vmem [resolvable:$true] %s2115
          %s2117 = sshll.u32 %s2113, 4
          %s2118 = int_to_ptr.hbm [resolvable:$true] %s2117
          %2120 = dma.vmem_to_hbm [thread:$0]  %s2116, 32, %s2118, %s2103
        $region52: #{tpu_custom_call.1} parent=27 // pred_fallthru
          _
      $region28: #{tpu_custom_call.1} parent=5 // pred_fallthru
        _
      %p2121 = scmp.le.s32.totalorder 2, %s15
      // Predicated region
      $region53: #{tpu_custom_call.1} parent=5 // pred_check
        %p2122 = pneg %p2121
      $region54: #{tpu_custom_call.1} parent=5 // pred_check_branch
        %2124 = sbr.rel (%p2122) target = $region56
      $region55: #{tpu_custom_call.1} parent=5 // pred_region
        %s2125 = ssub.s32 %s15, 2
        // Predicated region
        $region57: #{tpu_custom_call.1} parent=55 // pred_check
          %p2126 = pneg %p105
        $region58: #{tpu_custom_call.1} parent=55 // pred_check_branch
          %2128 = sbr.rel (%p2126) target = $region60
        $region59: #{tpu_custom_call.1} parent=55 // pred_region
          %s2129 = sand.u32 %s90, 1
          %s2130 = scalar_lea.sflag [#allocation5], %s2129
          %s2131 = sand.u32 %s90, 1
          %s2132 = smul.addr %s2131, 2
          %s2133 = scalar_lea.vmem [#allocation8], %s2132
          %2135 = dma.done %s2130, 32
        $region60: #{tpu_custom_call.1} parent=55 // pred_fallthru
          _
      $region56: #{tpu_custom_call.1} parent=5 // pred_fallthru
        _
    $region6: #{tpu_custom_call.1} parent=1 // loop_footer
      %s19 = sadd.s32 1, %s15
    $region7: #{tpu_custom_call.1} parent=1 // loop_footer_branch
      %14 = sbr.rel target = $region3
    $region8: #{tpu_custom_call.1} parent=1 // loop_exit
      _
    %2136 = vsyncpa [#allocation4], 1
    %s2137 = scalar_lea.sflag [#allocation4], 1
    %2138 = vsyncpa %s2137, 1
    %2139 = vsyncpa [#allocation5], 1
    %s2140 = scalar_lea.sflag [#allocation5], 1
    %2141 = vsyncpa %s2140, 1
    %2142 = vsyncpa [#allocation6], 1
    %s2143 = scalar_lea.sflag [#allocation6], 1
    %2144 = vsyncpa %s2143, 1

</llo_original>
